<compile_context>
chip_gen: v7x
topology: tpu7x:2x2x1
jax: 0.10.0
libtpu: 0.0.40
codegen_flags: <defaults>
</compile_context>

<pallas_src>
import numpy as np
import jax
import jax.numpy as jnp
from jax import lax
from jax.experimental import pallas as pl
from jax.experimental.pallas import tpu as pltpu


# ----------------------------------------------------------------------------- config

CONFIG = dict(
    static_feats_num=6,
    intervention_feats_num=3,
    vital_feats_num=4,
    window_size=16,          # T
    scoring_hidden_dim=32,
    k_coeffs=4,
    static_hidden_sizes=[16],
    dynamic_layers=1,
    fuse_dim=32,
    predictor_hidden_sizes=[16],
    out_dim=2,
    activation='relu',
    dropout=0.0,
    softmax_temp=1.0,
)
BATCH = 2


def _leaky_relu(x):
    return jnp.where(x >= 0, x, 0.01 * x)


def _elu(x):
    return jnp.where(x >= 0, x, jnp.expm1(x))


def _selu(x):
    alpha = 1.6732632423543772
    scale = 1.0507009873554805
    return scale * jnp.where(x >= 0, x, alpha * jnp.expm1(x))


ACT = {
    'relu': lambda x: jnp.maximum(x, 0.0),
    'sigmoid': jax.nn.sigmoid,
    'tanh': jnp.tanh,
    'leaky_relu': _leaky_relu,
    'elu': _elu,
    'selu': _selu,
}


# ----------------------------------------------------------------------------- fused kernel

def make_hip_kernel(cfg, act, n_static_layers, n_pred_layers):
    T = cfg['window_size']
    Nv = cfg['vital_feats_num']
    H = cfg['fuse_dim']
    k = cfg['k_coeffs']
    num_gru = cfg['dynamic_layers']
    NEG = -1e30

    n_score = 5                               # w1p, b1, w2, b2, idft
    n_stat = 2 * n_static_layers
    n_gru = 5 + 4 * (num_gru - 1)             # layer0: wi_dyn, wi_vit, bi, wh, bh ; rest: wi,bi,wh,bh
    n_pred = 3 + 2 * (n_pred_layers - 1)      # wp_static, wp_dyn, b0, then (w,b)*
    n_w = n_score + n_stat + n_gru + n_pred

    def kernel(*refs):
        c_ref, xdyn_ref, xs_ref = refs[0], refs[1], refs[2]
        w = refs[3:3 + n_w]
        logits_ref = refs[3 + n_w]
        xvit_ref = refs[3 + n_w + 1]
        scratch = refs[3 + n_w + 2:]

        pos = 0
        w1p, b1, w2, b2, idft = w[pos:pos + 5]; pos += 5
        stat_wb = w[pos:pos + n_stat]; pos += n_stat
        gru_w = w[pos:pos + n_gru]; pos += n_gru
        pred_w = w[pos:pos + n_pred]

        # ---------------- scoring MLP (this batch element) ----------------
        c = c_ref[0]                                              # (Nv, 2T)  [Re | Im]
        h = act(jnp.dot(c, w1p[...], preferred_element_type=jnp.float32) + b1[...])
        scores = jnp.dot(h, w2[...], preferred_element_type=jnp.float32) + b2[...]   # (Nv, T)

        # -------- hard top-k mask (STE forward value), built directly at width 2T --------
        iota = lax.broadcasted_iota(jnp.int32, (Nv, T), 1)
        iota2 = lax.broadcasted_iota(jnp.int32, (Nv, 2 * T), 1)
        iota2 = jnp.where(iota2 >= T, iota2 - T, iota2)           # column index mod T
        work = scores
        hard2 = jnp.zeros((Nv, 2 * T), jnp.float32)
        for _ in range(k):                                        # k small & static -> unrolled
            m = jnp.max(work, axis=-1, keepdims=True)
            first = jnp.min(jnp.where(work == m, iota, T), axis=-1, keepdims=True)
            hard2 = jnp.where(iota2 == first, 1.0, hard2)         # marks Re and Im slot
            work = jnp.where(iota == first, NEG, work)

        # ---- masked coeffs -> real(ifft): ONE fused IDFT matmul, time-major output ----
        sel = c * hard2                                           # (Nv, 2T)
        x_vit_t = lax.dot_general(idft[...], sel, (((1,), (1,)), ((), ())),
                                  preferred_element_type=jnp.float32)      # (T, Nv)
        xvit_ref[...] = x_vit_t[None]

        # ---------------- static encoder MLP ----------------
        hs = xs_ref[0]                                            # (1, Ns)
        for l in range(n_static_layers):
            wl, bl = stat_wb[2 * l], stat_wb[2 * l + 1]
            hs = jnp.dot(hs, wl[...], preferred_element_type=jnp.float32) + bl[...]
            if l < n_static_layers - 1:
                hs = act(hs)                                      # dropout == identity (eval)

        # ---------------- GRU (merged gates r|z|n, hoisted input matmuls) ----------------
        wi_d, wi_v, bi, wh, bh = gru_w[0:5]
        # input-gate pre-activations for ALL timesteps, bias folded in once
        g_in = (jnp.dot(xdyn_ref[0], wi_d[...], preferred_element_type=jnp.float32)
                + jnp.dot(x_vit_t, wi_v[...], preferred_element_type=jnp.float32)
                + bi[...])                                        # (T, 3H)
        wh_v, bh_v = wh[...], bh[...]
        hcur = jnp.zeros((1, H), jnp.float32)
        for layer in range(num_gru):
            if layer > 0:
                wi_l, bi_l, wh_l, bh_l = gru_w[5 + 4 * (layer - 1): 5 + 4 * layer]
                seq = scratch[0][...].reshape(T, H)
                g_in = (jnp.dot(seq, wi_l[...], preferred_element_type=jnp.float32)
                        + bi_l[...])
                wh_v, bh_v = wh_l[...], bh_l[...]
                hcur = jnp.zeros((1, H), jnp.float32)
            write_seq = layer < num_gru - 1
            for t in range(T):                                    # unrolled: T small & static
                g = g_in[t:t + 1, :]                              # (1, 3H)
                hw = jnp.dot(hcur, wh_v, preferred_element_type=jnp.float32) + bh_v
                r = jax.nn.sigmoid(g[:, 0:H] + hw[:, 0:H])
                z = jax.nn.sigmoid(g[:, H:2 * H] + hw[:, H:2 * H])
                n = jnp.tanh(g[:, 2 * H:3 * H] + r * hw[:, 2 * H:3 * H])
                hcur = (1.0 - z) * n + z * hcur
                if write_seq:
                    scratch[0][t] = hcur
        h_dyn = hcur                                              # h_n[-1] for this batch row

        # ---------- joint predictor MLP (first weight pre-split -> no in-kernel concat) ----------
        wp_s, wp_d, bp0 = pred_w[0], pred_w[1], pred_w[2]
        hj = (jnp.dot(hs, wp_s[...], preferred_element_type=jnp.float32)
              + jnp.dot(h_dyn, wp_d[...], preferred_element_type=jnp.float32)
              + bp0[...])
        for l in range(1, n_pred_layers):
            hj = act(hj)
            wl, bl = pred_w[3 + 2 * (l - 1)], pred_w[4 + 2 * (l - 1)]
            hj = jnp.dot(hj, wl[...], preferred_element_type=jnp.float32) + bl[...]
        logits_ref[...] = hj[None]

    return kernel


# ----------------------------------------------------------------------------- host-side prep

def prepare_kernel_params(params, cfg):
    """Pack / permute / pre-split parameters for the fused kernel (zero-cost, host side)."""
    T = cfg['window_size']
    Ni = cfg['intervention_feats_num']
    Fd = cfg['fuse_dim']

    # Row permutation so that [Re | Im] @ w1p == interleaved torch.view_as_real layout @ score_w1
    perm = np.concatenate([np.arange(T) * 2, np.arange(T) * 2 + 1])
    w1p = params['score_w1'][perm]

    # Fused real inverse-DFT, time-major:
    #   x[n] = 1/T * sum_t (Re X[t] cos(2*pi*n*t/T) - Im X[t] sin(2*pi*n*t/T))
    n = np.arange(T)
    theta = 2.0 * np.pi * np.outer(n, n) / T
    idft = np.concatenate([np.cos(theta), -np.sin(theta)], axis=1) / T       # (T, 2T)

    flat = [w1p, params['score_b1'], params['score_w2'], params['score_b2'],
            jnp.asarray(idft, jnp.float32)]

    for w_, b_ in zip(params['static_ws'], params['static_bs']):
        flat += [w_, b_]

    for l, layer in enumerate(params['gru']):
        (wir, wiz, win, whr, whz, whn, bir, biz, bin_, bhr, bhz, bhn) = layer
        wi = jnp.concatenate([wir, wiz, win], axis=1)     # (F_in, 3H)
        bi = jnp.concatenate([bir, biz, bin_], axis=1)    # (1, 3H)
        wh = jnp.concatenate([whr, whz, whn], axis=1)     # (H, 3H)
        bh = jnp.concatenate([bhr, bhz, bhn], axis=1)     # (1, 3H)
        if l == 0:
            flat += [wi[:Ni], wi[Ni:], bi, wh, bh]        # split: interventions | vitals
        else:
            flat += [wi, bi, wh, bh]

    wp0 = params['pred_ws'][0]
    flat += [wp0[:Fd], wp0[Fd:], params['pred_bs'][0]]    # split: static half | dynamic half
    for w_, b_ in zip(params['pred_ws'][1:], params['pred_bs'][1:]):
        flat += [w_, b_]
    return flat


def hip_forward_pallas(x_static, x_dynamic, fourier_coeffs, params, cfg):
    act = ACT[cfg['activation']]
    B, Nv, T = fourier_coeffs.shape
    H = cfg['fuse_dim']
    out_dim = cfg['out_dim']

    cr = jnp.real(fourier_coeffs).astype(jnp.float32)
    ci = jnp.imag(fourier_coeffs).astype(jnp.float32)
    c_cat = jnp.concatenate([cr, ci], axis=-1)            # (B, Nv, 2T)   [Re | Im]
    x_dyn_seq = jnp.transpose(x_dynamic, (0, 2, 1))       # (B, T, Ni)    time-major
    x_stat = x_static.reshape(B, 1, x_static.shape[-1])   # (B, 1, Ns)

    flat_w = prepare_kernel_params(params, cfg)
    n_static_layers = len(params['static_ws'])
    n_pred_layers = len(params['pred_ws'])
    num_gru = cfg['dynamic_layers']

    kernel = make_hip_kernel(cfg, act, n_static_layers, n_pred_layers)

    def batch_spec(shape):
        zeros = (0,) * (len(shape) - 1)
        return pl.BlockSpec((1,) + tuple(shape[1:]),
                            lambda i, zeros=zeros: (i,) + zeros)

    def const_spec(shape):
        zeros = (0,) * len(shape)
        return pl.BlockSpec(tuple(shape), lambda i, zeros=zeros: zeros)

    in_specs = ([batch_spec(c_cat.shape), batch_spec(x_dyn_seq.shape), batch_spec(x_stat.shape)]
                + [const_spec(a.shape) for a in flat_w])
    out_shape = (jax.ShapeDtypeStruct((B, 1, out_dim), jnp.float32),
                 jax.ShapeDtypeStruct((B, T, Nv), jnp.float32))
    out_specs = (batch_spec((B, 1, out_dim)), batch_spec((B, T, Nv)))
    scratch_shapes = [pltpu.VMEM((T, 1, H), jnp.float32)] if num_gru > 1 else []

    logits3, xvit_t = pl.pallas_call(
        kernel,
        out_shape=out_shape,
        grid=(B,),
        in_specs=in_specs,
        out_specs=out_specs,
        scratch_shapes=scratch_shapes,
        compiler_params=pltpu.CompilerParams(dimension_semantics=("parallel",)),
    )(c_cat, x_dyn_seq, x_stat, *flat_w)

    return {'logits': logits3.reshape(B, out_dim),
            'reconstructed_vitals': jnp.transpose(xvit_t, (0, 2, 1))}   # (B, Nv, T)


# -------------------------------------------------- pure-JAX reference (for validation)

def _mlp_ref(x, ws, bs, act):
    h = x
    for l, (w, b) in enumerate(zip(ws, bs)):
        h = h @ w + b
        if l < len(ws) - 1:
            h = act(h)
    return h


def _gru_ref(x_btf, gru_params):
    inp = x_btf
    h = None
    for (wir, wiz, win, whr, whz, whn, bir, biz, bin_, bhr, bhz, bhn) in gru_params:
        H = whr.shape[0]

        def step(h, x_t):
            r = jax.nn.sigmoid(x_t @ wir + bir + h @ whr + bhr)
            z = jax.nn.sigmoid(x_t @ wiz + biz + h @ whz + bhz)
            n = jnp.tanh(x_t @ win + bin_ + r * (h @ whn + bhn))
            h_new = (1.0 - z) * n + z * h
            return h_new, h_new

        h0 = jnp.zeros((inp.shape[0], H), jnp.float32)
        h, seq = lax.scan(step, h0, jnp.transpose(inp, (1, 0, 2)))
        inp = jnp.transpose(seq, (1, 0, 2))
    return h


def hip_forward_ref(x_static, x_dynamic, fourier_coeffs, params, cfg):
    act = ACT[cfg['activation']]
    B, Nv, T = fourier_coeffs.shape
    cr = jnp.real(fourier_coeffs)
    ci = jnp.imag(fourier_coeffs)
    cri = jnp.stack([cr, ci], axis=-1).reshape(B, Nv, 2 * T)
    h = act(cri @ params['score_w1'] + params['score_b1'])
    scores = h @ params['score_w2'] + params['score_b2']
    idx = lax.top_k(scores, cfg['k_coeffs'])[1]
    hard = jax.nn.one_hot(idx, T, dtype=jnp.float32).sum(axis=-2)
    sel = fourier_coeffs * hard
    x_vitals = jnp.fft.ifft(sel, axis=-1).real.astype(jnp.float32)
    x_dyn = jnp.concatenate([x_dynamic, x_vitals], axis=1)
    h_static = _mlp_ref(x_static, params['static_ws'], params['static_bs'], act)
    h_dyn = _gru_ref(jnp.transpose(x_dyn, (0, 2, 1)), params['gru'])
    h_joint = jnp.concatenate([h_static, h_dyn], axis=-1)
    logits = _mlp_ref(h_joint, params['pred_ws'], params['pred_bs'], act)
    return logits, x_vitals


# -------------------------------------------------- deterministic parameter init

def init_params(key, cfg):
    T = cfg['window_size']
    Hs = cfg['scoring_hidden_dim']
    Fd = cfg['fuse_dim']
    keys = iter(jax.random.split(key, 128))

    def lin(shape):
        bound = 1.0 / np.sqrt(shape[0])
        return jax.random.uniform(next(keys), shape, jnp.float32, -bound, bound)

    def bias(n, fan_in):
        bound = 1.0 / np.sqrt(fan_in)
        return jax.random.uniform(next(keys), (1, n), jnp.float32, -bound, bound)

    p = {}
    p['score_w1'] = lin((2 * T, Hs)); p['score_b1'] = bias(Hs, 2 * T)
    p['score_w2'] = lin((Hs, T));     p['score_b2'] = bias(T, Hs)

    def mlp_params(sizes):
        ws, bs = [], []
        for i in range(len(sizes) - 1):
            ws.append(lin((sizes[i], sizes[i + 1])))
            bs.append(bias(sizes[i + 1], sizes[i]))
        return ws, bs

    p['static_ws'], p['static_bs'] = mlp_params(
        [cfg['static_feats_num']] + list(cfg['static_hidden_sizes']) + [Fd])
    p['pred_ws'], p['pred_bs'] = mlp_params(
        [2 * Fd] + list(cfg['predictor_hidden_sizes']) + [cfg['out_dim']])

    gru_layers = []
    in_dim = cfg['intervention_feats_num'] + cfg['vital_feats_num']
    for l in range(cfg['dynamic_layers']):
        fi = in_dim if l == 0 else Fd
        layer = (lin((fi, Fd)), lin((fi, Fd)), lin((fi, Fd)),
                 lin((Fd, Fd)), lin((Fd, Fd)), lin((Fd, Fd)),
                 bias(Fd, fi), bias(Fd, fi), bias(Fd, fi),
                 bias(Fd, Fd), bias(Fd, Fd), bias(Fd, Fd))
        gru_layers.append(layer)
    p['gru'] = gru_layers
    return p


# -------------------------------------------------- main

if __name__ == "__main__":
    cfg = CONFIG
    key = jax.random.PRNGKey(0)
    k1, k2, k3, k4, kp = jax.random.split(key, 5)
    T = cfg['window_size']

    x_static = jax.random.normal(k1, (BATCH, cfg['static_feats_num']), jnp.float32)
    x_dynamic = jax.random.normal(k2, (BATCH, cfg['intervention_feats_num'], T), jnp.float32)
    vit_r = jax.random.normal(k3, (BATCH, cfg['vital_feats_num'], T), jnp.float32)
    vit_i = jax.random.normal(k4, (BATCH, cfg['vital_feats_num'], T), jnp.float32)
    fourier_coeffs = (vit_r + 1j * vit_i).astype(jnp.complex64)

    params = init_params(kp, cfg)

    out = hip_forward_pallas(x_static, x_dynamic, fourier_coeffs, params, cfg)
    out = jax.block_until_ready(out)

    ref_logits, ref_vitals = hip_forward_ref(x_static, x_dynamic, fourier_coeffs, params, cfg)
    np.testing.assert_allclose(np.asarray(out['reconstructed_vitals']),
                               np.asarray(ref_vitals), rtol=5e-3, atol=5e-3)
    np.testing.assert_allclose(np.asarray(out['logits']),
                               np.asarray(ref_logits), rtol=5e-3, atol=5e-3)
    print("KERNEL_OK")
</pallas_src>

<mosaic_0001>
module attributes {stable_mosaic.version = 11 : i64} {
  func.func @kernel(%arg0: i32, %arg1: memref<1x4x32xf32, #tpu.memory_space<vmem>>, %arg2: memref<1x16x3xf32, #tpu.memory_space<vmem>>, %arg3: memref<1x1x6xf32, #tpu.memory_space<vmem>>, %arg4: memref<32x32xf32, #tpu.memory_space<vmem>>, %arg5: memref<1x32xf32, #tpu.memory_space<vmem>>, %arg6: memref<32x16xf32, #tpu.memory_space<vmem>>, %arg7: memref<1x16xf32, #tpu.memory_space<vmem>>, %arg8: memref<16x32xf32, #tpu.memory_space<vmem>>, %arg9: memref<6x16xf32, #tpu.memory_space<vmem>>, %arg10: memref<1x16xf32, #tpu.memory_space<vmem>>, %arg11: memref<16x32xf32, #tpu.memory_space<vmem>>, %arg12: memref<1x32xf32, #tpu.memory_space<vmem>>, %arg13: memref<3x96xf32, #tpu.memory_space<vmem>>, %arg14: memref<4x96xf32, #tpu.memory_space<vmem>>, %arg15: memref<1x96xf32, #tpu.memory_space<vmem>>, %arg16: memref<32x96xf32, #tpu.memory_space<vmem>>, %arg17: memref<1x96xf32, #tpu.memory_space<vmem>>, %arg18: memref<32x16xf32, #tpu.memory_space<vmem>>, %arg19: memref<32x16xf32, #tpu.memory_space<vmem>>, %arg20: memref<1x16xf32, #tpu.memory_space<vmem>>, %arg21: memref<16x2xf32, #tpu.memory_space<vmem>>, %arg22: memref<1x2xf32, #tpu.memory_space<vmem>>, %arg23: memref<1x1x2xf32, #tpu.memory_space<vmem>>, %arg24: memref<1x16x4xf32, #tpu.memory_space<vmem>>) attributes {dimension_semantics = [#tpu.dimension_semantics<parallel>], iteration_bounds = array<i64: 2>, scalar_prefetch = 0 : i64, scratch_operands = 0 : i64, tpu.core_type = #tpu.core_type<tc>, window_params = [{transform_indices = @transform_0, window_bounds = array<i64: 1, 4, 32>}, {transform_indices = @transform_1, window_bounds = array<i64: 1, 16, 3>}, {transform_indices = @transform_2, window_bounds = array<i64: 1, 1, 6>}, {pipeline_mode = #tpu.pipeline_mode<synchronous>, transform_indices = @transform_3, window_bounds = array<i64: 32, 32>}, {pipeline_mode = #tpu.pipeline_mode<synchronous>, transform_indices = @transform_4, window_bounds = array<i64: 1, 32>}, {pipeline_mode = #tpu.pipeline_mode<synchronous>, transform_indices = @transform_5, window_bounds = array<i64: 32, 16>}, {pipeline_mode = #tpu.pipeline_mode<synchronous>, transform_indices = @transform_6, window_bounds = array<i64: 1, 16>}, {pipeline_mode = #tpu.pipeline_mode<synchronous>, transform_indices = @transform_7, window_bounds = array<i64: 16, 32>}, {pipeline_mode = #tpu.pipeline_mode<synchronous>, transform_indices = @transform_8, window_bounds = array<i64: 6, 16>}, {pipeline_mode = #tpu.pipeline_mode<synchronous>, transform_indices = @transform_9, window_bounds = array<i64: 1, 16>}, {pipeline_mode = #tpu.pipeline_mode<synchronous>, transform_indices = @transform_10, window_bounds = array<i64: 16, 32>}, {pipeline_mode = #tpu.pipeline_mode<synchronous>, transform_indices = @transform_11, window_bounds = array<i64: 1, 32>}, {pipeline_mode = #tpu.pipeline_mode<synchronous>, transform_indices = @transform_12, window_bounds = array<i64: 3, 96>}, {pipeline_mode = #tpu.pipeline_mode<synchronous>, transform_indices = @transform_13, window_bounds = array<i64: 4, 96>}, {pipeline_mode = #tpu.pipeline_mode<synchronous>, transform_indices = @transform_14, window_bounds = array<i64: 1, 96>}, {pipeline_mode = #tpu.pipeline_mode<synchronous>, transform_indices = @transform_15, window_bounds = array<i64: 32, 96>}, {pipeline_mode = #tpu.pipeline_mode<synchronous>, transform_indices = @transform_16, window_bounds = array<i64: 1, 96>}, {pipeline_mode = #tpu.pipeline_mode<synchronous>, transform_indices = @transform_17, window_bounds = array<i64: 32, 16>}, {pipeline_mode = #tpu.pipeline_mode<synchronous>, transform_indices = @transform_18, window_bounds = array<i64: 32, 16>}, {pipeline_mode = #tpu.pipeline_mode<synchronous>, transform_indices = @transform_19, window_bounds = array<i64: 1, 16>}, {pipeline_mode = #tpu.pipeline_mode<synchronous>, transform_indices = @transform_20, window_bounds = array<i64: 16, 2>}, {pipeline_mode = #tpu.pipeline_mode<synchronous>, transform_indices = @transform_21, window_bounds = array<i64: 1, 2>}, {transform_indices = @transform_22, window_bounds = array<i64: 1, 1, 2>}, {transform_indices = @transform_23, window_bounds = array<i64: 1, 16, 4>}]} {
    %c0 = arith.constant 0 : index
    %c0_0 = arith.constant 0 : index
    %c0_1 = arith.constant 0 : index
    %0 = vector.load %arg1[%c0, %c0_0, %c0_1] : memref<1x4x32xf32, #tpu.memory_space<vmem>>, vector<1x4x32xf32>
    %1 = vector.shape_cast %0 : vector<1x4x32xf32> to vector<4x32xf32>
    %c0_2 = arith.constant 0 : index
    %c0_3 = arith.constant 0 : index
    %2 = vector.load %arg4[%c0_2, %c0_3] : memref<32x32xf32, #tpu.memory_space<vmem>>, vector<32x32xf32>
    %cst = arith.constant dense<0.000000e+00> : vector<4x32xf32>
    %3 = tpu.matmul %1, %2, %cst {dimension_numbers = #tpu.dot_dimension_numbers<[1], [0], [0], [1], [0, 0, 1, 1], [], []>} : vector<4x32xf32>, vector<32x32xf32>, vector<4x32xf32> -> vector<4x32xf32>
    %c0_4 = arith.constant 0 : index
    %c0_5 = arith.constant 0 : index
    %4 = vector.load %arg5[%c0_4, %c0_5] : memref<1x32xf32, #tpu.memory_space<vmem>>, vector<1x32xf32>
    %5 = vector.broadcast %4 : vector<1x32xf32> to vector<4x32xf32>
    %6 = arith.addf %3, %5 : vector<4x32xf32>
    %cst_6 = arith.constant 0.000000e+00 : f32
    %7 = vector.broadcast %cst_6 : f32 to vector<4x32xf32>
    %8 = arith.maximumf %6, %7 : vector<4x32xf32>
    %c0_7 = arith.constant 0 : index
    %c0_8 = arith.constant 0 : index
    %9 = vector.load %arg6[%c0_7, %c0_8] : memref<32x16xf32, #tpu.memory_space<vmem>>, vector<32x16xf32>
    %cst_9 = arith.constant dense<0.000000e+00> : vector<4x16xf32>
    %10 = tpu.matmul %8, %9, %cst_9 {dimension_numbers = #tpu.dot_dimension_numbers<[1], [0], [0], [1], [0, 0, 1, 1], [], []>} : vector<4x32xf32>, vector<32x16xf32>, vector<4x16xf32> -> vector<4x16xf32>
    %c0_10 = arith.constant 0 : index
    %c0_11 = arith.constant 0 : index
    %11 = vector.load %arg7[%c0_10, %c0_11] : memref<1x16xf32, #tpu.memory_space<vmem>>, vector<1x16xf32>
    %12 = vector.broadcast %11 : vector<1x16xf32> to vector<4x16xf32>
    %13 = arith.addf %10, %12 : vector<4x16xf32>
    %14 = tpu.iota {dimensions = array<i32: 1>} : vector<4x16xi32>
    %15 = tpu.iota {dimensions = array<i32: 1>} : vector<4x32xi32>
    %c16_i32 = arith.constant 16 : i32
    %16 = vector.broadcast %c16_i32 : i32 to vector<4x32xi32>
    %17 = arith.cmpi sge, %15, %16 : vector<4x32xi32>
    %c16_i32_12 = arith.constant 16 : i32
    %18 = vector.broadcast %c16_i32_12 : i32 to vector<4x32xi32>
    %19 = arith.subi %15, %18 : vector<4x32xi32>
    %20 = arith.select %17, %19, %15 : vector<4x32xi1>, vector<4x32xi32>
    %cst_13 = arith.constant 0.000000e+00 : f32
    %21 = vector.broadcast %cst_13 : f32 to vector<4x32xf32>
    %cst_14 = arith.constant dense<0xFF800000> : vector<4xf32>
    %22 = vector.multi_reduction <maximumf>, %13, %cst_14 [1] : vector<4x16xf32> to vector<4xf32>
    %23 = vector.shape_cast %22 : vector<4xf32> to vector<4x1xf32>
    %24 = vector.broadcast %23 : vector<4x1xf32> to vector<4x16xf32>
    %25 = arith.cmpf oeq, %13, %24 : vector<4x16xf32>
    %c16_i32_15 = arith.constant 16 : i32
    %26 = vector.broadcast %c16_i32_15 : i32 to vector<4x16xi32>
    %27 = arith.select %25, %14, %26 : vector<4x16xi1>, vector<4x16xi32>
    %cst_16 = arith.constant dense<2147483647> : vector<4xi32>
    %28 = vector.multi_reduction <minsi>, %27, %cst_16 [1] : vector<4x16xi32> to vector<4xi32>
    %29 = vector.shape_cast %28 : vector<4xi32> to vector<4x1xi32>
    %30 = vector.broadcast %29 : vector<4x1xi32> to vector<4x32xi32>
    %31 = arith.cmpi eq, %20, %30 : vector<4x32xi32>
    %cst_17 = arith.constant 1.000000e+00 : f32
    %32 = vector.broadcast %cst_17 : f32 to vector<4x32xf32>
    %33 = arith.select %31, %32, %21 : vector<4x32xi1>, vector<4x32xf32>
    %34 = vector.broadcast %29 : vector<4x1xi32> to vector<4x16xi32>
    %35 = arith.cmpi eq, %14, %34 : vector<4x16xi32>
    %cst_18 = arith.constant -1.000000e+30 : f32
    %36 = vector.broadcast %cst_18 : f32 to vector<4x16xf32>
    %37 = arith.select %35, %36, %13 : vector<4x16xi1>, vector<4x16xf32>
    %cst_19 = arith.constant dense<0xFF800000> : vector<4xf32>
    %38 = vector.multi_reduction <maximumf>, %37, %cst_19 [1] : vector<4x16xf32> to vector<4xf32>
    %39 = vector.shape_cast %38 : vector<4xf32> to vector<4x1xf32>
    %40 = vector.broadcast %39 : vector<4x1xf32> to vector<4x16xf32>
    %41 = arith.cmpf oeq, %37, %40 : vector<4x16xf32>
    %c16_i32_20 = arith.constant 16 : i32
    %42 = vector.broadcast %c16_i32_20 : i32 to vector<4x16xi32>
    %43 = arith.select %41, %14, %42 : vector<4x16xi1>, vector<4x16xi32>
    %cst_21 = arith.constant dense<2147483647> : vector<4xi32>
    %44 = vector.multi_reduction <minsi>, %43, %cst_21 [1] : vector<4x16xi32> to vector<4xi32>
    %45 = vector.shape_cast %44 : vector<4xi32> to vector<4x1xi32>
    %46 = vector.broadcast %45 : vector<4x1xi32> to vector<4x32xi32>
    %47 = arith.cmpi eq, %20, %46 : vector<4x32xi32>
    %cst_22 = arith.constant 1.000000e+00 : f32
    %48 = vector.broadcast %cst_22 : f32 to vector<4x32xf32>
    %49 = arith.select %47, %48, %33 : vector<4x32xi1>, vector<4x32xf32>
    %50 = vector.broadcast %45 : vector<4x1xi32> to vector<4x16xi32>
    %51 = arith.cmpi eq, %14, %50 : vector<4x16xi32>
    %cst_23 = arith.constant -1.000000e+30 : f32
    %52 = vector.broadcast %cst_23 : f32 to vector<4x16xf32>
    %53 = arith.select %51, %52, %37 : vector<4x16xi1>, vector<4x16xf32>
    %cst_24 = arith.constant dense<0xFF800000> : vector<4xf32>
    %54 = vector.multi_reduction <maximumf>, %53, %cst_24 [1] : vector<4x16xf32> to vector<4xf32>
    %55 = vector.shape_cast %54 : vector<4xf32> to vector<4x1xf32>
    %56 = vector.broadcast %55 : vector<4x1xf32> to vector<4x16xf32>
    %57 = arith.cmpf oeq, %53, %56 : vector<4x16xf32>
    %c16_i32_25 = arith.constant 16 : i32
    %58 = vector.broadcast %c16_i32_25 : i32 to vector<4x16xi32>
    %59 = arith.select %57, %14, %58 : vector<4x16xi1>, vector<4x16xi32>
    %cst_26 = arith.constant dense<2147483647> : vector<4xi32>
    %60 = vector.multi_reduction <minsi>, %59, %cst_26 [1] : vector<4x16xi32> to vector<4xi32>
    %61 = vector.shape_cast %60 : vector<4xi32> to vector<4x1xi32>
    %62 = vector.broadcast %61 : vector<4x1xi32> to vector<4x32xi32>
    %63 = arith.cmpi eq, %20, %62 : vector<4x32xi32>
    %cst_27 = arith.constant 1.000000e+00 : f32
    %64 = vector.broadcast %cst_27 : f32 to vector<4x32xf32>
    %65 = arith.select %63, %64, %49 : vector<4x32xi1>, vector<4x32xf32>
    %66 = vector.broadcast %61 : vector<4x1xi32> to vector<4x16xi32>
    %67 = arith.cmpi eq, %14, %66 : vector<4x16xi32>
    %cst_28 = arith.constant -1.000000e+30 : f32
    %68 = vector.broadcast %cst_28 : f32 to vector<4x16xf32>
    %69 = arith.select %67, %68, %53 : vector<4x16xi1>, vector<4x16xf32>
    %cst_29 = arith.constant dense<0xFF800000> : vector<4xf32>
    %70 = vector.multi_reduction <maximumf>, %69, %cst_29 [1] : vector<4x16xf32> to vector<4xf32>
    %71 = vector.shape_cast %70 : vector<4xf32> to vector<4x1xf32>
    %72 = vector.broadcast %71 : vector<4x1xf32> to vector<4x16xf32>
    %73 = arith.cmpf oeq, %69, %72 : vector<4x16xf32>
    %c16_i32_30 = arith.constant 16 : i32
    %74 = vector.broadcast %c16_i32_30 : i32 to vector<4x16xi32>
    %75 = arith.select %73, %14, %74 : vector<4x16xi1>, vector<4x16xi32>
    %cst_31 = arith.constant dense<2147483647> : vector<4xi32>
    %76 = vector.multi_reduction <minsi>, %75, %cst_31 [1] : vector<4x16xi32> to vector<4xi32>
    %77 = vector.shape_cast %76 : vector<4xi32> to vector<4x1xi32>
    %78 = vector.broadcast %77 : vector<4x1xi32> to vector<4x32xi32>
    %79 = arith.cmpi eq, %20, %78 : vector<4x32xi32>
    %cst_32 = arith.constant 1.000000e+00 : f32
    %80 = vector.broadcast %cst_32 : f32 to vector<4x32xf32>
    %81 = arith.select %79, %80, %65 : vector<4x32xi1>, vector<4x32xf32>
    %82 = arith.mulf %1, %81 : vector<4x32xf32>
    %c0_33 = arith.constant 0 : index
    %c0_34 = arith.constant 0 : index
    %83 = vector.load %arg8[%c0_33, %c0_34] : memref<16x32xf32, #tpu.memory_space<vmem>>, vector<16x32xf32>
    %cst_35 = arith.constant dense<0.000000e+00> : vector<16x4xf32>
    %84 = tpu.matmul %83, %82, %cst_35 {dimension_numbers = #tpu.dot_dimension_numbers<[1], [1], [0], [0], [0, 0, 1, 0], [], []>} : vector<16x32xf32>, vector<4x32xf32>, vector<16x4xf32> -> vector<16x4xf32>
    %85 = vector.shape_cast %84 : vector<16x4xf32> to vector<1x16x4xf32>
    %c0_36 = arith.constant 0 : index
    %c0_37 = arith.constant 0 : index
    %c0_38 = arith.constant 0 : index
    %86 = vector.load %arg24[%c0_36, %c0_37, %c0_38] : memref<1x16x4xf32, #tpu.memory_space<vmem>>, vector<1x16x4xf32>
    tpu.vector_store %arg24[%c0_36, %c0_37, %c0_38], %85 {strides = array<i32>} : memref<1x16x4xf32, #tpu.memory_space<vmem>>, vector<1x16x4xf32>,
    %c0_39 = arith.constant 0 : index
    %c0_40 = arith.constant 0 : index
    %c0_41 = arith.constant 0 : index
    %87 = vector.load %arg3[%c0_39, %c0_40, %c0_41] : memref<1x1x6xf32, #tpu.memory_space<vmem>>, vector<1x1x6xf32>
    %88 = vector.shape_cast %87 : vector<1x1x6xf32> to vector<1x6xf32>
    %c0_42 = arith.constant 0 : index
    %c0_43 = arith.constant 0 : index
    %89 = vector.load %arg9[%c0_42, %c0_43] : memref<6x16xf32, #tpu.memory_space<vmem>>, vector<6x16xf32>
    %cst_44 = arith.constant dense<0.000000e+00> : vector<1x16xf32>
    %90 = tpu.matmul %88, %89, %cst_44 {dimension_numbers = #tpu.dot_dimension_numbers<[1], [0], [0], [1], [0, 0, 1, 1], [], []>} : vector<1x6xf32>, vector<6x16xf32>, vector<1x16xf32> -> vector<1x16xf32>
    %c0_45 = arith.constant 0 : index
    %c0_46 = arith.constant 0 : index
    %91 = vector.load %arg10[%c0_45, %c0_46] : memref<1x16xf32, #tpu.memory_space<vmem>>, vector<1x16xf32>
    %92 = arith.addf %90, %91 : vector<1x16xf32>
    %cst_47 = arith.constant 0.000000e+00 : f32
    %93 = vector.broadcast %cst_47 : f32 to vector<1x16xf32>
    %94 = arith.maximumf %92, %93 : vector<1x16xf32>
    %c0_48 = arith.constant 0 : index
    %c0_49 = arith.constant 0 : index
    %95 = vector.load %arg11[%c0_48, %c0_49] : memref<16x32xf32, #tpu.memory_space<vmem>>, vector<16x32xf32>
    %cst_50 = arith.constant dense<0.000000e+00> : vector<1x32xf32>
    %96 = tpu.matmul %94, %95, %cst_50 {dimension_numbers = #tpu.dot_dimension_numbers<[1], [0], [0], [1], [0, 0, 1, 1], [], []>} : vector<1x16xf32>, vector<16x32xf32>, vector<1x32xf32> -> vector<1x32xf32>
    %c0_51 = arith.constant 0 : index
    %c0_52 = arith.constant 0 : index
    %97 = vector.load %arg12[%c0_51, %c0_52] : memref<1x32xf32, #tpu.memory_space<vmem>>, vector<1x32xf32>
    %98 = arith.addf %96, %97 : vector<1x32xf32>
    %c0_53 = arith.constant 0 : index
    %c0_54 = arith.constant 0 : index
    %c0_55 = arith.constant 0 : index
    %99 = vector.load %arg2[%c0_53, %c0_54, %c0_55] : memref<1x16x3xf32, #tpu.memory_space<vmem>>, vector<1x16x3xf32>
    %100 = vector.shape_cast %99 : vector<1x16x3xf32> to vector<16x3xf32>
    %c0_56 = arith.constant 0 : index
    %c0_57 = arith.constant 0 : index
    %101 = vector.load %arg13[%c0_56, %c0_57] : memref<3x96xf32, #tpu.memory_space<vmem>>, vector<3x96xf32>
    %cst_58 = arith.constant dense<0.000000e+00> : vector<16x96xf32>
    %102 = tpu.matmul %100, %101, %cst_58 {dimension_numbers = #tpu.dot_dimension_numbers<[1], [0], [0], [1], [0, 0, 1, 1], [], []>} : vector<16x3xf32>, vector<3x96xf32>, vector<16x96xf32> -> vector<16x96xf32>
    %c0_59 = arith.constant 0 : index
    %c0_60 = arith.constant 0 : index
    %103 = vector.load %arg14[%c0_59, %c0_60] : memref<4x96xf32, #tpu.memory_space<vmem>>, vector<4x96xf32>
    %cst_61 = arith.constant dense<0.000000e+00> : vector<16x96xf32>
    %104 = tpu.matmul %84, %103, %cst_61 {dimension_numbers = #tpu.dot_dimension_numbers<[1], [0], [0], [1], [0, 0, 1, 1], [], []>} : vector<16x4xf32>, vector<4x96xf32>, vector<16x96xf32> -> vector<16x96xf32>
    %105 = arith.addf %102, %104 : vector<16x96xf32>
    %c0_62 = arith.constant 0 : index
    %c0_63 = arith.constant 0 : index
    %106 = vector.load %arg15[%c0_62, %c0_63] : memref<1x96xf32, #tpu.memory_space<vmem>>, vector<1x96xf32>
    %107 = vector.broadcast %106 : vector<1x96xf32> to vector<16x96xf32>
    %108 = arith.addf %105, %107 : vector<16x96xf32>
    %c0_64 = arith.constant 0 : index
    %c0_65 = arith.constant 0 : index
    %109 = vector.load %arg16[%c0_64, %c0_65] : memref<32x96xf32, #tpu.memory_space<vmem>>, vector<32x96xf32>
    %c0_66 = arith.constant 0 : index
    %c0_67 = arith.constant 0 : index
    %110 = vector.load %arg17[%c0_66, %c0_67] : memref<1x96xf32, #tpu.memory_space<vmem>>, vector<1x96xf32>
    %cst_68 = arith.constant 0.000000e+00 : f32
    %111 = vector.broadcast %cst_68 : f32 to vector<1x32xf32>
    %112 = vector.extract_strided_slice %108 {offsets = [0, 0], sizes = [1, 96], strides = [1, 1]} : vector<16x96xf32> to vector<1x96xf32>
    %cst_69 = arith.constant dense<0.000000e+00> : vector<1x96xf32>
    %113 = tpu.matmul %111, %109, %cst_69 {dimension_numbers = #tpu.dot_dimension_numbers<[1], [0], [0], [1], [0, 0, 1, 1], [], []>} : vector<1x32xf32>, vector<32x96xf32>, vector<1x96xf32> -> vector<1x96xf32>
    %114 = arith.addf %113, %110 : vector<1x96xf32>
    %115 = vector.extract_strided_slice %112 {offsets = [0, 0], sizes = [1, 32], strides = [1, 1]} : vector<1x96xf32> to vector<1x32xf32>
    %116 = vector.extract_strided_slice %114 {offsets = [0, 0], sizes = [1, 32], strides = [1, 1]} : vector<1x96xf32> to vector<1x32xf32>
    %117 = arith.addf %115, %116 : vector<1x32xf32>
    %118 = arith.negf %117 : vector<1x32xf32>
    %119 = math.exp %118 : vector<1x32xf32>
    %cst_70 = arith.constant 1.000000e+00 : f32
    %120 = vector.broadcast %cst_70 : f32 to vector<1x32xf32>
    %121 = arith.addf %120, %119 : vector<1x32xf32>
    %122 = arith.divf %120, %121 : vector<1x32xf32>
    %123 = vector.extract_strided_slice %112 {offsets = [0, 32], sizes = [1, 32], strides = [1, 1]} : vector<1x96xf32> to vector<1x32xf32>
    %124 = vector.extract_strided_slice %114 {offsets = [0, 32], sizes = [1, 32], strides = [1, 1]} : vector<1x96xf32> to vector<1x32xf32>
    %125 = arith.addf %123, %124 : vector<1x32xf32>
    %126 = arith.negf %125 : vector<1x32xf32>
    %127 = math.exp %126 : vector<1x32xf32>
    %cst_71 = arith.constant 1.000000e+00 : f32
    %128 = vector.broadcast %cst_71 : f32 to vector<1x32xf32>
    %129 = arith.addf %128, %127 : vector<1x32xf32>
    %130 = arith.divf %128, %129 : vector<1x32xf32>
    %131 = vector.extract_strided_slice %112 {offsets = [0, 64], sizes = [1, 32], strides = [1, 1]} : vector<1x96xf32> to vector<1x32xf32>
    %132 = vector.extract_strided_slice %114 {offsets = [0, 64], sizes = [1, 32], strides = [1, 1]} : vector<1x96xf32> to vector<1x32xf32>
    %133 = arith.mulf %122, %132 : vector<1x32xf32>
    %134 = arith.addf %131, %133 : vector<1x32xf32>
    %135 = math.tanh %134 : vector<1x32xf32>
    %cst_72 = arith.constant 1.000000e+00 : f32
    %136 = vector.broadcast %cst_72 : f32 to vector<1x32xf32>
    %137 = arith.subf %136, %130 : vector<1x32xf32>
    %138 = arith.mulf %137, %135 : vector<1x32xf32>
    %139 = arith.mulf %130, %111 : vector<1x32xf32>
    %140 = arith.addf %138, %139 : vector<1x32xf32>
    %141 = vector.extract_strided_slice %108 {offsets = [1, 0], sizes = [1, 96], strides = [1, 1]} : vector<16x96xf32> to vector<1x96xf32>
    %cst_73 = arith.constant dense<0.000000e+00> : vector<1x96xf32>
    %142 = tpu.matmul %140, %109, %cst_73 {dimension_numbers = #tpu.dot_dimension_numbers<[1], [0], [0], [1], [0, 0, 1, 1], [], []>} : vector<1x32xf32>, vector<32x96xf32>, vector<1x96xf32> -> vector<1x96xf32>
    %143 = arith.addf %142, %110 : vector<1x96xf32>
    %144 = vector.extract_strided_slice %141 {offsets = [0, 0], sizes = [1, 32], strides = [1, 1]} : vector<1x96xf32> to vector<1x32xf32>
    %145 = vector.extract_strided_slice %143 {offsets = [0, 0], sizes = [1, 32], strides = [1, 1]} : vector<1x96xf32> to vector<1x32xf32>
    %146 = arith.addf %144, %145 : vector<1x32xf32>
    %147 = arith.negf %146 : vector<1x32xf32>
    %148 = math.exp %147 : vector<1x32xf32>
    %cst_74 = arith.constant 1.000000e+00 : f32
    %149 = vector.broadcast %cst_74 : f32 to vector<1x32xf32>
    %150 = arith.addf %149, %148 : vector<1x32xf32>
    %151 = arith.divf %149, %150 : vector<1x32xf32>
    %152 = vector.extract_strided_slice %141 {offsets = [0, 32], sizes = [1, 32], strides = [1, 1]} : vector<1x96xf32> to vector<1x32xf32>
    %153 = vector.extract_strided_slice %143 {offsets = [0, 32], sizes = [1, 32], strides = [1, 1]} : vector<1x96xf32> to vector<1x32xf32>
    %154 = arith.addf %152, %153 : vector<1x32xf32>
    %155 = arith.negf %154 : vector<1x32xf32>
    %156 = math.exp %155 : vector<1x32xf32>
    %cst_75 = arith.constant 1.000000e+00 : f32
    %157 = vector.broadcast %cst_75 : f32 to vector<1x32xf32>
    %158 = arith.addf %157, %156 : vector<1x32xf32>
    %159 = arith.divf %157, %158 : vector<1x32xf32>
    %160 = vector.extract_strided_slice %141 {offsets = [0, 64], sizes = [1, 32], strides = [1, 1]} : vector<1x96xf32> to vector<1x32xf32>
    %161 = vector.extract_strided_slice %143 {offsets = [0, 64], sizes = [1, 32], strides = [1, 1]} : vector<1x96xf32> to vector<1x32xf32>
    %162 = arith.mulf %151, %161 : vector<1x32xf32>
    %163 = arith.addf %160, %162 : vector<1x32xf32>
    %164 = math.tanh %163 : vector<1x32xf32>
    %cst_76 = arith.constant 1.000000e+00 : f32
    %165 = vector.broadcast %cst_76 : f32 to vector<1x32xf32>
    %166 = arith.subf %165, %159 : vector<1x32xf32>
    %167 = arith.mulf %166, %164 : vector<1x32xf32>
    %168 = arith.mulf %159, %140 : vector<1x32xf32>
    %169 = arith.addf %167, %168 : vector<1x32xf32>
    %170 = vector.extract_strided_slice %108 {offsets = [2, 0], sizes = [1, 96], strides = [1, 1]} : vector<16x96xf32> to vector<1x96xf32>
    %cst_77 = arith.constant dense<0.000000e+00> : vector<1x96xf32>
    %171 = tpu.matmul %169, %109, %cst_77 {dimension_numbers = #tpu.dot_dimension_numbers<[1], [0], [0], [1], [0, 0, 1, 1], [], []>} : vector<1x32xf32>, vector<32x96xf32>, vector<1x96xf32> -> vector<1x96xf32>
    %172 = arith.addf %171, %110 : vector<1x96xf32>
    %173 = vector.extract_strided_slice %170 {offsets = [0, 0], sizes = [1, 32], strides = [1, 1]} : vector<1x96xf32> to vector<1x32xf32>
    %174 = vector.extract_strided_slice %172 {offsets = [0, 0], sizes = [1, 32], strides = [1, 1]} : vector<1x96xf32> to vector<1x32xf32>
    %175 = arith.addf %173, %174 : vector<1x32xf32>
    %176 = arith.negf %175 : vector<1x32xf32>
    %177 = math.exp %176 : vector<1x32xf32>
    %cst_78 = arith.constant 1.000000e+00 : f32
    %178 = vector.broadcast %cst_78 : f32 to vector<1x32xf32>
    %179 = arith.addf %178, %177 : vector<1x32xf32>
    %180 = arith.divf %178, %179 : vector<1x32xf32>
    %181 = vector.extract_strided_slice %170 {offsets = [0, 32], sizes = [1, 32], strides = [1, 1]} : vector<1x96xf32> to vector<1x32xf32>
    %182 = vector.extract_strided_slice %172 {offsets = [0, 32], sizes = [1, 32], strides = [1, 1]} : vector<1x96xf32> to vector<1x32xf32>
    %183 = arith.addf %181, %182 : vector<1x32xf32>
    %184 = arith.negf %183 : vector<1x32xf32>
    %185 = math.exp %184 : vector<1x32xf32>
    %cst_79 = arith.constant 1.000000e+00 : f32
    %186 = vector.broadcast %cst_79 : f32 to vector<1x32xf32>
    %187 = arith.addf %186, %185 : vector<1x32xf32>
    %188 = arith.divf %186, %187 : vector<1x32xf32>
    %189 = vector.extract_strided_slice %170 {offsets = [0, 64], sizes = [1, 32], strides = [1, 1]} : vector<1x96xf32> to vector<1x32xf32>
    %190 = vector.extract_strided_slice %172 {offsets = [0, 64], sizes = [1, 32], strides = [1, 1]} : vector<1x96xf32> to vector<1x32xf32>
    %191 = arith.mulf %180, %190 : vector<1x32xf32>
    %192 = arith.addf %189, %191 : vector<1x32xf32>
    %193 = math.tanh %192 : vector<1x32xf32>
    %cst_80 = arith.constant 1.000000e+00 : f32
    %194 = vector.broadcast %cst_80 : f32 to vector<1x32xf32>
    %195 = arith.subf %194, %188 : vector<1x32xf32>
    %196 = arith.mulf %195, %193 : vector<1x32xf32>
    %197 = arith.mulf %188, %169 : vector<1x32xf32>
    %198 = arith.addf %196, %197 : vector<1x32xf32>
    %199 = vector.extract_strided_slice %108 {offsets = [3, 0], sizes = [1, 96], strides = [1, 1]} : vector<16x96xf32> to vector<1x96xf32>
    %cst_81 = arith.constant dense<0.000000e+00> : vector<1x96xf32>
    %200 = tpu.matmul %198, %109, %cst_81 {dimension_numbers = #tpu.dot_dimension_numbers<[1], [0], [0], [1], [0, 0, 1, 1], [], []>} : vector<1x32xf32>, vector<32x96xf32>, vector<1x96xf32> -> vector<1x96xf32>
    %201 = arith.addf %200, %110 : vector<1x96xf32>
    %202 = vector.extract_strided_slice %199 {offsets = [0, 0], sizes = [1, 32], strides = [1, 1]} : vector<1x96xf32> to vector<1x32xf32>
    %203 = vector.extract_strided_slice %201 {offsets = [0, 0], sizes = [1, 32], strides = [1, 1]} : vector<1x96xf32> to vector<1x32xf32>
    %204 = arith.addf %202, %203 : vector<1x32xf32>
    %205 = arith.negf %204 : vector<1x32xf32>
    %206 = math.exp %205 : vector<1x32xf32>
    %cst_82 = arith.constant 1.000000e+00 : f32
    %207 = vector.broadcast %cst_82 : f32 to vector<1x32xf32>
    %208 = arith.addf %207, %206 : vector<1x32xf32>
    %209 = arith.divf %207, %208 : vector<1x32xf32>
    %210 = vector.extract_strided_slice %199 {offsets = [0, 32], sizes = [1, 32], strides = [1, 1]} : vector<1x96xf32> to vector<1x32xf32>
    %211 = vector.extract_strided_slice %201 {offsets = [0, 32], sizes = [1, 32], strides = [1, 1]} : vector<1x96xf32> to vector<1x32xf32>
    %212 = arith.addf %210, %211 : vector<1x32xf32>
    %213 = arith.negf %212 : vector<1x32xf32>
    %214 = math.exp %213 : vector<1x32xf32>
    %cst_83 = arith.constant 1.000000e+00 : f32
    %215 = vector.broadcast %cst_83 : f32 to vector<1x32xf32>
    %216 = arith.addf %215, %214 : vector<1x32xf32>
    %217 = arith.divf %215, %216 : vector<1x32xf32>
    %218 = vector.extract_strided_slice %199 {offsets = [0, 64], sizes = [1, 32], strides = [1, 1]} : vector<1x96xf32> to vector<1x32xf32>
    %219 = vector.extract_strided_slice %201 {offsets = [0, 64], sizes = [1, 32], strides = [1, 1]} : vector<1x96xf32> to vector<1x32xf32>
    %220 = arith.mulf %209, %219 : vector<1x32xf32>
    %221 = arith.addf %218, %220 : vector<1x32xf32>
    %222 = math.tanh %221 : vector<1x32xf32>
    %cst_84 = arith.constant 1.000000e+00 : f32
    %223 = vector.broadcast %cst_84 : f32 to vector<1x32xf32>
    %224 = arith.subf %223, %217 : vector<1x32xf32>
    %225 = arith.mulf %224, %222 : vector<1x32xf32>
    %226 = arith.mulf %217, %198 : vector<1x32xf32>
    %227 = arith.addf %225, %226 : vector<1x32xf32>
    %228 = vector.extract_strided_slice %108 {offsets = [4, 0], sizes = [1, 96], strides = [1, 1]} : vector<16x96xf32> to vector<1x96xf32>
    %cst_85 = arith.constant dense<0.000000e+00> : vector<1x96xf32>
    %229 = tpu.matmul %227, %109, %cst_85 {dimension_numbers = #tpu.dot_dimension_numbers<[1], [0], [0], [1], [0, 0, 1, 1], [], []>} : vector<1x32xf32>, vector<32x96xf32>, vector<1x96xf32> -> vector<1x96xf32>
    %230 = arith.addf %229, %110 : vector<1x96xf32>
    %231 = vector.extract_strided_slice %228 {offsets = [0, 0], sizes = [1, 32], strides = [1, 1]} : vector<1x96xf32> to vector<1x32xf32>
    %232 = vector.extract_strided_slice %230 {offsets = [0, 0], sizes = [1, 32], strides = [1, 1]} : vector<1x96xf32> to vector<1x32xf32>
    %233 = arith.addf %231, %232 : vector<1x32xf32>
    %234 = arith.negf %233 : vector<1x32xf32>
    %235 = math.exp %234 : vector<1x32xf32>
    %cst_86 = arith.constant 1.000000e+00 : f32
    %236 = vector.broadcast %cst_86 : f32 to vector<1x32xf32>
    %237 = arith.addf %236, %235 : vector<1x32xf32>
    %238 = arith.divf %236, %237 : vector<1x32xf32>
    %239 = vector.extract_strided_slice %228 {offsets = [0, 32], sizes = [1, 32], strides = [1, 1]} : vector<1x96xf32> to vector<1x32xf32>
    %240 = vector.extract_strided_slice %230 {offsets = [0, 32], sizes = [1, 32], strides = [1, 1]} : vector<1x96xf32> to vector<1x32xf32>
    %241 = arith.addf %239, %240 : vector<1x32xf32>
    %242 = arith.negf %241 : vector<1x32xf32>
    %243 = math.exp %242 : vector<1x32xf32>
    %cst_87 = arith.constant 1.000000e+00 : f32
    %244 = vector.broadcast %cst_87 : f32 to vector<1x32xf32>
    %245 = arith.addf %244, %243 : vector<1x32xf32>
    %246 = arith.divf %244, %245 : vector<1x32xf32>
    %247 = vector.extract_strided_slice %228 {offsets = [0, 64], sizes = [1, 32], strides = [1, 1]} : vector<1x96xf32> to vector<1x32xf32>
    %248 = vector.extract_strided_slice %230 {offsets = [0, 64], sizes = [1, 32], strides = [1, 1]} : vector<1x96xf32> to vector<1x32xf32>
    %249 = arith.mulf %238, %248 : vector<1x32xf32>
    %250 = arith.addf %247, %249 : vector<1x32xf32>
    %251 = math.tanh %250 : vector<1x32xf32>
    %cst_88 = arith.constant 1.000000e+00 : f32
    %252 = vector.broadcast %cst_88 : f32 to vector<1x32xf32>
    %253 = arith.subf %252, %246 : vector<1x32xf32>
    %254 = arith.mulf %253, %251 : vector<1x32xf32>
    %255 = arith.mulf %246, %227 : vector<1x32xf32>
    %256 = arith.addf %254, %255 : vector<1x32xf32>
    %257 = vector.extract_strided_slice %108 {offsets = [5, 0], sizes = [1, 96], strides = [1, 1]} : vector<16x96xf32> to vector<1x96xf32>
    %cst_89 = arith.constant dense<0.000000e+00> : vector<1x96xf32>
    %258 = tpu.matmul %256, %109, %cst_89 {dimension_numbers = #tpu.dot_dimension_numbers<[1], [0], [0], [1], [0, 0, 1, 1], [], []>} : vector<1x32xf32>, vector<32x96xf32>, vector<1x96xf32> -> vector<1x96xf32>
    %259 = arith.addf %258, %110 : vector<1x96xf32>
    %260 = vector.extract_strided_slice %257 {offsets = [0, 0], sizes = [1, 32], strides = [1, 1]} : vector<1x96xf32> to vector<1x32xf32>
    %261 = vector.extract_strided_slice %259 {offsets = [0, 0], sizes = [1, 32], strides = [1, 1]} : vector<1x96xf32> to vector<1x32xf32>
    %262 = arith.addf %260, %261 : vector<1x32xf32>
    %263 = arith.negf %262 : vector<1x32xf32>
    %264 = math.exp %263 : vector<1x32xf32>
    %cst_90 = arith.constant 1.000000e+00 : f32
    %265 = vector.broadcast %cst_90 : f32 to vector<1x32xf32>
    %266 = arith.addf %265, %264 : vector<1x32xf32>
    %267 = arith.divf %265, %266 : vector<1x32xf32>
    %268 = vector.extract_strided_slice %257 {offsets = [0, 32], sizes = [1, 32], strides = [1, 1]} : vector<1x96xf32> to vector<1x32xf32>
    %269 = vector.extract_strided_slice %259 {offsets = [0, 32], sizes = [1, 32], strides = [1, 1]} : vector<1x96xf32> to vector<1x32xf32>
    %270 = arith.addf %268, %269 : vector<1x32xf32>
    %271 = arith.negf %270 : vector<1x32xf32>
    %272 = math.exp %271 : vector<1x32xf32>
    %cst_91 = arith.constant 1.000000e+00 : f32
    %273 = vector.broadcast %cst_91 : f32 to vector<1x32xf32>
    %274 = arith.addf %273, %272 : vector<1x32xf32>
    %275 = arith.divf %273, %274 : vector<1x32xf32>
    %276 = vector.extract_strided_slice %257 {offsets = [0, 64], sizes = [1, 32], strides = [1, 1]} : vector<1x96xf32> to vector<1x32xf32>
    %277 = vector.extract_strided_slice %259 {offsets = [0, 64], sizes = [1, 32], strides = [1, 1]} : vector<1x96xf32> to vector<1x32xf32>
    %278 = arith.mulf %267, %277 : vector<1x32xf32>
    %279 = arith.addf %276, %278 : vector<1x32xf32>
    %280 = math.tanh %279 : vector<1x32xf32>
    %cst_92 = arith.constant 1.000000e+00 : f32
    %281 = vector.broadcast %cst_92 : f32 to vector<1x32xf32>
    %282 = arith.subf %281, %275 : vector<1x32xf32>
    %283 = arith.mulf %282, %280 : vector<1x32xf32>
    %284 = arith.mulf %275, %256 : vector<1x32xf32>
    %285 = arith.addf %283, %284 : vector<1x32xf32>
    %286 = vector.extract_strided_slice %108 {offsets = [6, 0], sizes = [1, 96], strides = [1, 1]} : vector<16x96xf32> to vector<1x96xf32>
    %cst_93 = arith.constant dense<0.000000e+00> : vector<1x96xf32>
    %287 = tpu.matmul %285, %109, %cst_93 {dimension_numbers = #tpu.dot_dimension_numbers<[1], [0], [0], [1], [0, 0, 1, 1], [], []>} : vector<1x32xf32>, vector<32x96xf32>, vector<1x96xf32> -> vector<1x96xf32>
    %288 = arith.addf %287, %110 : vector<1x96xf32>
    %289 = vector.extract_strided_slice %286 {offsets = [0, 0], sizes = [1, 32], strides = [1, 1]} : vector<1x96xf32> to vector<1x32xf32>
    %290 = vector.extract_strided_slice %288 {offsets = [0, 0], sizes = [1, 32], strides = [1, 1]} : vector<1x96xf32> to vector<1x32xf32>
    %291 = arith.addf %289, %290 : vector<1x32xf32>
    %292 = arith.negf %291 : vector<1x32xf32>
    %293 = math.exp %292 : vector<1x32xf32>
    %cst_94 = arith.constant 1.000000e+00 : f32
    %294 = vector.broadcast %cst_94 : f32 to vector<1x32xf32>
    %295 = arith.addf %294, %293 : vector<1x32xf32>
    %296 = arith.divf %294, %295 : vector<1x32xf32>
    %297 = vector.extract_strided_slice %286 {offsets = [0, 32], sizes = [1, 32], strides = [1, 1]} : vector<1x96xf32> to vector<1x32xf32>
    %298 = vector.extract_strided_slice %288 {offsets = [0, 32], sizes = [1, 32], strides = [1, 1]} : vector<1x96xf32> to vector<1x32xf32>
    %299 = arith.addf %297, %298 : vector<1x32xf32>
    %300 = arith.negf %299 : vector<1x32xf32>
    %301 = math.exp %300 : vector<1x32xf32>
    %cst_95 = arith.constant 1.000000e+00 : f32
    %302 = vector.broadcast %cst_95 : f32 to vector<1x32xf32>
    %303 = arith.addf %302, %301 : vector<1x32xf32>
    %304 = arith.divf %302, %303 : vector<1x32xf32>
    %305 = vector.extract_strided_slice %286 {offsets = [0, 64], sizes = [1, 32], strides = [1, 1]} : vector<1x96xf32> to vector<1x32xf32>
    %306 = vector.extract_strided_slice %288 {offsets = [0, 64], sizes = [1, 32], strides = [1, 1]} : vector<1x96xf32> to vector<1x32xf32>
    %307 = arith.mulf %296, %306 : vector<1x32xf32>
    %308 = arith.addf %305, %307 : vector<1x32xf32>
    %309 = math.tanh %308 : vector<1x32xf32>
    %cst_96 = arith.constant 1.000000e+00 : f32
    %310 = vector.broadcast %cst_96 : f32 to vector<1x32xf32>
    %311 = arith.subf %310, %304 : vector<1x32xf32>
    %312 = arith.mulf %311, %309 : vector<1x32xf32>
    %313 = arith.mulf %304, %285 : vector<1x32xf32>
    %314 = arith.addf %312, %313 : vector<1x32xf32>
    %315 = vector.extract_strided_slice %108 {offsets = [7, 0], sizes = [1, 96], strides = [1, 1]} : vector<16x96xf32> to vector<1x96xf32>
    %cst_97 = arith.constant dense<0.000000e+00> : vector<1x96xf32>
    %316 = tpu.matmul %314, %109, %cst_97 {dimension_numbers = #tpu.dot_dimension_numbers<[1], [0], [0], [1], [0, 0, 1, 1], [], []>} : vector<1x32xf32>, vector<32x96xf32>, vector<1x96xf32> -> vector<1x96xf32>
    %317 = arith.addf %316, %110 : vector<1x96xf32>
    %318 = vector.extract_strided_slice %315 {offsets = [0, 0], sizes = [1, 32], strides = [1, 1]} : vector<1x96xf32> to vector<1x32xf32>
    %319 = vector.extract_strided_slice %317 {offsets = [0, 0], sizes = [1, 32], strides = [1, 1]} : vector<1x96xf32> to vector<1x32xf32>
    %320 = arith.addf %318, %319 : vector<1x32xf32>
    %321 = arith.negf %320 : vector<1x32xf32>
    %322 = math.exp %321 : vector<1x32xf32>
    %cst_98 = arith.constant 1.000000e+00 : f32
    %323 = vector.broadcast %cst_98 : f32 to vector<1x32xf32>
    %324 = arith.addf %323, %322 : vector<1x32xf32>
    %325 = arith.divf %323, %324 : vector<1x32xf32>
    %326 = vector.extract_strided_slice %315 {offsets = [0, 32], sizes = [1, 32], strides = [1, 1]} : vector<1x96xf32> to vector<1x32xf32>
    %327 = vector.extract_strided_slice %317 {offsets = [0, 32], sizes = [1, 32], strides = [1, 1]} : vector<1x96xf32> to vector<1x32xf32>
    %328 = arith.addf %326, %327 : vector<1x32xf32>
    %329 = arith.negf %328 : vector<1x32xf32>
    %330 = math.exp %329 : vector<1x32xf32>
    %cst_99 = arith.constant 1.000000e+00 : f32
    %331 = vector.broadcast %cst_99 : f32 to vector<1x32xf32>
    %332 = arith.addf %331, %330 : vector<1x32xf32>
    %333 = arith.divf %331, %332 : vector<1x32xf32>
    %334 = vector.extract_strided_slice %315 {offsets = [0, 64], sizes = [1, 32], strides = [1, 1]} : vector<1x96xf32> to vector<1x32xf32>
    %335 = vector.extract_strided_slice %317 {offsets = [0, 64], sizes = [1, 32], strides = [1, 1]} : vector<1x96xf32> to vector<1x32xf32>
    %336 = arith.mulf %325, %335 : vector<1x32xf32>
    %337 = arith.addf %334, %336 : vector<1x32xf32>
    %338 = math.tanh %337 : vector<1x32xf32>
    %cst_100 = arith.constant 1.000000e+00 : f32
    %339 = vector.broadcast %cst_100 : f32 to vector<1x32xf32>
    %340 = arith.subf %339, %333 : vector<1x32xf32>
    %341 = arith.mulf %340, %338 : vector<1x32xf32>
    %342 = arith.mulf %333, %314 : vector<1x32xf32>
    %343 = arith.addf %341, %342 : vector<1x32xf32>
    %344 = vector.extract_strided_slice %108 {offsets = [8, 0], sizes = [1, 96], strides = [1, 1]} : vector<16x96xf32> to vector<1x96xf32>
    %cst_101 = arith.constant dense<0.000000e+00> : vector<1x96xf32>
    %345 = tpu.matmul %343, %109, %cst_101 {dimension_numbers = #tpu.dot_dimension_numbers<[1], [0], [0], [1], [0, 0, 1, 1], [], []>} : vector<1x32xf32>, vector<32x96xf32>, vector<1x96xf32> -> vector<1x96xf32>
    %346 = arith.addf %345, %110 : vector<1x96xf32>
    %347 = vector.extract_strided_slice %344 {offsets = [0, 0], sizes = [1, 32], strides = [1, 1]} : vector<1x96xf32> to vector<1x32xf32>
    %348 = vector.extract_strided_slice %346 {offsets = [0, 0], sizes = [1, 32], strides = [1, 1]} : vector<1x96xf32> to vector<1x32xf32>
    %349 = arith.addf %347, %348 : vector<1x32xf32>
    %350 = arith.negf %349 : vector<1x32xf32>
    %351 = math.exp %350 : vector<1x32xf32>
    %cst_102 = arith.constant 1.000000e+00 : f32
    %352 = vector.broadcast %cst_102 : f32 to vector<1x32xf32>
    %353 = arith.addf %352, %351 : vector<1x32xf32>
    %354 = arith.divf %352, %353 : vector<1x32xf32>
    %355 = vector.extract_strided_slice %344 {offsets = [0, 32], sizes = [1, 32], strides = [1, 1]} : vector<1x96xf32> to vector<1x32xf32>
    %356 = vector.extract_strided_slice %346 {offsets = [0, 32], sizes = [1, 32], strides = [1, 1]} : vector<1x96xf32> to vector<1x32xf32>
    %357 = arith.addf %355, %356 : vector<1x32xf32>
    %358 = arith.negf %357 : vector<1x32xf32>
    %359 = math.exp %358 : vector<1x32xf32>
    %cst_103 = arith.constant 1.000000e+00 : f32
    %360 = vector.broadcast %cst_103 : f32 to vector<1x32xf32>
    %361 = arith.addf %360, %359 : vector<1x32xf32>
    %362 = arith.divf %360, %361 : vector<1x32xf32>
    %363 = vector.extract_strided_slice %344 {offsets = [0, 64], sizes = [1, 32], strides = [1, 1]} : vector<1x96xf32> to vector<1x32xf32>
    %364 = vector.extract_strided_slice %346 {offsets = [0, 64], sizes = [1, 32], strides = [1, 1]} : vector<1x96xf32> to vector<1x32xf32>
    %365 = arith.mulf %354, %364 : vector<1x32xf32>
    %366 = arith.addf %363, %365 : vector<1x32xf32>
    %367 = math.tanh %366 : vector<1x32xf32>
    %cst_104 = arith.constant 1.000000e+00 : f32
    %368 = vector.broadcast %cst_104 : f32 to vector<1x32xf32>
    %369 = arith.subf %368, %362 : vector<1x32xf32>
    %370 = arith.mulf %369, %367 : vector<1x32xf32>
    %371 = arith.mulf %362, %343 : vector<1x32xf32>
    %372 = arith.addf %370, %371 : vector<1x32xf32>
    %373 = vector.extract_strided_slice %108 {offsets = [9, 0], sizes = [1, 96], strides = [1, 1]} : vector<16x96xf32> to vector<1x96xf32>
    %cst_105 = arith.constant dense<0.000000e+00> : vector<1x96xf32>
    %374 = tpu.matmul %372, %109, %cst_105 {dimension_numbers = #tpu.dot_dimension_numbers<[1], [0], [0], [1], [0, 0, 1, 1], [], []>} : vector<1x32xf32>, vector<32x96xf32>, vector<1x96xf32> -> vector<1x96xf32>
    %375 = arith.addf %374, %110 : vector<1x96xf32>
    %376 = vector.extract_strided_slice %373 {offsets = [0, 0], sizes = [1, 32], strides = [1, 1]} : vector<1x96xf32> to vector<1x32xf32>
    %377 = vector.extract_strided_slice %375 {offsets = [0, 0], sizes = [1, 32], strides = [1, 1]} : vector<1x96xf32> to vector<1x32xf32>
    %378 = arith.addf %376, %377 : vector<1x32xf32>
    %379 = arith.negf %378 : vector<1x32xf32>
    %380 = math.exp %379 : vector<1x32xf32>
    %cst_106 = arith.constant 1.000000e+00 : f32
    %381 = vector.broadcast %cst_106 : f32 to vector<1x32xf32>
    %382 = arith.addf %381, %380 : vector<1x32xf32>
    %383 = arith.divf %381, %382 : vector<1x32xf32>
    %384 = vector.extract_strided_slice %373 {offsets = [0, 32], sizes = [1, 32], strides = [1, 1]} : vector<1x96xf32> to vector<1x32xf32>
    %385 = vector.extract_strided_slice %375 {offsets = [0, 32], sizes = [1, 32], strides = [1, 1]} : vector<1x96xf32> to vector<1x32xf32>
    %386 = arith.addf %384, %385 : vector<1x32xf32>
    %387 = arith.negf %386 : vector<1x32xf32>
    %388 = math.exp %387 : vector<1x32xf32>
    %cst_107 = arith.constant 1.000000e+00 : f32
    %389 = vector.broadcast %cst_107 : f32 to vector<1x32xf32>
    %390 = arith.addf %389, %388 : vector<1x32xf32>
    %391 = arith.divf %389, %390 : vector<1x32xf32>
    %392 = vector.extract_strided_slice %373 {offsets = [0, 64], sizes = [1, 32], strides = [1, 1]} : vector<1x96xf32> to vector<1x32xf32>
    %393 = vector.extract_strided_slice %375 {offsets = [0, 64], sizes = [1, 32], strides = [1, 1]} : vector<1x96xf32> to vector<1x32xf32>
    %394 = arith.mulf %383, %393 : vector<1x32xf32>
    %395 = arith.addf %392, %394 : vector<1x32xf32>
    %396 = math.tanh %395 : vector<1x32xf32>
    %cst_108 = arith.constant 1.000000e+00 : f32
    %397 = vector.broadcast %cst_108 : f32 to vector<1x32xf32>
    %398 = arith.subf %397, %391 : vector<1x32xf32>
    %399 = arith.mulf %398, %396 : vector<1x32xf32>
    %400 = arith.mulf %391, %372 : vector<1x32xf32>
    %401 = arith.addf %399, %400 : vector<1x32xf32>
    %402 = vector.extract_strided_slice %108 {offsets = [10, 0], sizes = [1, 96], strides = [1, 1]} : vector<16x96xf32> to vector<1x96xf32>
    %cst_109 = arith.constant dense<0.000000e+00> : vector<1x96xf32>
    %403 = tpu.matmul %401, %109, %cst_109 {dimension_numbers = #tpu.dot_dimension_numbers<[1], [0], [0], [1], [0, 0, 1, 1], [], []>} : vector<1x32xf32>, vector<32x96xf32>, vector<1x96xf32> -> vector<1x96xf32>
    %404 = arith.addf %403, %110 : vector<1x96xf32>
    %405 = vector.extract_strided_slice %402 {offsets = [0, 0], sizes = [1, 32], strides = [1, 1]} : vector<1x96xf32> to vector<1x32xf32>
    %406 = vector.extract_strided_slice %404 {offsets = [0, 0], sizes = [1, 32], strides = [1, 1]} : vector<1x96xf32> to vector<1x32xf32>
    %407 = arith.addf %405, %406 : vector<1x32xf32>
    %408 = arith.negf %407 : vector<1x32xf32>
    %409 = math.exp %408 : vector<1x32xf32>
    %cst_110 = arith.constant 1.000000e+00 : f32
    %410 = vector.broadcast %cst_110 : f32 to vector<1x32xf32>
    %411 = arith.addf %410, %409 : vector<1x32xf32>
    %412 = arith.divf %410, %411 : vector<1x32xf32>
    %413 = vector.extract_strided_slice %402 {offsets = [0, 32], sizes = [1, 32], strides = [1, 1]} : vector<1x96xf32> to vector<1x32xf32>
    %414 = vector.extract_strided_slice %404 {offsets = [0, 32], sizes = [1, 32], strides = [1, 1]} : vector<1x96xf32> to vector<1x32xf32>
    %415 = arith.addf %413, %414 : vector<1x32xf32>
    %416 = arith.negf %415 : vector<1x32xf32>
    %417 = math.exp %416 : vector<1x32xf32>
    %cst_111 = arith.constant 1.000000e+00 : f32
    %418 = vector.broadcast %cst_111 : f32 to vector<1x32xf32>
    %419 = arith.addf %418, %417 : vector<1x32xf32>
    %420 = arith.divf %418, %419 : vector<1x32xf32>
    %421 = vector.extract_strided_slice %402 {offsets = [0, 64], sizes = [1, 32], strides = [1, 1]} : vector<1x96xf32> to vector<1x32xf32>
    %422 = vector.extract_strided_slice %404 {offsets = [0, 64], sizes = [1, 32], strides = [1, 1]} : vector<1x96xf32> to vector<1x32xf32>
    %423 = arith.mulf %412, %422 : vector<1x32xf32>
    %424 = arith.addf %421, %423 : vector<1x32xf32>
    %425 = math.tanh %424 : vector<1x32xf32>
    %cst_112 = arith.constant 1.000000e+00 : f32
    %426 = vector.broadcast %cst_112 : f32 to vector<1x32xf32>
    %427 = arith.subf %426, %420 : vector<1x32xf32>
    %428 = arith.mulf %427, %425 : vector<1x32xf32>
    %429 = arith.mulf %420, %401 : vector<1x32xf32>
    %430 = arith.addf %428, %429 : vector<1x32xf32>
    %431 = vector.extract_strided_slice %108 {offsets = [11, 0], sizes = [1, 96], strides = [1, 1]} : vector<16x96xf32> to vector<1x96xf32>
    %cst_113 = arith.constant dense<0.000000e+00> : vector<1x96xf32>
    %432 = tpu.matmul %430, %109, %cst_113 {dimension_numbers = #tpu.dot_dimension_numbers<[1], [0], [0], [1], [0, 0, 1, 1], [], []>} : vector<1x32xf32>, vector<32x96xf32>, vector<1x96xf32> -> vector<1x96xf32>
    %433 = arith.addf %432, %110 : vector<1x96xf32>
    %434 = vector.extract_strided_slice %431 {offsets = [0, 0], sizes = [1, 32], strides = [1, 1]} : vector<1x96xf32> to vector<1x32xf32>
    %435 = vector.extract_strided_slice %433 {offsets = [0, 0], sizes = [1, 32], strides = [1, 1]} : vector<1x96xf32> to vector<1x32xf32>
    %436 = arith.addf %434, %435 : vector<1x32xf32>
    %437 = arith.negf %436 : vector<1x32xf32>
    %438 = math.exp %437 : vector<1x32xf32>
    %cst_114 = arith.constant 1.000000e+00 : f32
    %439 = vector.broadcast %cst_114 : f32 to vector<1x32xf32>
    %440 = arith.addf %439, %438 : vector<1x32xf32>
    %441 = arith.divf %439, %440 : vector<1x32xf32>
    %442 = vector.extract_strided_slice %431 {offsets = [0, 32], sizes = [1, 32], strides = [1, 1]} : vector<1x96xf32> to vector<1x32xf32>
    %443 = vector.extract_strided_slice %433 {offsets = [0, 32], sizes = [1, 32], strides = [1, 1]} : vector<1x96xf32> to vector<1x32xf32>
    %444 = arith.addf %442, %443 : vector<1x32xf32>
    %445 = arith.negf %444 : vector<1x32xf32>
    %446 = math.exp %445 : vector<1x32xf32>
    %cst_115 = arith.constant 1.000000e+00 : f32
    %447 = vector.broadcast %cst_115 : f32 to vector<1x32xf32>
    %448 = arith.addf %447, %446 : vector<1x32xf32>
    %449 = arith.divf %447, %448 : vector<1x32xf32>
    %450 = vector.extract_strided_slice %431 {offsets = [0, 64], sizes = [1, 32], strides = [1, 1]} : vector<1x96xf32> to vector<1x32xf32>
    %451 = vector.extract_strided_slice %433 {offsets = [0, 64], sizes = [1, 32], strides = [1, 1]} : vector<1x96xf32> to vector<1x32xf32>
    %452 = arith.mulf %441, %451 : vector<1x32xf32>
    %453 = arith.addf %450, %452 : vector<1x32xf32>
    %454 = math.tanh %453 : vector<1x32xf32>
    %cst_116 = arith.constant 1.000000e+00 : f32
    %455 = vector.broadcast %cst_116 : f32 to vector<1x32xf32>
    %456 = arith.subf %455, %449 : vector<1x32xf32>
    %457 = arith.mulf %456, %454 : vector<1x32xf32>
    %458 = arith.mulf %449, %430 : vector<1x32xf32>
    %459 = arith.addf %457, %458 : vector<1x32xf32>
    %460 = vector.extract_strided_slice %108 {offsets = [12, 0], sizes = [1, 96], strides = [1, 1]} : vector<16x96xf32> to vector<1x96xf32>
    %cst_117 = arith.constant dense<0.000000e+00> : vector<1x96xf32>
    %461 = tpu.matmul %459, %109, %cst_117 {dimension_numbers = #tpu.dot_dimension_numbers<[1], [0], [0], [1], [0, 0, 1, 1], [], []>} : vector<1x32xf32>, vector<32x96xf32>, vector<1x96xf32> -> vector<1x96xf32>
    %462 = arith.addf %461, %110 : vector<1x96xf32>
    %463 = vector.extract_strided_slice %460 {offsets = [0, 0], sizes = [1, 32], strides = [1, 1]} : vector<1x96xf32> to vector<1x32xf32>
    %464 = vector.extract_strided_slice %462 {offsets = [0, 0], sizes = [1, 32], strides = [1, 1]} : vector<1x96xf32> to vector<1x32xf32>
    %465 = arith.addf %463, %464 : vector<1x32xf32>
    %466 = arith.negf %465 : vector<1x32xf32>
    %467 = math.exp %466 : vector<1x32xf32>
    %cst_118 = arith.constant 1.000000e+00 : f32
    %468 = vector.broadcast %cst_118 : f32 to vector<1x32xf32>
    %469 = arith.addf %468, %467 : vector<1x32xf32>
    %470 = arith.divf %468, %469 : vector<1x32xf32>
    %471 = vector.extract_strided_slice %460 {offsets = [0, 32], sizes = [1, 32], strides = [1, 1]} : vector<1x96xf32> to vector<1x32xf32>
    %472 = vector.extract_strided_slice %462 {offsets = [0, 32], sizes = [1, 32], strides = [1, 1]} : vector<1x96xf32> to vector<1x32xf32>
    %473 = arith.addf %471, %472 : vector<1x32xf32>
    %474 = arith.negf %473 : vector<1x32xf32>
    %475 = math.exp %474 : vector<1x32xf32>
    %cst_119 = arith.constant 1.000000e+00 : f32
    %476 = vector.broadcast %cst_119 : f32 to vector<1x32xf32>
    %477 = arith.addf %476, %475 : vector<1x32xf32>
    %478 = arith.divf %476, %477 : vector<1x32xf32>
    %479 = vector.extract_strided_slice %460 {offsets = [0, 64], sizes = [1, 32], strides = [1, 1]} : vector<1x96xf32> to vector<1x32xf32>
    %480 = vector.extract_strided_slice %462 {offsets = [0, 64], sizes = [1, 32], strides = [1, 1]} : vector<1x96xf32> to vector<1x32xf32>
    %481 = arith.mulf %470, %480 : vector<1x32xf32>
    %482 = arith.addf %479, %481 : vector<1x32xf32>
    %483 = math.tanh %482 : vector<1x32xf32>
    %cst_120 = arith.constant 1.000000e+00 : f32
    %484 = vector.broadcast %cst_120 : f32 to vector<1x32xf32>
    %485 = arith.subf %484, %478 : vector<1x32xf32>
    %486 = arith.mulf %485, %483 : vector<1x32xf32>
    %487 = arith.mulf %478, %459 : vector<1x32xf32>
    %488 = arith.addf %486, %487 : vector<1x32xf32>
    %489 = vector.extract_strided_slice %108 {offsets = [13, 0], sizes = [1, 96], strides = [1, 1]} : vector<16x96xf32> to vector<1x96xf32>
    %cst_121 = arith.constant dense<0.000000e+00> : vector<1x96xf32>
    %490 = tpu.matmul %488, %109, %cst_121 {dimension_numbers = #tpu.dot_dimension_numbers<[1], [0], [0], [1], [0, 0, 1, 1], [], []>} : vector<1x32xf32>, vector<32x96xf32>, vector<1x96xf32> -> vector<1x96xf32>
    %491 = arith.addf %490, %110 : vector<1x96xf32>
    %492 = vector.extract_strided_slice %489 {offsets = [0, 0], sizes = [1, 32], strides = [1, 1]} : vector<1x96xf32> to vector<1x32xf32>
    %493 = vector.extract_strided_slice %491 {offsets = [0, 0], sizes = [1, 32], strides = [1, 1]} : vector<1x96xf32> to vector<1x32xf32>
    %494 = arith.addf %492, %493 : vector<1x32xf32>
    %495 = arith.negf %494 : vector<1x32xf32>
    %496 = math.exp %495 : vector<1x32xf32>
    %cst_122 = arith.constant 1.000000e+00 : f32
    %497 = vector.broadcast %cst_122 : f32 to vector<1x32xf32>
    %498 = arith.addf %497, %496 : vector<1x32xf32>
    %499 = arith.divf %497, %498 : vector<1x32xf32>
    %500 = vector.extract_strided_slice %489 {offsets = [0, 32], sizes = [1, 32], strides = [1, 1]} : vector<1x96xf32> to vector<1x32xf32>
    %501 = vector.extract_strided_slice %491 {offsets = [0, 32], sizes = [1, 32], strides = [1, 1]} : vector<1x96xf32> to vector<1x32xf32>
    %502 = arith.addf %500, %501 : vector<1x32xf32>
    %503 = arith.negf %502 : vector<1x32xf32>
    %504 = math.exp %503 : vector<1x32xf32>
    %cst_123 = arith.constant 1.000000e+00 : f32
    %505 = vector.broadcast %cst_123 : f32 to vector<1x32xf32>
    %506 = arith.addf %505, %504 : vector<1x32xf32>
    %507 = arith.divf %505, %506 : vector<1x32xf32>
    %508 = vector.extract_strided_slice %489 {offsets = [0, 64], sizes = [1, 32], strides = [1, 1]} : vector<1x96xf32> to vector<1x32xf32>
    %509 = vector.extract_strided_slice %491 {offsets = [0, 64], sizes = [1, 32], strides = [1, 1]} : vector<1x96xf32> to vector<1x32xf32>
    %510 = arith.mulf %499, %509 : vector<1x32xf32>
    %511 = arith.addf %508, %510 : vector<1x32xf32>
    %512 = math.tanh %511 : vector<1x32xf32>
    %cst_124 = arith.constant 1.000000e+00 : f32
    %513 = vector.broadcast %cst_124 : f32 to vector<1x32xf32>
    %514 = arith.subf %513, %507 : vector<1x32xf32>
    %515 = arith.mulf %514, %512 : vector<1x32xf32>
    %516 = arith.mulf %507, %488 : vector<1x32xf32>
    %517 = arith.addf %515, %516 : vector<1x32xf32>
    %518 = vector.extract_strided_slice %108 {offsets = [14, 0], sizes = [1, 96], strides = [1, 1]} : vector<16x96xf32> to vector<1x96xf32>
    %cst_125 = arith.constant dense<0.000000e+00> : vector<1x96xf32>
    %519 = tpu.matmul %517, %109, %cst_125 {dimension_numbers = #tpu.dot_dimension_numbers<[1], [0], [0], [1], [0, 0, 1, 1], [], []>} : vector<1x32xf32>, vector<32x96xf32>, vector<1x96xf32> -> vector<1x96xf32>
    %520 = arith.addf %519, %110 : vector<1x96xf32>
    %521 = vector.extract_strided_slice %518 {offsets = [0, 0], sizes = [1, 32], strides = [1, 1]} : vector<1x96xf32> to vector<1x32xf32>
    %522 = vector.extract_strided_slice %520 {offsets = [0, 0], sizes = [1, 32], strides = [1, 1]} : vector<1x96xf32> to vector<1x32xf32>
    %523 = arith.addf %521, %522 : vector<1x32xf32>
    %524 = arith.negf %523 : vector<1x32xf32>
    %525 = math.exp %524 : vector<1x32xf32>
    %cst_126 = arith.constant 1.000000e+00 : f32
    %526 = vector.broadcast %cst_126 : f32 to vector<1x32xf32>
    %527 = arith.addf %526, %525 : vector<1x32xf32>
    %528 = arith.divf %526, %527 : vector<1x32xf32>
    %529 = vector.extract_strided_slice %518 {offsets = [0, 32], sizes = [1, 32], strides = [1, 1]} : vector<1x96xf32> to vector<1x32xf32>
    %530 = vector.extract_strided_slice %520 {offsets = [0, 32], sizes = [1, 32], strides = [1, 1]} : vector<1x96xf32> to vector<1x32xf32>
    %531 = arith.addf %529, %530 : vector<1x32xf32>
    %532 = arith.negf %531 : vector<1x32xf32>
    %533 = math.exp %532 : vector<1x32xf32>
    %cst_127 = arith.constant 1.000000e+00 : f32
    %534 = vector.broadcast %cst_127 : f32 to vector<1x32xf32>
    %535 = arith.addf %534, %533 : vector<1x32xf32>
    %536 = arith.divf %534, %535 : vector<1x32xf32>
    %537 = vector.extract_strided_slice %518 {offsets = [0, 64], sizes = [1, 32], strides = [1, 1]} : vector<1x96xf32> to vector<1x32xf32>
    %538 = vector.extract_strided_slice %520 {offsets = [0, 64], sizes = [1, 32], strides = [1, 1]} : vector<1x96xf32> to vector<1x32xf32>
    %539 = arith.mulf %528, %538 : vector<1x32xf32>
    %540 = arith.addf %537, %539 : vector<1x32xf32>
    %541 = math.tanh %540 : vector<1x32xf32>
    %cst_128 = arith.constant 1.000000e+00 : f32
    %542 = vector.broadcast %cst_128 : f32 to vector<1x32xf32>
    %543 = arith.subf %542, %536 : vector<1x32xf32>
    %544 = arith.mulf %543, %541 : vector<1x32xf32>
    %545 = arith.mulf %536, %517 : vector<1x32xf32>
    %546 = arith.addf %544, %545 : vector<1x32xf32>
    %547 = vector.extract_strided_slice %108 {offsets = [15, 0], sizes = [1, 96], strides = [1, 1]} : vector<16x96xf32> to vector<1x96xf32>
    %cst_129 = arith.constant dense<0.000000e+00> : vector<1x96xf32>
    %548 = tpu.matmul %546, %109, %cst_129 {dimension_numbers = #tpu.dot_dimension_numbers<[1], [0], [0], [1], [0, 0, 1, 1], [], []>} : vector<1x32xf32>, vector<32x96xf32>, vector<1x96xf32> -> vector<1x96xf32>
    %549 = arith.addf %548, %110 : vector<1x96xf32>
    %550 = vector.extract_strided_slice %547 {offsets = [0, 0], sizes = [1, 32], strides = [1, 1]} : vector<1x96xf32> to vector<1x32xf32>
    %551 = vector.extract_strided_slice %549 {offsets = [0, 0], sizes = [1, 32], strides = [1, 1]} : vector<1x96xf32> to vector<1x32xf32>
    %552 = arith.addf %550, %551 : vector<1x32xf32>
    %553 = arith.negf %552 : vector<1x32xf32>
    %554 = math.exp %553 : vector<1x32xf32>
    %cst_130 = arith.constant 1.000000e+00 : f32
    %555 = vector.broadcast %cst_130 : f32 to vector<1x32xf32>
    %556 = arith.addf %555, %554 : vector<1x32xf32>
    %557 = arith.divf %555, %556 : vector<1x32xf32>
    %558 = vector.extract_strided_slice %547 {offsets = [0, 32], sizes = [1, 32], strides = [1, 1]} : vector<1x96xf32> to vector<1x32xf32>
    %559 = vector.extract_strided_slice %549 {offsets = [0, 32], sizes = [1, 32], strides = [1, 1]} : vector<1x96xf32> to vector<1x32xf32>
    %560 = arith.addf %558, %559 : vector<1x32xf32>
    %561 = arith.negf %560 : vector<1x32xf32>
    %562 = math.exp %561 : vector<1x32xf32>
    %cst_131 = arith.constant 1.000000e+00 : f32
    %563 = vector.broadcast %cst_131 : f32 to vector<1x32xf32>
    %564 = arith.addf %563, %562 : vector<1x32xf32>
    %565 = arith.divf %563, %564 : vector<1x32xf32>
    %566 = vector.extract_strided_slice %547 {offsets = [0, 64], sizes = [1, 32], strides = [1, 1]} : vector<1x96xf32> to vector<1x32xf32>
    %567 = vector.extract_strided_slice %549 {offsets = [0, 64], sizes = [1, 32], strides = [1, 1]} : vector<1x96xf32> to vector<1x32xf32>
    %568 = arith.mulf %557, %567 : vector<1x32xf32>
    %569 = arith.addf %566, %568 : vector<1x32xf32>
    %570 = math.tanh %569 : vector<1x32xf32>
    %cst_132 = arith.constant 1.000000e+00 : f32
    %571 = vector.broadcast %cst_132 : f32 to vector<1x32xf32>
    %572 = arith.subf %571, %565 : vector<1x32xf32>
    %573 = arith.mulf %572, %570 : vector<1x32xf32>
    %574 = arith.mulf %565, %546 : vector<1x32xf32>
    %575 = arith.addf %573, %574 : vector<1x32xf32>
    %c0_133 = arith.constant 0 : index
    %c0_134 = arith.constant 0 : index
    %576 = vector.load %arg18[%c0_133, %c0_134] : memref<32x16xf32, #tpu.memory_space<vmem>>, vector<32x16xf32>
    %cst_135 = arith.constant dense<0.000000e+00> : vector<1x16xf32>
    %577 = tpu.matmul %98, %576, %cst_135 {dimension_numbers = #tpu.dot_dimension_numbers<[1], [0], [0], [1], [0, 0, 1, 1], [], []>} : vector<1x32xf32>, vector<32x16xf32>, vector<1x16xf32> -> vector<1x16xf32>
    %c0_136 = arith.constant 0 : index
    %c0_137 = arith.constant 0 : index
    %578 = vector.load %arg19[%c0_136, %c0_137] : memref<32x16xf32, #tpu.memory_space<vmem>>, vector<32x16xf32>
    %cst_138 = arith.constant dense<0.000000e+00> : vector<1x16xf32>
    %579 = tpu.matmul %575, %578, %cst_138 {dimension_numbers = #tpu.dot_dimension_numbers<[1], [0], [0], [1], [0, 0, 1, 1], [], []>} : vector<1x32xf32>, vector<32x16xf32>, vector<1x16xf32> -> vector<1x16xf32>
    %580 = arith.addf %577, %579 : vector<1x16xf32>
    %c0_139 = arith.constant 0 : index
    %c0_140 = arith.constant 0 : index
    %581 = vector.load %arg20[%c0_139, %c0_140] : memref<1x16xf32, #tpu.memory_space<vmem>>, vector<1x16xf32>
    %582 = arith.addf %580, %581 : vector<1x16xf32>
    %cst_141 = arith.constant 0.000000e+00 : f32
    %583 = vector.broadcast %cst_141 : f32 to vector<1x16xf32>
    %584 = arith.maximumf %582, %583 : vector<1x16xf32>
    %c0_142 = arith.constant 0 : index
    %c0_143 = arith.constant 0 : index
    %585 = vector.load %arg21[%c0_142, %c0_143] : memref<16x2xf32, #tpu.memory_space<vmem>>, vector<16x2xf32>
    %cst_144 = arith.constant dense<0.000000e+00> : vector<1x2xf32>
    %586 = tpu.matmul %584, %585, %cst_144 {dimension_numbers = #tpu.dot_dimension_numbers<[1], [0], [0], [1], [0, 0, 1, 1], [], []>} : vector<1x16xf32>, vector<16x2xf32>, vector<1x2xf32> -> vector<1x2xf32>
    %c0_145 = arith.constant 0 : index
    %c0_146 = arith.constant 0 : index
    %587 = vector.load %arg22[%c0_145, %c0_146] : memref<1x2xf32, #tpu.memory_space<vmem>>, vector<1x2xf32>
    %588 = arith.addf %586, %587 : vector<1x2xf32>
    %589 = vector.shape_cast %588 : vector<1x2xf32> to vector<1x1x2xf32>
    %c0_147 = arith.constant 0 : index
    %c0_148 = arith.constant 0 : index
    %c0_149 = arith.constant 0 : index
    %590 = vector.load %arg23[%c0_147, %c0_148, %c0_149] : memref<1x1x2xf32, #tpu.memory_space<vmem>>, vector<1x1x2xf32>
    tpu.vector_store %arg23[%c0_147, %c0_148, %c0_149], %589 {strides = array<i32>} : memref<1x1x2xf32, #tpu.memory_space<vmem>>, vector<1x1x2xf32>,
    return
  }
  func.func @transform_0(%arg0: i32) -> (i32, i32, i32) {
    %c0_i32 = arith.constant 0 : i32
    %c0_i32_0 = arith.constant 0 : i32
    %c0_i32_1 = arith.constant 0 : i32
    return %arg0, %c0_i32, %c0_i32_0 : i32, i32, i32
  }
  func.func @transform_1(%arg0: i32) -> (i32, i32, i32) {
    %c0_i32 = arith.constant 0 : i32
    %c0_i32_0 = arith.constant 0 : i32
    %c0_i32_1 = arith.constant 0 : i32
    return %arg0, %c0_i32, %c0_i32_0 : i32, i32, i32
  }
  func.func @transform_2(%arg0: i32) -> (i32, i32, i32) {
    %c0_i32 = arith.constant 0 : i32
    %c0_i32_0 = arith.constant 0 : i32
    %c0_i32_1 = arith.constant 0 : i32
    return %arg0, %c0_i32, %c0_i32_0 : i32, i32, i32
  }
  func.func @transform_3(%arg0: i32) -> (i32, i32) {
    %c0_i32 = arith.constant 0 : i32
    %c0_i32_0 = arith.constant 0 : i32
    %c0_i32_1 = arith.constant 0 : i32
    return %c0_i32, %c0_i32_0 : i32, i32
  }
  func.func @transform_4(%arg0: i32) -> (i32, i32) {
    %c0_i32 = arith.constant 0 : i32
    %c0_i32_0 = arith.constant 0 : i32
    %c0_i32_1 = arith.constant 0 : i32
    return %c0_i32, %c0_i32_0 : i32, i32
  }
  func.func @transform_5(%arg0: i32) -> (i32, i32) {
    %c0_i32 = arith.constant 0 : i32
    %c0_i32_0 = arith.constant 0 : i32
    %c0_i32_1 = arith.constant 0 : i32
    return %c0_i32, %c0_i32_0 : i32, i32
  }
  func.func @transform_6(%arg0: i32) -> (i32, i32) {
    %c0_i32 = arith.constant 0 : i32
    %c0_i32_0 = arith.constant 0 : i32
    %c0_i32_1 = arith.constant 0 : i32
    return %c0_i32, %c0_i32_0 : i32, i32
  }
  func.func @transform_7(%arg0: i32) -> (i32, i32) {
    %c0_i32 = arith.constant 0 : i32
    %c0_i32_0 = arith.constant 0 : i32
    %c0_i32_1 = arith.constant 0 : i32
    return %c0_i32, %c0_i32_0 : i32, i32
  }
  func.func @transform_8(%arg0: i32) -> (i32, i32) {
    %c0_i32 = arith.constant 0 : i32
    %c0_i32_0 = arith.constant 0 : i32
    %c0_i32_1 = arith.constant 0 : i32
    return %c0_i32, %c0_i32_0 : i32, i32
  }
  func.func @transform_9(%arg0: i32) -> (i32, i32) {
    %c0_i32 = arith.constant 0 : i32
    %c0_i32_0 = arith.constant 0 : i32
    %c0_i32_1 = arith.constant 0 : i32
    return %c0_i32, %c0_i32_0 : i32, i32
  }
  func.func @transform_10(%arg0: i32) -> (i32, i32) {
    %c0_i32 = arith.constant 0 : i32
    %c0_i32_0 = arith.constant 0 : i32
    %c0_i32_1 = arith.constant 0 : i32
    return %c0_i32, %c0_i32_0 : i32, i32
  }
  func.func @transform_11(%arg0: i32) -> (i32, i32) {
    %c0_i32 = arith.constant 0 : i32
    %c0_i32_0 = arith.constant 0 : i32
    %c0_i32_1 = arith.constant 0 : i32
    return %c0_i32, %c0_i32_0 : i32, i32
  }
  func.func @transform_12(%arg0: i32) -> (i32, i32) {
    %c0_i32 = arith.constant 0 : i32
    %c0_i32_0 = arith.constant 0 : i32
    %c0_i32_1 = arith.constant 0 : i32
    return %c0_i32, %c0_i32_0 : i32, i32
  }
  func.func @transform_13(%arg0: i32) -> (i32, i32) {
    %c0_i32 = arith.constant 0 : i32
    %c0_i32_0 = arith.constant 0 : i32
    %c0_i32_1 = arith.constant 0 : i32
    return %c0_i32, %c0_i32_0 : i32, i32
  }
  func.func @transform_14(%arg0: i32) -> (i32, i32) {
    %c0_i32 = arith.constant 0 : i32
    %c0_i32_0 = arith.constant 0 : i32
    %c0_i32_1 = arith.constant 0 : i32
    return %c0_i32, %c0_i32_0 : i32, i32
  }
  func.func @transform_15(%arg0: i32) -> (i32, i32) {
    %c0_i32 = arith.constant 0 : i32
    %c0_i32_0 = arith.constant 0 : i32
    %c0_i32_1 = arith.constant 0 : i32
    return %c0_i32, %c0_i32_0 : i32, i32
  }
  func.func @transform_16(%arg0: i32) -> (i32, i32) {
    %c0_i32 = arith.constant 0 : i32
    %c0_i32_0 = arith.constant 0 : i32
    %c0_i32_1 = arith.constant 0 : i32
    return %c0_i32, %c0_i32_0 : i32, i32
  }
  func.func @transform_17(%arg0: i32) -> (i32, i32) {
    %c0_i32 = arith.constant 0 : i32
    %c0_i32_0 = arith.constant 0 : i32
    %c0_i32_1 = arith.constant 0 : i32
    return %c0_i32, %c0_i32_0 : i32, i32
  }
  func.func @transform_18(%arg0: i32) -> (i32, i32) {
    %c0_i32 = arith.constant 0 : i32
    %c0_i32_0 = arith.constant 0 : i32
    %c0_i32_1 = arith.constant 0 : i32
    return %c0_i32, %c0_i32_0 : i32, i32
  }
  func.func @transform_19(%arg0: i32) -> (i32, i32) {
    %c0_i32 = arith.constant 0 : i32
    %c0_i32_0 = arith.constant 0 : i32
    %c0_i32_1 = arith.constant 0 : i32
    return %c0_i32, %c0_i32_0 : i32, i32
  }
  func.func @transform_20(%arg0: i32) -> (i32, i32) {
    %c0_i32 = arith.constant 0 : i32
    %c0_i32_0 = arith.constant 0 : i32
    %c0_i32_1 = arith.constant 0 : i32
    return %c0_i32, %c0_i32_0 : i32, i32
  }
  func.func @transform_21(%arg0: i32) -> (i32, i32) {
    %c0_i32 = arith.constant 0 : i32
    %c0_i32_0 = arith.constant 0 : i32
    %c0_i32_1 = arith.constant 0 : i32
    return %c0_i32, %c0_i32_0 : i32, i32
  }
  func.func @transform_22(%arg0: i32) -> (i32, i32, i32) {
    %c0_i32 = arith.constant 0 : i32
    %c0_i32_0 = arith.constant 0 : i32
    %c0_i32_1 = arith.constant 0 : i32
    return %arg0, %c0_i32, %c0_i32_0 : i32, i32, i32
  }
  func.func @transform_23(%arg0: i32) -> (i32, i32, i32) {
    %c0_i32 = arith.constant 0 : i32
    %c0_i32_0 = arith.constant 0 : i32
    %c0_i32_1 = arith.constant 0 : i32
    return %arg0, %c0_i32, %c0_i32_0 : i32, i32, i32
  }
}

</mosaic_0001>

<llo_original>
// kernel: tpu_custom_call.1
$region0: #{tpu_custom_call.1}
  #allocation0 [shape = 'u32[]', space=smem, size = 0x4, offset = 0x4, fixed_abs, tag = 'smem constant byte address 0x4 - core index']
  #allocation1 [shape = 'u32[144,128]{1,0:T(1,128)}', space=vmem, size = 0x12000, scoped, tag = 'internal scratch']
  %s0 = inlined_call_operand.vmem [shape: f32[2,4,32], index: 0, kind: input, shape index: {}]
  %s1 = inlined_call_operand.vmem [shape: f32[2,16,3], index: 1, kind: input, shape index: {}]
  %s2 = inlined_call_operand.vmem [shape: f32[2,1,6], index: 2, kind: input, shape index: {}]
  %s3 = inlined_call_operand.vmem [shape: f32[32,32], index: 3, kind: input, shape index: {}]
  %s4 = inlined_call_operand.vmem [shape: f32[1,32], index: 4, kind: input, shape index: {}]
  %s5 = inlined_call_operand.vmem [shape: f32[32,16], index: 5, kind: input, shape index: {}]
  %s6 = inlined_call_operand.vmem [shape: f32[1,16], index: 6, kind: input, shape index: {}]
  %s7 = inlined_call_operand.vmem [shape: f32[16,32], index: 7, kind: input, shape index: {}]
  %s8 = inlined_call_operand.vmem [shape: f32[6,16], index: 8, kind: input, shape index: {}]
  %s9 = inlined_call_operand.vmem [shape: f32[1,16], index: 9, kind: input, shape index: {}]
  %s10 = inlined_call_operand.vmem [shape: f32[16,32], index: 10, kind: input, shape index: {}]
  %s11 = inlined_call_operand.vmem [shape: f32[1,32], index: 11, kind: input, shape index: {}]
  %s12 = inlined_call_operand.vmem [shape: f32[3,96], index: 12, kind: input, shape index: {}]
  %s13 = inlined_call_operand.vmem [shape: f32[4,96], index: 13, kind: input, shape index: {}]
  %s14 = inlined_call_operand.vmem [shape: f32[1,96], index: 14, kind: input, shape index: {}]
  %s15 = inlined_call_operand.vmem [shape: f32[32,96], index: 15, kind: input, shape index: {}]
  %s16 = inlined_call_operand.vmem [shape: f32[1,96], index: 16, kind: input, shape index: {}]
  %s17 = inlined_call_operand.vmem [shape: f32[32,16], index: 17, kind: input, shape index: {}]
  %s18 = inlined_call_operand.vmem [shape: f32[32,16], index: 18, kind: input, shape index: {}]
  %s19 = inlined_call_operand.vmem [shape: f32[1,16], index: 19, kind: input, shape index: {}]
  %s20 = inlined_call_operand.vmem [shape: f32[16,2], index: 20, kind: input, shape index: {}]
  %s21 = inlined_call_operand.vmem [shape: f32[1,2], index: 21, kind: input, shape index: {}]
  %s22 = inlined_call_operand.hbm [shape: f32[2,1,2], index: 22, kind: output, shape index: {0}]
  %s23 = inlined_call_operand.vmem [shape: f32[2,16,4], index: 23, kind: output, shape index: {1}]
  %24 = xla_tuple %s22, %s23
  %s25 = sld [smem:[#allocation0]]
  $region129: #{tpu_custom_call.1} parent=0
    _
  %s27 = ssub.s32 1, %s25
  %s28 = scalar_select 0, %s27, %s25
  $region1: #{tpu_custom_call.1} parent=0
    #allocation2 [shape = 'u8[1024]{0}', space=vmem, size = 0x400, scoped, tag = 'output window, operand 0']
    #allocation3 [shape = 's32[2]{0}', space=sflag, size = 0x8, scoped, tag = 'scoped memory for tpu_custom_call.1']
    %29 = vsyncpa [#allocation3], 0
    %s30 = scalar_lea.sflag [#allocation3], 1
    %31 = vsyncpa %s30, 0
    loop: start=0, step=1, limit=4
    $region2: #{tpu_custom_call.1} parent=1 // loop_pre_header
      _
    $region3: #{tpu_custom_call.1} parent=1 // loop_header
      %s33 = sphi 0, %s37
      %p34 = scmp.ge.s32.totalorder %s33, 4
      %s43 = sphi 0, %s45
      %s46 = sphi 0, %s43
      %s47 = sphi 0, %s46
      %s63 = sphi 0, %s47
      %s69 = sphi 0, %s71
      %s72 = sphi 0, %s69
      %s73 = sphi 0, %s72
      %s89 = sphi 0, %s73
      %s95 = sphi 0, %s97
      %s98 = sphi 0, %s95
      %s99 = sphi 0, %s98
      %s115 = sphi 0, %s99
      %s119 = sphi 0, %s119
      %s121 = sphi 0, %s119
      %s122 = sphi 0, %s121
      %s136 = sphi 0, %s122
      %s140 = sphi 0, %s140
      %s142 = sphi 0, %s140
      %s143 = sphi 0, %s142
      %s157 = sphi 0, %s143
      %s161 = sphi 0, %s161
      %s163 = sphi 0, %s161
      %s164 = sphi 0, %s163
      %s178 = sphi 0, %s164
      %s182 = sphi 0, %s182
      %s184 = sphi 0, %s182
      %s185 = sphi 0, %s184
      %s199 = sphi 0, %s185
      %s203 = sphi 0, %s203
      %s205 = sphi 0, %s203
      %s206 = sphi 0, %s205
      %s220 = sphi 0, %s206
      %s224 = sphi 0, %s224
      %s226 = sphi 0, %s224
      %s227 = sphi 0, %s226
      %s241 = sphi 0, %s227
      %s245 = sphi 0, %s245
      %s247 = sphi 0, %s245
      %s248 = sphi 0, %s247
      %s262 = sphi 0, %s248
      %s266 = sphi 0, %s266
      %s268 = sphi 0, %s266
      %s269 = sphi 0, %s268
      %s283 = sphi 0, %s269
      %s287 = sphi 0, %s287
      %s289 = sphi 0, %s287
      %s290 = sphi 0, %s289
      %s304 = sphi 0, %s290
      %s308 = sphi 0, %s308
      %s310 = sphi 0, %s308
      %s311 = sphi 0, %s310
      %s325 = sphi 0, %s311
      %s329 = sphi 0, %s329
      %s331 = sphi 0, %s329
      %s332 = sphi 0, %s331
      %s346 = sphi 0, %s332
      %s350 = sphi 0, %s350
      %s352 = sphi 0, %s350
      %s353 = sphi 0, %s352
      %s367 = sphi 0, %s353
      %s371 = sphi 0, %s371
      %s373 = sphi 0, %s371
      %s374 = sphi 0, %s373
      %s388 = sphi 0, %s374
      %s392 = sphi 0, %s392
      %s394 = sphi 0, %s392
      %s395 = sphi 0, %s394
      %s409 = sphi 0, %s395
      %s413 = sphi 0, %s413
      %s415 = sphi 0, %s413
      %s416 = sphi 0, %s415
      %s430 = sphi 0, %s416
      %s434 = sphi 0, %s434
      %s436 = sphi 0, %s434
      %s437 = sphi 0, %s436
      %s451 = sphi 0, %s437
      %s455 = sphi 0, %s455
      %s457 = sphi 0, %s455
      %s458 = sphi 0, %s457
      %s472 = sphi 0, %s458
      %s476 = sphi 0, %s476
      %s478 = sphi 0, %s476
      %s479 = sphi 0, %s478
      %s493 = sphi 0, %s479
      %s497 = sphi 0, %s497
      %s499 = sphi 0, %s497
      %s500 = sphi 0, %s499
      %s514 = sphi 0, %s500
      %s520 = sphi 0, %s522
      %s523 = sphi 0, %s520
      %s524 = sphi 0, %s523
      %s540 = sphi 0, %s524
      %s546 = sphi 0, %s548
      %s549 = sphi 0, %s546
      %s550 = sphi 0, %s549
      %s566 = sphi 0, %s550
    $region4: #{tpu_custom_call.1} parent=1 // loop_header_branch
      %36 = sbr.rel (%p34) target = $region8
    $region5: #{tpu_custom_call.1} parent=1 // loop_body
      %s38 = ssub.s32 %s33, 1
      %s39 = ssub.s32 %s33, 2
      %s40 = sadd.s32 %s33, 1
      %s41 = ssub.s32 %s33, %s40
      %p42 = scmp.eq.s32.totalorder %s41, 0
      %s44 = sadd.s32 %s43, 1
      %s45 = scalar_select %p42, %s43, %s44
      %p48 = pneg %p42
      %p49 = scmp.eq.s32.totalorder %s33, 1
      %p50 = por %p48, %p49
      %p51 = scmp.ne.s32.totalorder %s43, %s46
      %p52 = scmp.eq.s32.totalorder %s33, 0
      %p53 = por %p51, %p52
      %p54 = scmp.ne.s32.totalorder %s43, %s46
      %p55 = scmp.eq.s32.totalorder %s38, 1
      %p56 = por %p54, %p55
      %p57 = scmp.ne.s32.totalorder %s46, %s47
      %p58 = scmp.eq.s32.totalorder %s38, 0
      %p59 = por %p57, %p58
      %p60 = scmp.ne.s32.totalorder %s46, %s47
      %p61 = scmp.eq.s32.totalorder %s39, 1
      %p62 = por %p60, %p61
      %p64 = scmp.ne.s32.totalorder %s47, %s63
      %p65 = scmp.eq.s32.totalorder %s39, 0
      %p66 = por %p64, %p65
      %s67 = ssub.s32 %s33, %s40
      %p68 = scmp.eq.s32.totalorder %s67, 0
      %s70 = sadd.s32 %s69, 1
      %s71 = scalar_select %p68, %s69, %s70
      %p74 = pneg %p68
      %p75 = scmp.eq.s32.totalorder %s33, 1
      %p76 = por %p74, %p75
      %p77 = scmp.ne.s32.totalorder %s69, %s72
      %p78 = scmp.eq.s32.totalorder %s33, 0
      %p79 = por %p77, %p78
      %p80 = scmp.ne.s32.totalorder %s69, %s72
      %p81 = scmp.eq.s32.totalorder %s38, 1
      %p82 = por %p80, %p81
      %p83 = scmp.ne.s32.totalorder %s72, %s73
      %p84 = scmp.eq.s32.totalorder %s38, 0
      %p85 = por %p83, %p84
      %p86 = scmp.ne.s32.totalorder %s72, %s73
      %p87 = scmp.eq.s32.totalorder %s39, 1
      %p88 = por %p86, %p87
      %p90 = scmp.ne.s32.totalorder %s73, %s89
      %p91 = scmp.eq.s32.totalorder %s39, 0
      %p92 = por %p90, %p91
      %s93 = ssub.s32 %s33, %s40
      %p94 = scmp.eq.s32.totalorder %s93, 0
      %s96 = sadd.s32 %s95, 1
      %s97 = scalar_select %p94, %s95, %s96
      %p100 = pneg %p94
      %p101 = scmp.eq.s32.totalorder %s33, 1
      %p102 = por %p100, %p101
      %p103 = scmp.ne.s32.totalorder %s95, %s98
      %p104 = scmp.eq.s32.totalorder %s33, 0
      %p105 = por %p103, %p104
      %p106 = scmp.ne.s32.totalorder %s95, %s98
      %p107 = scmp.eq.s32.totalorder %s38, 1
      %p108 = por %p106, %p107
      %p109 = scmp.ne.s32.totalorder %s98, %s99
      %p110 = scmp.eq.s32.totalorder %s38, 0
      %p111 = por %p109, %p110
      %p112 = scmp.ne.s32.totalorder %s98, %s99
      %p113 = scmp.eq.s32.totalorder %s39, 1
      %p114 = por %p112, %p113
      %p116 = scmp.ne.s32.totalorder %s99, %s115
      %p117 = scmp.eq.s32.totalorder %s39, 0
      %p118 = por %p116, %p117
      %s120 = sadd.s32 %s119, 1
      %p123 = scmp.eq.s32.totalorder %s33, 1
      %p124 = scmp.ne.s32.totalorder %s119, %s121
      %p125 = scmp.eq.s32.totalorder %s33, 0
      %p126 = por %p124, %p125
      %p127 = scmp.ne.s32.totalorder %s119, %s121
      %p128 = scmp.eq.s32.totalorder %s38, 1
      %p129 = por %p127, %p128
      %p130 = scmp.ne.s32.totalorder %s121, %s122
      %p131 = scmp.eq.s32.totalorder %s38, 0
      %p132 = por %p130, %p131
      %p133 = scmp.ne.s32.totalorder %s121, %s122
      %p134 = scmp.eq.s32.totalorder %s39, 1
      %p135 = por %p133, %p134
      %p137 = scmp.ne.s32.totalorder %s122, %s136
      %p138 = scmp.eq.s32.totalorder %s39, 0
      %p139 = por %p137, %p138
      %s141 = sadd.s32 %s140, 1
      %p144 = scmp.eq.s32.totalorder %s33, 1
      %p145 = scmp.ne.s32.totalorder %s140, %s142
      %p146 = scmp.eq.s32.totalorder %s33, 0
      %p147 = por %p145, %p146
      %p148 = scmp.ne.s32.totalorder %s140, %s142
      %p149 = scmp.eq.s32.totalorder %s38, 1
      %p150 = por %p148, %p149
      %p151 = scmp.ne.s32.totalorder %s142, %s143
      %p152 = scmp.eq.s32.totalorder %s38, 0
      %p153 = por %p151, %p152
      %p154 = scmp.ne.s32.totalorder %s142, %s143
      %p155 = scmp.eq.s32.totalorder %s39, 1
      %p156 = por %p154, %p155
      %p158 = scmp.ne.s32.totalorder %s143, %s157
      %p159 = scmp.eq.s32.totalorder %s39, 0
      %p160 = por %p158, %p159
      %s162 = sadd.s32 %s161, 1
      %p165 = scmp.eq.s32.totalorder %s33, 1
      %p166 = scmp.ne.s32.totalorder %s161, %s163
      %p167 = scmp.eq.s32.totalorder %s33, 0
      %p168 = por %p166, %p167
      %p169 = scmp.ne.s32.totalorder %s161, %s163
      %p170 = scmp.eq.s32.totalorder %s38, 1
      %p171 = por %p169, %p170
      %p172 = scmp.ne.s32.totalorder %s163, %s164
      %p173 = scmp.eq.s32.totalorder %s38, 0
      %p174 = por %p172, %p173
      %p175 = scmp.ne.s32.totalorder %s163, %s164
      %p176 = scmp.eq.s32.totalorder %s39, 1
      %p177 = por %p175, %p176
      %p179 = scmp.ne.s32.totalorder %s164, %s178
      %p180 = scmp.eq.s32.totalorder %s39, 0
      %p181 = por %p179, %p180
      %s183 = sadd.s32 %s182, 1
      %p186 = scmp.eq.s32.totalorder %s33, 1
      %p187 = scmp.ne.s32.totalorder %s182, %s184
      %p188 = scmp.eq.s32.totalorder %s33, 0
      %p189 = por %p187, %p188
      %p190 = scmp.ne.s32.totalorder %s182, %s184
      %p191 = scmp.eq.s32.totalorder %s38, 1
      %p192 = por %p190, %p191
      %p193 = scmp.ne.s32.totalorder %s184, %s185
      %p194 = scmp.eq.s32.totalorder %s38, 0
      %p195 = por %p193, %p194
      %p196 = scmp.ne.s32.totalorder %s184, %s185
      %p197 = scmp.eq.s32.totalorder %s39, 1
      %p198 = por %p196, %p197
      %p200 = scmp.ne.s32.totalorder %s185, %s199
      %p201 = scmp.eq.s32.totalorder %s39, 0
      %p202 = por %p200, %p201
      %s204 = sadd.s32 %s203, 1
      %p207 = scmp.eq.s32.totalorder %s33, 1
      %p208 = scmp.ne.s32.totalorder %s203, %s205
      %p209 = scmp.eq.s32.totalorder %s33, 0
      %p210 = por %p208, %p209
      %p211 = scmp.ne.s32.totalorder %s203, %s205
      %p212 = scmp.eq.s32.totalorder %s38, 1
      %p213 = por %p211, %p212
      %p214 = scmp.ne.s32.totalorder %s205, %s206
      %p215 = scmp.eq.s32.totalorder %s38, 0
      %p216 = por %p214, %p215
      %p217 = scmp.ne.s32.totalorder %s205, %s206
      %p218 = scmp.eq.s32.totalorder %s39, 1
      %p219 = por %p217, %p218
      %p221 = scmp.ne.s32.totalorder %s206, %s220
      %p222 = scmp.eq.s32.totalorder %s39, 0
      %p223 = por %p221, %p222
      %s225 = sadd.s32 %s224, 1
      %p228 = scmp.eq.s32.totalorder %s33, 1
      %p229 = scmp.ne.s32.totalorder %s224, %s226
      %p230 = scmp.eq.s32.totalorder %s33, 0
      %p231 = por %p229, %p230
      %p232 = scmp.ne.s32.totalorder %s224, %s226
      %p233 = scmp.eq.s32.totalorder %s38, 1
      %p234 = por %p232, %p233
      %p235 = scmp.ne.s32.totalorder %s226, %s227
      %p236 = scmp.eq.s32.totalorder %s38, 0
      %p237 = por %p235, %p236
      %p238 = scmp.ne.s32.totalorder %s226, %s227
      %p239 = scmp.eq.s32.totalorder %s39, 1
      %p240 = por %p238, %p239
      %p242 = scmp.ne.s32.totalorder %s227, %s241
      %p243 = scmp.eq.s32.totalorder %s39, 0
      %p244 = por %p242, %p243
      %s246 = sadd.s32 %s245, 1
      %p249 = scmp.eq.s32.totalorder %s33, 1
      %p250 = scmp.ne.s32.totalorder %s245, %s247
      %p251 = scmp.eq.s32.totalorder %s33, 0
      %p252 = por %p250, %p251
      %p253 = scmp.ne.s32.totalorder %s245, %s247
      %p254 = scmp.eq.s32.totalorder %s38, 1
      %p255 = por %p253, %p254
      %p256 = scmp.ne.s32.totalorder %s247, %s248
      %p257 = scmp.eq.s32.totalorder %s38, 0
      %p258 = por %p256, %p257
      %p259 = scmp.ne.s32.totalorder %s247, %s248
      %p260 = scmp.eq.s32.totalorder %s39, 1
      %p261 = por %p259, %p260
      %p263 = scmp.ne.s32.totalorder %s248, %s262
      %p264 = scmp.eq.s32.totalorder %s39, 0
      %p265 = por %p263, %p264
      %s267 = sadd.s32 %s266, 1
      %p270 = scmp.eq.s32.totalorder %s33, 1
      %p271 = scmp.ne.s32.totalorder %s266, %s268
      %p272 = scmp.eq.s32.totalorder %s33, 0
      %p273 = por %p271, %p272
      %p274 = scmp.ne.s32.totalorder %s266, %s268
      %p275 = scmp.eq.s32.totalorder %s38, 1
      %p276 = por %p274, %p275
      %p277 = scmp.ne.s32.totalorder %s268, %s269
      %p278 = scmp.eq.s32.totalorder %s38, 0
      %p279 = por %p277, %p278
      %p280 = scmp.ne.s32.totalorder %s268, %s269
      %p281 = scmp.eq.s32.totalorder %s39, 1
      %p282 = por %p280, %p281
      %p284 = scmp.ne.s32.totalorder %s269, %s283
      %p285 = scmp.eq.s32.totalorder %s39, 0
      %p286 = por %p284, %p285
      %s288 = sadd.s32 %s287, 1
      %p291 = scmp.eq.s32.totalorder %s33, 1
      %p292 = scmp.ne.s32.totalorder %s287, %s289
      %p293 = scmp.eq.s32.totalorder %s33, 0
      %p294 = por %p292, %p293
      %p295 = scmp.ne.s32.totalorder %s287, %s289
      %p296 = scmp.eq.s32.totalorder %s38, 1
      %p297 = por %p295, %p296
      %p298 = scmp.ne.s32.totalorder %s289, %s290
      %p299 = scmp.eq.s32.totalorder %s38, 0
      %p300 = por %p298, %p299
      %p301 = scmp.ne.s32.totalorder %s289, %s290
      %p302 = scmp.eq.s32.totalorder %s39, 1
      %p303 = por %p301, %p302
      %p305 = scmp.ne.s32.totalorder %s290, %s304
      %p306 = scmp.eq.s32.totalorder %s39, 0
      %p307 = por %p305, %p306
      %s309 = sadd.s32 %s308, 1
      %p312 = scmp.eq.s32.totalorder %s33, 1
      %p313 = scmp.ne.s32.totalorder %s308, %s310
      %p314 = scmp.eq.s32.totalorder %s33, 0
      %p315 = por %p313, %p314
      %p316 = scmp.ne.s32.totalorder %s308, %s310
      %p317 = scmp.eq.s32.totalorder %s38, 1
      %p318 = por %p316, %p317
      %p319 = scmp.ne.s32.totalorder %s310, %s311
      %p320 = scmp.eq.s32.totalorder %s38, 0
      %p321 = por %p319, %p320
      %p322 = scmp.ne.s32.totalorder %s310, %s311
      %p323 = scmp.eq.s32.totalorder %s39, 1
      %p324 = por %p322, %p323
      %p326 = scmp.ne.s32.totalorder %s311, %s325
      %p327 = scmp.eq.s32.totalorder %s39, 0
      %p328 = por %p326, %p327
      %s330 = sadd.s32 %s329, 1
      %p333 = scmp.eq.s32.totalorder %s33, 1
      %p334 = scmp.ne.s32.totalorder %s329, %s331
      %p335 = scmp.eq.s32.totalorder %s33, 0
      %p336 = por %p334, %p335
      %p337 = scmp.ne.s32.totalorder %s329, %s331
      %p338 = scmp.eq.s32.totalorder %s38, 1
      %p339 = por %p337, %p338
      %p340 = scmp.ne.s32.totalorder %s331, %s332
      %p341 = scmp.eq.s32.totalorder %s38, 0
      %p342 = por %p340, %p341
      %p343 = scmp.ne.s32.totalorder %s331, %s332
      %p344 = scmp.eq.s32.totalorder %s39, 1
      %p345 = por %p343, %p344
      %p347 = scmp.ne.s32.totalorder %s332, %s346
      %p348 = scmp.eq.s32.totalorder %s39, 0
      %p349 = por %p347, %p348
      %s351 = sadd.s32 %s350, 1
      %p354 = scmp.eq.s32.totalorder %s33, 1
      %p355 = scmp.ne.s32.totalorder %s350, %s352
      %p356 = scmp.eq.s32.totalorder %s33, 0
      %p357 = por %p355, %p356
      %p358 = scmp.ne.s32.totalorder %s350, %s352
      %p359 = scmp.eq.s32.totalorder %s38, 1
      %p360 = por %p358, %p359
      %p361 = scmp.ne.s32.totalorder %s352, %s353
      %p362 = scmp.eq.s32.totalorder %s38, 0
      %p363 = por %p361, %p362
      %p364 = scmp.ne.s32.totalorder %s352, %s353
      %p365 = scmp.eq.s32.totalorder %s39, 1
      %p366 = por %p364, %p365
      %p368 = scmp.ne.s32.totalorder %s353, %s367
      %p369 = scmp.eq.s32.totalorder %s39, 0
      %p370 = por %p368, %p369
      %s372 = sadd.s32 %s371, 1
      %p375 = scmp.eq.s32.totalorder %s33, 1
      %p376 = scmp.ne.s32.totalorder %s371, %s373
      %p377 = scmp.eq.s32.totalorder %s33, 0
      %p378 = por %p376, %p377
      %p379 = scmp.ne.s32.totalorder %s371, %s373
      %p380 = scmp.eq.s32.totalorder %s38, 1
      %p381 = por %p379, %p380
      %p382 = scmp.ne.s32.totalorder %s373, %s374
      %p383 = scmp.eq.s32.totalorder %s38, 0
      %p384 = por %p382, %p383
      %p385 = scmp.ne.s32.totalorder %s373, %s374
      %p386 = scmp.eq.s32.totalorder %s39, 1
      %p387 = por %p385, %p386
      %p389 = scmp.ne.s32.totalorder %s374, %s388
      %p390 = scmp.eq.s32.totalorder %s39, 0
      %p391 = por %p389, %p390
      %s393 = sadd.s32 %s392, 1
      %p396 = scmp.eq.s32.totalorder %s33, 1
      %p397 = scmp.ne.s32.totalorder %s392, %s394
      %p398 = scmp.eq.s32.totalorder %s33, 0
      %p399 = por %p397, %p398
      %p400 = scmp.ne.s32.totalorder %s392, %s394
      %p401 = scmp.eq.s32.totalorder %s38, 1
      %p402 = por %p400, %p401
      %p403 = scmp.ne.s32.totalorder %s394, %s395
      %p404 = scmp.eq.s32.totalorder %s38, 0
      %p405 = por %p403, %p404
      %p406 = scmp.ne.s32.totalorder %s394, %s395
      %p407 = scmp.eq.s32.totalorder %s39, 1
      %p408 = por %p406, %p407
      %p410 = scmp.ne.s32.totalorder %s395, %s409
      %p411 = scmp.eq.s32.totalorder %s39, 0
      %p412 = por %p410, %p411
      %s414 = sadd.s32 %s413, 1
      %p417 = scmp.eq.s32.totalorder %s33, 1
      %p418 = scmp.ne.s32.totalorder %s413, %s415
      %p419 = scmp.eq.s32.totalorder %s33, 0
      %p420 = por %p418, %p419
      %p421 = scmp.ne.s32.totalorder %s413, %s415
      %p422 = scmp.eq.s32.totalorder %s38, 1
      %p423 = por %p421, %p422
      %p424 = scmp.ne.s32.totalorder %s415, %s416
      %p425 = scmp.eq.s32.totalorder %s38, 0
      %p426 = por %p424, %p425
      %p427 = scmp.ne.s32.totalorder %s415, %s416
      %p428 = scmp.eq.s32.totalorder %s39, 1
      %p429 = por %p427, %p428
      %p431 = scmp.ne.s32.totalorder %s416, %s430
      %p432 = scmp.eq.s32.totalorder %s39, 0
      %p433 = por %p431, %p432
      %s435 = sadd.s32 %s434, 1
      %p438 = scmp.eq.s32.totalorder %s33, 1
      %p439 = scmp.ne.s32.totalorder %s434, %s436
      %p440 = scmp.eq.s32.totalorder %s33, 0
      %p441 = por %p439, %p440
      %p442 = scmp.ne.s32.totalorder %s434, %s436
      %p443 = scmp.eq.s32.totalorder %s38, 1
      %p444 = por %p442, %p443
      %p445 = scmp.ne.s32.totalorder %s436, %s437
      %p446 = scmp.eq.s32.totalorder %s38, 0
      %p447 = por %p445, %p446
      %p448 = scmp.ne.s32.totalorder %s436, %s437
      %p449 = scmp.eq.s32.totalorder %s39, 1
      %p450 = por %p448, %p449
      %p452 = scmp.ne.s32.totalorder %s437, %s451
      %p453 = scmp.eq.s32.totalorder %s39, 0
      %p454 = por %p452, %p453
      %s456 = sadd.s32 %s455, 1
      %p459 = scmp.eq.s32.totalorder %s33, 1
      %p460 = scmp.ne.s32.totalorder %s455, %s457
      %p461 = scmp.eq.s32.totalorder %s33, 0
      %p462 = por %p460, %p461
      %p463 = scmp.ne.s32.totalorder %s455, %s457
      %p464 = scmp.eq.s32.totalorder %s38, 1
      %p465 = por %p463, %p464
      %p466 = scmp.ne.s32.totalorder %s457, %s458
      %p467 = scmp.eq.s32.totalorder %s38, 0
      %p468 = por %p466, %p467
      %p469 = scmp.ne.s32.totalorder %s457, %s458
      %p470 = scmp.eq.s32.totalorder %s39, 1
      %p471 = por %p469, %p470
      %p473 = scmp.ne.s32.totalorder %s458, %s472
      %p474 = scmp.eq.s32.totalorder %s39, 0
      %p475 = por %p473, %p474
      %s477 = sadd.s32 %s476, 1
      %p480 = scmp.eq.s32.totalorder %s33, 1
      %p481 = scmp.ne.s32.totalorder %s476, %s478
      %p482 = scmp.eq.s32.totalorder %s33, 0
      %p483 = por %p481, %p482
      %p484 = scmp.ne.s32.totalorder %s476, %s478
      %p485 = scmp.eq.s32.totalorder %s38, 1
      %p486 = por %p484, %p485
      %p487 = scmp.ne.s32.totalorder %s478, %s479
      %p488 = scmp.eq.s32.totalorder %s38, 0
      %p489 = por %p487, %p488
      %p490 = scmp.ne.s32.totalorder %s478, %s479
      %p491 = scmp.eq.s32.totalorder %s39, 1
      %p492 = por %p490, %p491
      %p494 = scmp.ne.s32.totalorder %s479, %s493
      %p495 = scmp.eq.s32.totalorder %s39, 0
      %p496 = por %p494, %p495
      %s498 = sadd.s32 %s497, 1
      %p501 = scmp.eq.s32.totalorder %s33, 1
      %p502 = scmp.ne.s32.totalorder %s497, %s499
      %p503 = scmp.eq.s32.totalorder %s33, 0
      %p504 = por %p502, %p503
      %p505 = scmp.ne.s32.totalorder %s497, %s499
      %p506 = scmp.eq.s32.totalorder %s38, 1
      %p507 = por %p505, %p506
      %p508 = scmp.ne.s32.totalorder %s499, %s500
      %p509 = scmp.eq.s32.totalorder %s38, 0
      %p510 = por %p508, %p509
      %p511 = scmp.ne.s32.totalorder %s499, %s500
      %p512 = scmp.eq.s32.totalorder %s39, 1
      %p513 = por %p511, %p512
      %p515 = scmp.ne.s32.totalorder %s500, %s514
      %p516 = scmp.eq.s32.totalorder %s39, 0
      %p517 = por %p515, %p516
      %s518 = ssub.s32 %s33, %s40
      %p519 = scmp.eq.s32.totalorder %s518, 0
      %s521 = sadd.s32 %s520, 1
      %s522 = scalar_select %p519, %s520, %s521
      %p525 = pneg %p519
      %p526 = scmp.eq.s32.totalorder %s33, 1
      %p527 = por %p525, %p526
      %p528 = scmp.ne.s32.totalorder %s520, %s523
      %p529 = scmp.eq.s32.totalorder %s33, 0
      %p530 = por %p528, %p529
      %p531 = scmp.ne.s32.totalorder %s520, %s523
      %p532 = scmp.eq.s32.totalorder %s38, 1
      %p533 = por %p531, %p532
      %p534 = scmp.ne.s32.totalorder %s523, %s524
      %p535 = scmp.eq.s32.totalorder %s38, 0
      %p536 = por %p534, %p535
      %p537 = scmp.ne.s32.totalorder %s523, %s524
      %p538 = scmp.eq.s32.totalorder %s39, 1
      %p539 = por %p537, %p538
      %p541 = scmp.ne.s32.totalorder %s524, %s540
      %p542 = scmp.eq.s32.totalorder %s39, 0
      %p543 = por %p541, %p542
      %s544 = ssub.s32 %s33, %s40
      %p545 = scmp.eq.s32.totalorder %s544, 0
      %s547 = sadd.s32 %s546, 1
      %s548 = scalar_select %p545, %s546, %s547
      %p551 = pneg %p545
      %p552 = scmp.eq.s32.totalorder %s33, 1
      %p553 = por %p551, %p552
      %p554 = scmp.ne.s32.totalorder %s546, %s549
      %p555 = scmp.eq.s32.totalorder %s33, 0
      %p556 = por %p554, %p555
      %p557 = scmp.ne.s32.totalorder %s546, %s549
      %p558 = scmp.eq.s32.totalorder %s38, 1
      %p559 = por %p557, %p558
      %p560 = scmp.ne.s32.totalorder %s549, %s550
      %p561 = scmp.eq.s32.totalorder %s38, 0
      %p562 = por %p560, %p561
      %p563 = scmp.ne.s32.totalorder %s549, %s550
      %p564 = scmp.eq.s32.totalorder %s39, 1
      %p565 = por %p563, %p564
      %p567 = scmp.ne.s32.totalorder %s550, %s566
      %p568 = scmp.eq.s32.totalorder %s39, 0
      %p569 = por %p567, %p568
      %p570 = scmp.le.s32.totalorder 1, %s33
      %p571 = scmp.lt.s32.totalorder %s33, 3
      %p572 = pnand %p570, %p571
      %p573 = pneg %p572
      // Predicated region
      $region9: #{tpu_custom_call.1} parent=5 // pred_check
        _
      $region10: #{tpu_custom_call.1} parent=5 // pred_check_branch
        %575 = sbr.rel (%p572) target = $region12
      $region11: #{tpu_custom_call.1} parent=5 // pred_region
        %s576 = ssub.s32 %s33, 1
        // Predicated region
        $region13: #{tpu_custom_call.1} parent=11 // pred_check
          %p577 = pneg %p132
        $region14: #{tpu_custom_call.1} parent=11 // pred_check_branch
          %579 = sbr.rel (%p577) target = $region16
        $region15: #{tpu_custom_call.1} parent=11 // pred_region
          _
        $region16: #{tpu_custom_call.1} parent=11 // pred_fallthru
          _
        // Predicated region
        $region17: #{tpu_custom_call.1} parent=11 // pred_check
          %p580 = pneg %p153
        $region18: #{tpu_custom_call.1} parent=11 // pred_check_branch
          %582 = sbr.rel (%p580) target = $region20
        $region19: #{tpu_custom_call.1} parent=11 // pred_region
          _
        $region20: #{tpu_custom_call.1} parent=11 // pred_fallthru
          _
        // Predicated region
        $region21: #{tpu_custom_call.1} parent=11 // pred_check
          %p583 = pneg %p174
        $region22: #{tpu_custom_call.1} parent=11 // pred_check_branch
          %585 = sbr.rel (%p583) target = $region24
        $region23: #{tpu_custom_call.1} parent=11 // pred_region
          _
        $region24: #{tpu_custom_call.1} parent=11 // pred_fallthru
          _
        // Predicated region
        $region25: #{tpu_custom_call.1} parent=11 // pred_check
          %p586 = pneg %p195
        $region26: #{tpu_custom_call.1} parent=11 // pred_check_branch
          %588 = sbr.rel (%p586) target = $region28
        $region27: #{tpu_custom_call.1} parent=11 // pred_region
          _
        $region28: #{tpu_custom_call.1} parent=11 // pred_fallthru
          _
        // Predicated region
        $region29: #{tpu_custom_call.1} parent=11 // pred_check
          %p589 = pneg %p216
        $region30: #{tpu_custom_call.1} parent=11 // pred_check_branch
          %591 = sbr.rel (%p589) target = $region32
        $region31: #{tpu_custom_call.1} parent=11 // pred_region
          _
        $region32: #{tpu_custom_call.1} parent=11 // pred_fallthru
          _
        // Predicated region
        $region33: #{tpu_custom_call.1} parent=11 // pred_check
          %p592 = pneg %p237
        $region34: #{tpu_custom_call.1} parent=11 // pred_check_branch
          %594 = sbr.rel (%p592) target = $region36
        $region35: #{tpu_custom_call.1} parent=11 // pred_region
          _
        $region36: #{tpu_custom_call.1} parent=11 // pred_fallthru
          _
        // Predicated region
        $region37: #{tpu_custom_call.1} parent=11 // pred_check
          %p595 = pneg %p258
        $region38: #{tpu_custom_call.1} parent=11 // pred_check_branch
          %597 = sbr.rel (%p595) target = $region40
        $region39: #{tpu_custom_call.1} parent=11 // pred_region
          _
        $region40: #{tpu_custom_call.1} parent=11 // pred_fallthru
          _
        // Predicated region
        $region41: #{tpu_custom_call.1} parent=11 // pred_check
          %p598 = pneg %p279
        $region42: #{tpu_custom_call.1} parent=11 // pred_check_branch
          %600 = sbr.rel (%p598) target = $region44
        $region43: #{tpu_custom_call.1} parent=11 // pred_region
          _
        $region44: #{tpu_custom_call.1} parent=11 // pred_fallthru
          _
        // Predicated region
        $region45: #{tpu_custom_call.1} parent=11 // pred_check
          %p601 = pneg %p300
        $region46: #{tpu_custom_call.1} parent=11 // pred_check_branch
          %603 = sbr.rel (%p601) target = $region48
        $region47: #{tpu_custom_call.1} parent=11 // pred_region
          _
        $region48: #{tpu_custom_call.1} parent=11 // pred_fallthru
          _
        // Predicated region
        $region49: #{tpu_custom_call.1} parent=11 // pred_check
          %p604 = pneg %p321
        $region50: #{tpu_custom_call.1} parent=11 // pred_check_branch
          %606 = sbr.rel (%p604) target = $region52
        $region51: #{tpu_custom_call.1} parent=11 // pred_region
          _
        $region52: #{tpu_custom_call.1} parent=11 // pred_fallthru
          _
        // Predicated region
        $region53: #{tpu_custom_call.1} parent=11 // pred_check
          %p607 = pneg %p342
        $region54: #{tpu_custom_call.1} parent=11 // pred_check_branch
          %609 = sbr.rel (%p607) target = $region56
        $region55: #{tpu_custom_call.1} parent=11 // pred_region
          _
        $region56: #{tpu_custom_call.1} parent=11 // pred_fallthru
          _
        // Predicated region
        $region57: #{tpu_custom_call.1} parent=11 // pred_check
          %p610 = pneg %p363
        $region58: #{tpu_custom_call.1} parent=11 // pred_check_branch
          %612 = sbr.rel (%p610) target = $region60
        $region59: #{tpu_custom_call.1} parent=11 // pred_region
          _
        $region60: #{tpu_custom_call.1} parent=11 // pred_fallthru
          _
        // Predicated region
        $region61: #{tpu_custom_call.1} parent=11 // pred_check
          %p613 = pneg %p384
        $region62: #{tpu_custom_call.1} parent=11 // pred_check_branch
          %615 = sbr.rel (%p613) target = $region64
        $region63: #{tpu_custom_call.1} parent=11 // pred_region
          _
        $region64: #{tpu_custom_call.1} parent=11 // pred_fallthru
          _
        // Predicated region
        $region65: #{tpu_custom_call.1} parent=11 // pred_check
          %p616 = pneg %p405
        $region66: #{tpu_custom_call.1} parent=11 // pred_check_branch
          %618 = sbr.rel (%p616) target = $region68
        $region67: #{tpu_custom_call.1} parent=11 // pred_region
          _
        $region68: #{tpu_custom_call.1} parent=11 // pred_fallthru
          _
        // Predicated region
        $region69: #{tpu_custom_call.1} parent=11 // pred_check
          %p619 = pneg %p426
        $region70: #{tpu_custom_call.1} parent=11 // pred_check_branch
          %621 = sbr.rel (%p619) target = $region72
        $region71: #{tpu_custom_call.1} parent=11 // pred_region
          _
        $region72: #{tpu_custom_call.1} parent=11 // pred_fallthru
          _
        // Predicated region
        $region73: #{tpu_custom_call.1} parent=11 // pred_check
          %p622 = pneg %p447
        $region74: #{tpu_custom_call.1} parent=11 // pred_check_branch
          %624 = sbr.rel (%p622) target = $region76
        $region75: #{tpu_custom_call.1} parent=11 // pred_region
          _
        $region76: #{tpu_custom_call.1} parent=11 // pred_fallthru
          _
        // Predicated region
        $region77: #{tpu_custom_call.1} parent=11 // pred_check
          %p625 = pneg %p468
        $region78: #{tpu_custom_call.1} parent=11 // pred_check_branch
          %627 = sbr.rel (%p625) target = $region80
        $region79: #{tpu_custom_call.1} parent=11 // pred_region
          _
        $region80: #{tpu_custom_call.1} parent=11 // pred_fallthru
          _
        // Predicated region
        $region81: #{tpu_custom_call.1} parent=11 // pred_check
          %p628 = pneg %p489
        $region82: #{tpu_custom_call.1} parent=11 // pred_check_branch
          %630 = sbr.rel (%p628) target = $region84
        $region83: #{tpu_custom_call.1} parent=11 // pred_region
          _
        $region84: #{tpu_custom_call.1} parent=11 // pred_fallthru
          _
        // Predicated region
        $region85: #{tpu_custom_call.1} parent=11 // pred_check
          %p631 = pneg %p510
        $region86: #{tpu_custom_call.1} parent=11 // pred_check_branch
          %633 = sbr.rel (%p631) target = $region88
        $region87: #{tpu_custom_call.1} parent=11 // pred_region
          _
        $region88: #{tpu_custom_call.1} parent=11 // pred_fallthru
          _
      $region12: #{tpu_custom_call.1} parent=5 // pred_fallthru
        _
      %p634 = scmp.lt.s32.totalorder %s33, 2
      // Predicated region
      $region89: #{tpu_custom_call.1} parent=5 // pred_check
        %p635 = pneg %p634
      $region90: #{tpu_custom_call.1} parent=5 // pred_check_branch
        %637 = sbr.rel (%p635) target = $region92
      $region91: #{tpu_custom_call.1} parent=5 // pred_region
        // Predicated region
        $region93: #{tpu_custom_call.1} parent=91 // pred_check
          %p638 = pneg %p53
        $region94: #{tpu_custom_call.1} parent=91 // pred_check_branch
          %640 = sbr.rel (%p638) target = $region96
        $region95: #{tpu_custom_call.1} parent=91 // pred_region
          %p641 = scmp.lt.s32.totalorder %s33, 1
          %s642 = scalar_select %p641, %s33, 1
          %s643 = smul.addr %s642, 4
          %s644 = scalar_lea.vmem %s0, %s643
        $region96: #{tpu_custom_call.1} parent=91 // pred_fallthru
          _
        // Predicated region
        $region97: #{tpu_custom_call.1} parent=91 // pred_check
          %p645 = pneg %p79
        $region98: #{tpu_custom_call.1} parent=91 // pred_check_branch
          %647 = sbr.rel (%p645) target = $region100
        $region99: #{tpu_custom_call.1} parent=91 // pred_region
          %p648 = scmp.lt.s32.totalorder %s33, 1
          %s649 = scalar_select %p648, %s33, 1
          %s650 = smul.addr %s649, 2
          %s651 = smul.addr %s650, 8
          %s652 = scalar_lea.vmem %s1, %s651
        $region100: #{tpu_custom_call.1} parent=91 // pred_fallthru
          _
        // Predicated region
        $region101: #{tpu_custom_call.1} parent=91 // pred_check
          %p653 = pneg %p105
        $region102: #{tpu_custom_call.1} parent=91 // pred_check_branch
          %655 = sbr.rel (%p653) target = $region104
        $region103: #{tpu_custom_call.1} parent=91 // pred_region
          %p656 = scmp.lt.s32.totalorder %s33, 1
          %s657 = scalar_select %p656, %s33, 1
          %s658 = scalar_lea.vmem %s2, %s657
        $region104: #{tpu_custom_call.1} parent=91 // pred_fallthru
          _
      $region92: #{tpu_custom_call.1} parent=5 // pred_fallthru
        _
      %p659 = scmp.le.s32.totalorder 1, %s33
      %p660 = scmp.lt.s32.totalorder %s33, 3
      %p661 = pnand %p659, %p660
      %p662 = pneg %p661
      // Predicated region
      $region105: #{tpu_custom_call.1} parent=5 // pred_check
        _
      $region106: #{tpu_custom_call.1} parent=5 // pred_check_branch
        %664 = sbr.rel (%p661) target = $region108
      $region107: #{tpu_custom_call.1} parent=5 // pred_region
        %s665 = ssub.s32 %s33, 1
        %p666 = scmp.lt.s32.totalorder %s38, 1
        %s667 = scalar_select %p666, %s38, 1
        %s668 = smul.addr %s667, 4
        %s669 = scalar_lea.vmem %s0, %s668
        %p670 = pneg %p59
        %p671 = pneg %p56
        %p672 = scmp.lt.s32.totalorder %s38, 1
        %s673 = scalar_select %p672, %s38, 1
        %s674 = smul.addr %s673, 2
        %s675 = smul.addr %s674, 8
        %s676 = scalar_lea.vmem %s1, %s675
        %p677 = pneg %p85
        %p678 = pneg %p82
        %p679 = scmp.lt.s32.totalorder %s38, 1
        %s680 = scalar_select %p679, %s38, 1
        %s681 = scalar_lea.vmem %s2, %s680
        %p682 = pneg %p111
        %p683 = pneg %p108
        %p684 = pneg %p132
        %p685 = pneg %p129
        %p686 = pneg %p153
        %p687 = pneg %p150
        %p688 = pneg %p174
        %p689 = pneg %p171
        %p690 = pneg %p195
        %p691 = pneg %p192
        %p692 = pneg %p216
        %p693 = pneg %p213
        %p694 = pneg %p237
        %p695 = pneg %p234
        %p696 = pneg %p258
        %p697 = pneg %p255
        %p698 = pneg %p279
        %p699 = pneg %p276
        %p700 = pneg %p300
        %p701 = pneg %p297
        %p702 = pneg %p321
        %p703 = pneg %p318
        %p704 = pneg %p342
        %p705 = pneg %p339
        %p706 = pneg %p363
        %p707 = pneg %p360
        %p708 = pneg %p384
        %p709 = pneg %p381
        %p710 = pneg %p405
        %p711 = pneg %p402
        %p712 = pneg %p426
        %p713 = pneg %p423
        %p714 = pneg %p447
        %p715 = pneg %p444
        %p716 = pneg %p468
        %p717 = pneg %p465
        %p718 = pneg %p489
        %p719 = pneg %p486
        %p720 = pneg %p510
        %p721 = pneg %p507
        %p722 = pneg %p536
        %p723 = pneg %p533
        %s724 = sand.u32 %s523, 1
        %s725 = scalar_lea.sflag [#allocation3], %s724
        %s726 = sand.u32 %s523, 1
        %s727 = scalar_lea.vmem [#allocation2], %s726
        %p728 = pneg %p562
        %p729 = pneg %p559
        %p730 = scmp.lt.s32.totalorder %s38, 1
        %s731 = scalar_select %p730, %s38, 1
        %s732 = smul.addr %s731, 2
        %s733 = smul.addr %s732, 8
        %s734 = scalar_lea.vmem %s23, %s733
        %p735 = scmp.lt.s32.totalorder %s38, 1
        %s736 = scalar_select %p735, %s38, 1
        %s737 = smul.addr %s736, 4
        %s738 = scalar_lea.vmem %s0, %s737
        %p739 = scmp.lt.s32.totalorder %s38, 1
        %s740 = scalar_select %p739, %s38, 1
        %s741 = smul.addr %s740, 2
        %s742 = smul.addr %s741, 8
        %s743 = scalar_lea.vmem %s1, %s742
        %p744 = scmp.lt.s32.totalorder %s38, 1
        %s745 = scalar_select %p744, %s38, 1
        %s746 = scalar_lea.vmem %s2, %s745
        %p747 = scmp.lt.s32.totalorder %s38, 1
        %s748 = scalar_select %p747, %s38, 1
        %s749 = smul.addr %s748, 2
        %s750 = smul.addr %s749, 8
        %s751 = scalar_lea.vmem %s23, %s750
        %v752 = vld [vmem:[%s738] sm:$0xf]
        %v753 = vld [vmem:[%s3] sm:$0xff]
        %v754 = vld [vmem:[%s3 + $0x8] sm:$0xff]
        %v755 = vld [vmem:[%s3 + $0x10] sm:$0xff]
        %v756 = vld [vmem:[%s3 + $0x18] sm:$0xff]
        %v757 = vld [vmem:[%s4] sm:$0x1]
        %v759 = vlaneseq
        %v760 = vshrl.u32 %v759, 7
        %v761 = vsub.s32 0, %v760
        %v762 = vrot.slane %v757, %v761
        %vm764 = vcmask 261120
        %v766 = vsel %vm764, %v752, 0
        %768 = vmatprep.subr.mxu0 0.0
        %769 = vmatpush1.msra.mxu0 %v753
        %770 = vmatprep.subr.mxu0 0.0
        %771 = vmatpush1.msra.mxu0 %v754
        %772 = vmatprep.subr.mxu0 0.0
        %773 = vmatpush1.msra.mxu0 %v755
        %774 = vmatprep.subr.mxu0 0.0
        %775 = vmatpush1.msra.mxu0 %v756
        %776 = vmatprep.subr.mxu0 0.0
        %777 = vmatpush1.msra.mxu0 0.0
        %778 = vmatprep.subr.mxu0 0.0
        %779 = vmatpush1.msra.mxu0 0.0
        %780 = vmatprep.subr.mxu0 0.0
        %781 = vmatpush1.msra.mxu0 0.0
        %782 = vmatprep.subr.mxu0 0.0
        %783 = vmatpush1.msra.mxu0 0.0
        %784 = vmatprep.subr.mxu0 0.0
        %785 = vmatpush1.msra.mxu0 0.0
        %786 = vmatprep.subr.mxu0 0.0
        %787 = vmatpush1.msra.mxu0 0.0
        %788 = vmatprep.subr.mxu0 0.0
        %789 = vmatpush1.msra.mxu0 0.0
        %790 = vmatprep.subr.mxu0 0.0
        %791 = vmatpush1.msra.mxu0 0.0
        %792 = vmatprep.subr.mxu0 0.0
        %793 = vmatpush1.msra.mxu0 0.0
        %794 = vmatprep.subr.mxu0 0.0
        %795 = vmatpush1.msra.mxu0 0.0
        %796 = vmatprep.subr.mxu0 0.0
        %797 = vmatpush1.msra.mxu0 0.0
        %798 = vmatprep.subr.mxu0 0.0
        %799 = vmatpush1.msra.mxu0 0.0
        %800 = vmatprep.subr.mxu0 0.0
        %801 = vmatpush1.msra.mxu0 0.0
        %802 = vmatprep.subr.mxu0 0.0
        %803 = vmatpush1.msra.mxu0 0.0
        %804 = vmatprep.subr.mxu0 0.0
        %805 = vmatpush1.msra.mxu0 0.0
        %806 = vmatprep.subr.mxu0 0.0
        %807 = vmatpush1.msra.mxu0 0.0
        %808 = vmatprep.subr.mxu0 0.0
        %809 = vmatpush1.msra.mxu0 0.0
        %810 = vmatprep.subr.mxu0 0.0
        %811 = vmatpush1.msra.mxu0 0.0
        %812 = vmatprep.subr.mxu0 0.0
        %813 = vmatpush1.msra.mxu0 0.0
        %814 = vmatprep.subr.mxu0 0.0
        %815 = vmatpush1.msra.mxu0 0.0
        %816 = vmatprep.subr.mxu0 0.0
        %817 = vmatpush1.msra.mxu0 0.0
        %818 = vmatprep.subr.mxu0 0.0
        %819 = vmatpush1.msra.mxu0 0.0
        %820 = vmatprep.subr.mxu0 0.0
        %821 = vmatpush1.msra.mxu0 0.0
        %822 = vmatprep.subr.mxu0 0.0
        %823 = vmatpush1.msra.mxu0 0.0
        %824 = vmatprep.subr.mxu0 0.0
        %825 = vmatpush1.msra.mxu0 0.0
        %826 = vmatprep.subr.mxu0 0.0
        %827 = vmatpush1.msra.mxu0 0.0
        %828 = vmatprep.subr.mxu0 0.0
        %829 = vmatpush1.msra.mxu0 0.0
        %830 = vmatprep.subr.mxu0 0.0
        %831 = vmatpush1.msra.mxu0 0.0
        %832 = vmatprep.mubr.f32.mxu0 0.0
        %833 = vmatmul.mubr.f32.gmra.mrb[0].mxu0 %v766
        %v834 = vpop.f32.mrb[0].mxu0
        %v835 = vadd.f32 %v762, %v834
        %v836 = vpop.f32.mrb[0].mxu0
        %837 = vdwg.mxu0
        %v838 = vmax.f32 %v835, 0.0
        %v839 = vld [vmem:[%s5] sm:$0xff]
        %v840 = vld [vmem:[%s5 + $0x8] sm:$0xff]
        %v841 = vld [vmem:[%s5 + $0x10] sm:$0xff]
        %v842 = vld [vmem:[%s5 + $0x18] sm:$0xff]
        %v843 = vld [vmem:[%s6] sm:$0x1]
        %v845 = vlaneseq
        %v846 = vshrl.u32 %v845, 7
        %v847 = vsub.s32 0, %v846
        %v848 = vrot.slane %v843, %v847
        %v851 = vsel %vm764, %v838, 0
        %853 = vmatprep.subr.mxu0 0.0
        %854 = vmatpush1.msra.mxu0 %v839
        %855 = vmatprep.subr.mxu0 0.0
        %856 = vmatpush1.msra.mxu0 %v840
        %857 = vmatprep.subr.mxu0 0.0
        %858 = vmatpush1.msra.mxu0 %v841
        %859 = vmatprep.subr.mxu0 0.0
        %860 = vmatpush1.msra.mxu0 %v842
        %861 = vmatprep.subr.mxu0 0.0
        %862 = vmatpush1.msra.mxu0 0.0
        %863 = vmatprep.subr.mxu0 0.0
        %864 = vmatpush1.msra.mxu0 0.0
        %865 = vmatprep.subr.mxu0 0.0
        %866 = vmatpush1.msra.mxu0 0.0
        %867 = vmatprep.subr.mxu0 0.0
        %868 = vmatpush1.msra.mxu0 0.0
        %869 = vmatprep.subr.mxu0 0.0
        %870 = vmatpush1.msra.mxu0 0.0
        %871 = vmatprep.subr.mxu0 0.0
        %872 = vmatpush1.msra.mxu0 0.0
        %873 = vmatprep.subr.mxu0 0.0
        %874 = vmatpush1.msra.mxu0 0.0
        %875 = vmatprep.subr.mxu0 0.0
        %876 = vmatpush1.msra.mxu0 0.0
        %877 = vmatprep.subr.mxu0 0.0
        %878 = vmatpush1.msra.mxu0 0.0
        %879 = vmatprep.subr.mxu0 0.0
        %880 = vmatpush1.msra.mxu0 0.0
        %881 = vmatprep.subr.mxu0 0.0
        %882 = vmatpush1.msra.mxu0 0.0
        %883 = vmatprep.subr.mxu0 0.0
        %884 = vmatpush1.msra.mxu0 0.0
        %885 = vmatprep.subr.mxu0 0.0
        %886 = vmatpush1.msra.mxu0 0.0
        %887 = vmatprep.subr.mxu0 0.0
        %888 = vmatpush1.msra.mxu0 0.0
        %889 = vmatprep.subr.mxu0 0.0
        %890 = vmatpush1.msra.mxu0 0.0
        %891 = vmatprep.subr.mxu0 0.0
        %892 = vmatpush1.msra.mxu0 0.0
        %893 = vmatprep.subr.mxu0 0.0
        %894 = vmatpush1.msra.mxu0 0.0
        %895 = vmatprep.subr.mxu0 0.0
        %896 = vmatpush1.msra.mxu0 0.0
        %897 = vmatprep.subr.mxu0 0.0
        %898 = vmatpush1.msra.mxu0 0.0
        %899 = vmatprep.subr.mxu0 0.0
        %900 = vmatpush1.msra.mxu0 0.0
        %901 = vmatprep.subr.mxu0 0.0
        %902 = vmatpush1.msra.mxu0 0.0
        %903 = vmatprep.subr.mxu0 0.0
        %904 = vmatpush1.msra.mxu0 0.0
        %905 = vmatprep.subr.mxu0 0.0
        %906 = vmatpush1.msra.mxu0 0.0
        %907 = vmatprep.subr.mxu0 0.0
        %908 = vmatpush1.msra.mxu0 0.0
        %909 = vmatprep.subr.mxu0 0.0
        %910 = vmatpush1.msra.mxu0 0.0
        %911 = vmatprep.subr.mxu0 0.0
        %912 = vmatpush1.msra.mxu0 0.0
        %913 = vmatprep.subr.mxu0 0.0
        %914 = vmatpush1.msra.mxu0 0.0
        %915 = vmatprep.subr.mxu0 0.0
        %916 = vmatpush1.msra.mxu0 0.0
        %917 = vmatprep.mubr.f32.mxu0 0.0
        %918 = vmatmul.mubr.f32.gmra.mrb[0].mxu0 %v851
        %v919 = vpop.f32.mrb[0].mxu0
        %v920 = vadd.f32 %v848, %v919
        %v921 = vpop.f32.mrb[0].mxu0
        %922 = vdwg.mxu0
        %v923 = vlaneseq
        %v924 = vand.u32 %v923, 127
        %vm925 = vcmp.ge.s32.totalorder %v924, 16
        %v926 = vsub.s32 %v924, 16
        %v927 = vsel %vm925, %v926, %v924
        %vm928 = vcmask 125952
        %v929 = vsel %vm928, %v920, -inf
        %930 = vmax.xlane.f32.xlu0 %v929
        %v931 = vpop.xlane.xlu0 %930
        %vm932 = vcmp.eq.f32.partialorder %v920, %v931
        %v933 = vsel %vm932, %v924, 16
        %v934 = vsel %vm928, %v933, 2147483647
        %v935 = vand.u32 %v934, 65535
        %v936 = vshra.s32 %v934, 16
        %v937 = vcvt.s32.f32 %v935
        %v938 = vcvt.s32.f32 %v936
        %939 = vmin.xlane.f32.xlu0 %v938
        %v940 = vpop.xlane.xlu0 %939
        %vm941 = vcmp.eq.f32.partialorder %v938, %v940
        %v942 = vsel %vm941, %v937, inf
        %943 = vmin.xlane.f32.xlu0 %v942
        %v944 = vpop.xlane.xlu0 %943
        %v945 = vcvt.f32.s32 %v944
        %v946 = vcvt.f32.s32 %v940
        %v947 = vshll.u32 %v946, 16
        %v948 = vadd.s32 %v947, %v945
        %vm949 = vcmp.eq.s32.totalorder %v927, %v948
        %v950 = vsel %vm949, 1.0, 0.0
        %vm951 = vcmp.eq.s32.totalorder %v924, %v948
        %v952 = vsel %vm951, -1e+30, %v920
        %v953 = vsel %vm928, %v952, -inf
        %954 = vmax.xlane.f32.xlu0 %v953
        %v955 = vpop.xlane.xlu0 %954
        %vm956 = vcmp.eq.f32.partialorder %v952, %v955
        %v957 = vsel %vm956, %v924, 16
        %v958 = vsel %vm928, %v957, 2147483647
        %v959 = vand.u32 %v958, 65535
        %v960 = vshra.s32 %v958, 16
        %v961 = vcvt.s32.f32 %v959
        %v962 = vcvt.s32.f32 %v960
        %963 = vmin.xlane.f32.xlu0 %v962
        %v964 = vpop.xlane.xlu0 %963
        %vm965 = vcmp.eq.f32.partialorder %v962, %v964
        %v966 = vsel %vm965, %v961, inf
        %967 = vmin.xlane.f32.xlu0 %v966
        %v968 = vpop.xlane.xlu0 %967
        %v969 = vcvt.f32.s32 %v968
        %v970 = vcvt.f32.s32 %v964
        %v971 = vshll.u32 %v970, 16
        %v972 = vadd.s32 %v971, %v969
        %vm973 = vcmp.eq.s32.totalorder %v927, %v972
        %v974 = vsel %vm973, 1.0, %v950
        %vm975 = vcmp.eq.s32.totalorder %v924, %v972
        %v976 = vsel %vm975, -1e+30, %v952
        %v977 = vsel %vm928, %v976, -inf
        %978 = vmax.xlane.f32.xlu0 %v977
        %v979 = vpop.xlane.xlu0 %978
        %vm980 = vcmp.eq.f32.partialorder %v976, %v979
        %v981 = vsel %vm980, %v924, 16
        %v982 = vsel %vm928, %v981, 2147483647
        %v983 = vand.u32 %v982, 65535
        %v984 = vshra.s32 %v982, 16
        %v985 = vcvt.s32.f32 %v983
        %v986 = vcvt.s32.f32 %v984
        %987 = vmin.xlane.f32.xlu0 %v986
        %v988 = vpop.xlane.xlu0 %987
        %vm989 = vcmp.eq.f32.partialorder %v986, %v988
        %v990 = vsel %vm989, %v985, inf
        %991 = vmin.xlane.f32.xlu0 %v990
        %v992 = vpop.xlane.xlu0 %991
        %v993 = vcvt.f32.s32 %v992
        %v994 = vcvt.f32.s32 %v988
        %v995 = vshll.u32 %v994, 16
        %v996 = vadd.s32 %v995, %v993
        %vm997 = vcmp.eq.s32.totalorder %v927, %v996
        %v998 = vsel %vm997, 1.0, %v974
        %vm999 = vcmp.eq.s32.totalorder %v924, %v996
        %v1000 = vsel %vm999, -1e+30, %v976
        %v1001 = vsel %vm928, %v1000, -inf
        %1002 = vmax.xlane.f32.xlu0 %v1001
        %v1003 = vpop.xlane.xlu0 %1002
        %vm1004 = vcmp.eq.f32.partialorder %v1000, %v1003
        %v1005 = vsel %vm1004, %v924, 16
        %v1006 = vsel %vm928, %v1005, 2147483647
        %v1007 = vand.u32 %v1006, 65535
        %v1008 = vshra.s32 %v1006, 16
        %v1009 = vcvt.s32.f32 %v1007
        %v1010 = vcvt.s32.f32 %v1008
        %1011 = vmin.xlane.f32.xlu0 %v1010
        %v1012 = vpop.xlane.xlu0 %1011
        %vm1013 = vcmp.eq.f32.partialorder %v1010, %v1012
        %v1014 = vsel %vm1013, %v1009, inf
        %1015 = vmin.xlane.f32.xlu0 %v1014
        %v1016 = vpop.xlane.xlu0 %1015
        %v1017 = vcvt.f32.s32 %v1016
        %v1018 = vcvt.f32.s32 %v1012
        %v1019 = vshll.u32 %v1018, 16
        %v1020 = vadd.s32 %v1019, %v1017
        %vm1021 = vcmp.eq.s32.totalorder %v927, %v1020
        %v1022 = vsel %vm1021, 1.0, %v998
        %v1023 = vmul.f32 %v752, %v1022
        %v1024 = vld [vmem:[%s7] sm:$0xff]
        %v1025 = vld [vmem:[%s7 + $0x8] sm:$0xff]
        %v1027 = vsel %vm764, %v1024, 0
        %v1030 = vsel %vm764, %v1025, 0
        %v1033 = vsel %vm764, %v1023, 0
        %1035 = vmatprep.subr.mxu0 0.0
        %1036 = vmatpush1.xpose.msra.mxu0 %v1033
        %1037 = vmatprep.subr.mxu0 0.0
        %1038 = vmatpush1.xpose.msra.mxu0 0.0
        %1039 = vmatprep.subr.mxu0 0.0
        %1040 = vmatpush1.xpose.msra.mxu0 0.0
        %1041 = vmatprep.subr.mxu0 0.0
        %1042 = vmatpush1.xpose.msra.mxu0 0.0
        %1043 = vmatprep.subr.mxu0 0.0
        %1044 = vmatpush1.xpose.msra.mxu0 0.0
        %1045 = vmatprep.subr.mxu0 0.0
        %1046 = vmatpush1.xpose.msra.mxu0 0.0
        %1047 = vmatprep.subr.mxu0 0.0
        %1048 = vmatpush1.xpose.msra.mxu0 0.0
        %1049 = vmatprep.subr.mxu0 0.0
        %1050 = vmatpush1.xpose.msra.mxu0 0.0
        %1051 = vmatprep.subr.mxu0 0.0
        %1052 = vmatpush1.xpose.msra.mxu0 0.0
        %1053 = vmatprep.subr.mxu0 0.0
        %1054 = vmatpush1.xpose.msra.mxu0 0.0
        %1055 = vmatprep.subr.mxu0 0.0
        %1056 = vmatpush1.xpose.msra.mxu0 0.0
        %1057 = vmatprep.subr.mxu0 0.0
        %1058 = vmatpush1.xpose.msra.mxu0 0.0
        %1059 = vmatprep.subr.mxu0 0.0
        %1060 = vmatpush1.xpose.msra.mxu0 0.0
        %1061 = vmatprep.subr.mxu0 0.0
        %1062 = vmatpush1.xpose.msra.mxu0 0.0
        %1063 = vmatprep.subr.mxu0 0.0
        %1064 = vmatpush1.xpose.msra.mxu0 0.0
        %1065 = vmatprep.subr.mxu0 0.0
        %1066 = vmatpush1.xpose.msra.mxu0 0.0
        %1067 = vmatprep.subr.mxu0 0.0
        %1068 = vmatpush1.xpose.msra.mxu0 0.0
        %1069 = vmatprep.subr.mxu0 0.0
        %1070 = vmatpush1.xpose.msra.mxu0 0.0
        %1071 = vmatprep.subr.mxu0 0.0
        %1072 = vmatpush1.xpose.msra.mxu0 0.0
        %1073 = vmatprep.subr.mxu0 0.0
        %1074 = vmatpush1.xpose.msra.mxu0 0.0
        %1075 = vmatprep.subr.mxu0 0.0
        %1076 = vmatpush1.xpose.msra.mxu0 0.0
        %1077 = vmatprep.subr.mxu0 0.0
        %1078 = vmatpush1.xpose.msra.mxu0 0.0
        %1079 = vmatprep.subr.mxu0 0.0
        %1080 = vmatpush1.xpose.msra.mxu0 0.0
        %1081 = vmatprep.subr.mxu0 0.0
        %1082 = vmatpush1.xpose.msra.mxu0 0.0
        %1083 = vmatprep.subr.mxu0 0.0
        %1084 = vmatpush1.xpose.msra.mxu0 0.0
        %1085 = vmatprep.subr.mxu0 0.0
        %1086 = vmatpush1.xpose.msra.mxu0 0.0
        %1087 = vmatprep.subr.mxu0 0.0
        %1088 = vmatpush1.xpose.msra.mxu0 0.0
        %1089 = vmatprep.subr.mxu0 0.0
        %1090 = vmatpush1.xpose.msra.mxu0 0.0
        %1091 = vmatprep.subr.mxu0 0.0
        %1092 = vmatpush1.xpose.msra.mxu0 0.0
        %1093 = vmatprep.subr.mxu0 0.0
        %1094 = vmatpush1.xpose.msra.mxu0 0.0
        %1095 = vmatprep.subr.mxu0 0.0
        %1096 = vmatpush1.xpose.msra.mxu0 0.0
        %1097 = vmatprep.subr.mxu0 0.0
        %1098 = vmatpush1.xpose.msra.mxu0 0.0
        %1099 = vmatprep.mubr.f32.mxu0 0.0
        %1100 = vmatmul.mubr.f32.gmra.mrb[0].mxu0 %v1027
        %v1101 = vpop.f32.mrb[0].mxu0
        %v1102 = vadd.f32 0.0, %v1101
        %v1103 = vpop.f32.mrb[0].mxu0
        %1104 = vmatprep.mubr.f32.mxu0 0.0
        %1105 = vmatmul.mubr.f32.gmra.mrb[0].mxu0 %v1030
        %v1106 = vpop.f32.mrb[0].mxu0
        %v1107 = vadd.f32 0.0, %v1106
        %v1108 = vpop.f32.mrb[0].mxu0
        %1109 = vdwg.mxu0
        %vm1110 = vcmask 31744
        %1111 = vst.msk [vmem:[%s751] sm:$0xff] %vm1110, %v1102
        %1112 = vst.msk [vmem:[%s751 + $0x8] sm:$0xff] %vm1110, %v1107
        %v1113 = vld [vmem:[%s746] sm:$0x1]
        %v1114 = vld [vmem:[%s8] sm:$0x3f]
        %v1115 = vld [vmem:[%s9] sm:$0x1]
        %vm1116 = vcmask 48128
        %v1118 = vsel %vm1116, %v1113, 0
        %vm1120 = vcmask 1045504
        %v1122 = vsel %vm1120, %v1114, 0
        %1124 = vmatprep.subr.mxu0 0.0
        %1125 = vmatpush1.msra.mxu0 %v1122
        %1126 = vmatprep.subr.mxu0 0.0
        %1127 = vmatpush1.msra.mxu0 0.0
        %1128 = vmatprep.subr.mxu0 0.0
        %1129 = vmatpush1.msra.mxu0 0.0
        %1130 = vmatprep.subr.mxu0 0.0
        %1131 = vmatpush1.msra.mxu0 0.0
        %1132 = vmatprep.subr.mxu0 0.0
        %1133 = vmatpush1.msra.mxu0 0.0
        %1134 = vmatprep.subr.mxu0 0.0
        %1135 = vmatpush1.msra.mxu0 0.0
        %1136 = vmatprep.subr.mxu0 0.0
        %1137 = vmatpush1.msra.mxu0 0.0
        %1138 = vmatprep.subr.mxu0 0.0
        %1139 = vmatpush1.msra.mxu0 0.0
        %1140 = vmatprep.subr.mxu0 0.0
        %1141 = vmatpush1.msra.mxu0 0.0
        %1142 = vmatprep.subr.mxu0 0.0
        %1143 = vmatpush1.msra.mxu0 0.0
        %1144 = vmatprep.subr.mxu0 0.0
        %1145 = vmatpush1.msra.mxu0 0.0
        %1146 = vmatprep.subr.mxu0 0.0
        %1147 = vmatpush1.msra.mxu0 0.0
        %1148 = vmatprep.subr.mxu0 0.0
        %1149 = vmatpush1.msra.mxu0 0.0
        %1150 = vmatprep.subr.mxu0 0.0
        %1151 = vmatpush1.msra.mxu0 0.0
        %1152 = vmatprep.subr.mxu0 0.0
        %1153 = vmatpush1.msra.mxu0 0.0
        %1154 = vmatprep.subr.mxu0 0.0
        %1155 = vmatpush1.msra.mxu0 0.0
        %1156 = vmatprep.subr.mxu0 0.0
        %1157 = vmatpush1.msra.mxu0 0.0
        %1158 = vmatprep.subr.mxu0 0.0
        %1159 = vmatpush1.msra.mxu0 0.0
        %1160 = vmatprep.subr.mxu0 0.0
        %1161 = vmatpush1.msra.mxu0 0.0
        %1162 = vmatprep.subr.mxu0 0.0
        %1163 = vmatpush1.msra.mxu0 0.0
        %1164 = vmatprep.subr.mxu0 0.0
        %1165 = vmatpush1.msra.mxu0 0.0
        %1166 = vmatprep.subr.mxu0 0.0
        %1167 = vmatpush1.msra.mxu0 0.0
        %1168 = vmatprep.subr.mxu0 0.0
        %1169 = vmatpush1.msra.mxu0 0.0
        %1170 = vmatprep.subr.mxu0 0.0
        %1171 = vmatpush1.msra.mxu0 0.0
        %1172 = vmatprep.subr.mxu0 0.0
        %1173 = vmatpush1.msra.mxu0 0.0
        %1174 = vmatprep.subr.mxu0 0.0
        %1175 = vmatpush1.msra.mxu0 0.0
        %1176 = vmatprep.subr.mxu0 0.0
        %1177 = vmatpush1.msra.mxu0 0.0
        %1178 = vmatprep.subr.mxu0 0.0
        %1179 = vmatpush1.msra.mxu0 0.0
        %1180 = vmatprep.subr.mxu0 0.0
        %1181 = vmatpush1.msra.mxu0 0.0
        %1182 = vmatprep.subr.mxu0 0.0
        %1183 = vmatpush1.msra.mxu0 0.0
        %1184 = vmatprep.subr.mxu0 0.0
        %1185 = vmatpush1.msra.mxu0 0.0
        %1186 = vmatprep.subr.mxu0 0.0
        %1187 = vmatpush1.msra.mxu0 0.0
        %1188 = vmatprep.mubr.f32.mxu0 0.0
        %1189 = vmatmul.mubr.f32.gmra.mrb[0].mxu0 %v1118
        %v1190 = vpop.f32.mrb[0].mxu0
        %v1191 = vadd.f32 %v1115, %v1190
        %v1192 = vpop.f32.mrb[0].mxu0
        %1193 = vdwg.mxu0
        %v1194 = vmax.f32 %v1191, 0.0
        %v1195 = vld [vmem:[%s10] sm:$0xff]
        %v1196 = vld [vmem:[%s10 + $0x8] sm:$0xff]
        %v1197 = vld [vmem:[%s11] sm:$0x1]
        %vm1198 = vcmask 130048
        %v1200 = vsel %vm1198, %v1194, 0
        %1202 = vmatprep.subr.mxu0 0.0
        %1203 = vmatpush1.msra.mxu0 %v1195
        %1204 = vmatprep.subr.mxu0 0.0
        %1205 = vmatpush1.msra.mxu0 %v1196
        %1206 = vmatprep.subr.mxu0 0.0
        %1207 = vmatpush1.msra.mxu0 0.0
        %1208 = vmatprep.subr.mxu0 0.0
        %1209 = vmatpush1.msra.mxu0 0.0
        %1210 = vmatprep.subr.mxu0 0.0
        %1211 = vmatpush1.msra.mxu0 0.0
        %1212 = vmatprep.subr.mxu0 0.0
        %1213 = vmatpush1.msra.mxu0 0.0
        %1214 = vmatprep.subr.mxu0 0.0
        %1215 = vmatpush1.msra.mxu0 0.0
        %1216 = vmatprep.subr.mxu0 0.0
        %1217 = vmatpush1.msra.mxu0 0.0
        %1218 = vmatprep.subr.mxu0 0.0
        %1219 = vmatpush1.msra.mxu0 0.0
        %1220 = vmatprep.subr.mxu0 0.0
        %1221 = vmatpush1.msra.mxu0 0.0
        %1222 = vmatprep.subr.mxu0 0.0
        %1223 = vmatpush1.msra.mxu0 0.0
        %1224 = vmatprep.subr.mxu0 0.0
        %1225 = vmatpush1.msra.mxu0 0.0
        %1226 = vmatprep.subr.mxu0 0.0
        %1227 = vmatpush1.msra.mxu0 0.0
        %1228 = vmatprep.subr.mxu0 0.0
        %1229 = vmatpush1.msra.mxu0 0.0
        %1230 = vmatprep.subr.mxu0 0.0
        %1231 = vmatpush1.msra.mxu0 0.0
        %1232 = vmatprep.subr.mxu0 0.0
        %1233 = vmatpush1.msra.mxu0 0.0
        %1234 = vmatprep.subr.mxu0 0.0
        %1235 = vmatpush1.msra.mxu0 0.0
        %1236 = vmatprep.subr.mxu0 0.0
        %1237 = vmatpush1.msra.mxu0 0.0
        %1238 = vmatprep.subr.mxu0 0.0
        %1239 = vmatpush1.msra.mxu0 0.0
        %1240 = vmatprep.subr.mxu0 0.0
        %1241 = vmatpush1.msra.mxu0 0.0
        %1242 = vmatprep.subr.mxu0 0.0
        %1243 = vmatpush1.msra.mxu0 0.0
        %1244 = vmatprep.subr.mxu0 0.0
        %1245 = vmatpush1.msra.mxu0 0.0
        %1246 = vmatprep.subr.mxu0 0.0
        %1247 = vmatpush1.msra.mxu0 0.0
        %1248 = vmatprep.subr.mxu0 0.0
        %1249 = vmatpush1.msra.mxu0 0.0
        %1250 = vmatprep.subr.mxu0 0.0
        %1251 = vmatpush1.msra.mxu0 0.0
        %1252 = vmatprep.subr.mxu0 0.0
        %1253 = vmatpush1.msra.mxu0 0.0
        %1254 = vmatprep.subr.mxu0 0.0
        %1255 = vmatpush1.msra.mxu0 0.0
        %1256 = vmatprep.subr.mxu0 0.0
        %1257 = vmatpush1.msra.mxu0 0.0
        %1258 = vmatprep.subr.mxu0 0.0
        %1259 = vmatpush1.msra.mxu0 0.0
        %1260 = vmatprep.subr.mxu0 0.0
        %1261 = vmatpush1.msra.mxu0 0.0
        %1262 = vmatprep.subr.mxu0 0.0
        %1263 = vmatpush1.msra.mxu0 0.0
        %1264 = vmatprep.subr.mxu0 0.0
        %1265 = vmatpush1.msra.mxu0 0.0
        %1266 = vmatprep.mubr.f32.mxu0 0.0
        %1267 = vmatmul.mubr.f32.gmra.mrb[0].mxu0 %v1200
        %v1268 = vpop.f32.mrb[0].mxu0
        %v1269 = vadd.f32 %v1197, %v1268
        %v1270 = vpop.f32.mrb[0].mxu0
        %1271 = vdwg.mxu0
        %v1272 = vld [vmem:[%s743] sm:$0xff]
        %v1273 = vld [vmem:[%s743 + $0x8] sm:$0xff]
        %v1274 = vld [vmem:[%s12] sm:$0x7]
        %v1275 = vld [vmem:[%s13] sm:$0xf]
        %v1277 = vsel %vm1110, %v1102, 0
        %v1280 = vsel %vm1110, %v1107, 0
        %vm1282 = vcmask 1043456
        %v1284 = vsel %vm1282, %v1275, 0
        %1286 = vmatprep.subr.mxu0 0.0
        %1287 = vmatpush1.msra.mxu0 %v1284
        %1288 = vmatprep.subr.mxu0 0.0
        %1289 = vmatpush1.msra.mxu0 0.0
        %1290 = vmatprep.subr.mxu0 0.0
        %1291 = vmatpush1.msra.mxu0 0.0
        %1292 = vmatprep.subr.mxu0 0.0
        %1293 = vmatpush1.msra.mxu0 0.0
        %1294 = vmatprep.subr.mxu0 0.0
        %1295 = vmatpush1.msra.mxu0 0.0
        %1296 = vmatprep.subr.mxu0 0.0
        %1297 = vmatpush1.msra.mxu0 0.0
        %1298 = vmatprep.subr.mxu0 0.0
        %1299 = vmatpush1.msra.mxu0 0.0
        %1300 = vmatprep.subr.mxu0 0.0
        %1301 = vmatpush1.msra.mxu0 0.0
        %1302 = vmatprep.subr.mxu0 0.0
        %1303 = vmatpush1.msra.mxu0 0.0
        %1304 = vmatprep.subr.mxu0 0.0
        %1305 = vmatpush1.msra.mxu0 0.0
        %1306 = vmatprep.subr.mxu0 0.0
        %1307 = vmatpush1.msra.mxu0 0.0
        %1308 = vmatprep.subr.mxu0 0.0
        %1309 = vmatpush1.msra.mxu0 0.0
        %1310 = vmatprep.subr.mxu0 0.0
        %1311 = vmatpush1.msra.mxu0 0.0
        %1312 = vmatprep.subr.mxu0 0.0
        %1313 = vmatpush1.msra.mxu0 0.0
        %1314 = vmatprep.subr.mxu0 0.0
        %1315 = vmatpush1.msra.mxu0 0.0
        %1316 = vmatprep.subr.mxu0 0.0
        %1317 = vmatpush1.msra.mxu0 0.0
        %1318 = vmatprep.subr.mxu0 0.0
        %1319 = vmatpush1.msra.mxu0 0.0
        %1320 = vmatprep.subr.mxu0 0.0
        %1321 = vmatpush1.msra.mxu0 0.0
        %1322 = vmatprep.subr.mxu0 0.0
        %1323 = vmatpush1.msra.mxu0 0.0
        %1324 = vmatprep.subr.mxu0 0.0
        %1325 = vmatpush1.msra.mxu0 0.0
        %1326 = vmatprep.subr.mxu0 0.0
        %1327 = vmatpush1.msra.mxu0 0.0
        %1328 = vmatprep.subr.mxu0 0.0
        %1329 = vmatpush1.msra.mxu0 0.0
        %1330 = vmatprep.subr.mxu0 0.0
        %1331 = vmatpush1.msra.mxu0 0.0
        %1332 = vmatprep.subr.mxu0 0.0
        %1333 = vmatpush1.msra.mxu0 0.0
        %1334 = vmatprep.subr.mxu0 0.0
        %1335 = vmatpush1.msra.mxu0 0.0
        %1336 = vmatprep.subr.mxu0 0.0
        %1337 = vmatpush1.msra.mxu0 0.0
        %1338 = vmatprep.subr.mxu0 0.0
        %1339 = vmatpush1.msra.mxu0 0.0
        %1340 = vmatprep.subr.mxu0 0.0
        %1341 = vmatpush1.msra.mxu0 0.0
        %1342 = vmatprep.subr.mxu0 0.0
        %1343 = vmatpush1.msra.mxu0 0.0
        %1344 = vmatprep.subr.mxu0 0.0
        %1345 = vmatpush1.msra.mxu0 0.0
        %1346 = vmatprep.subr.mxu0 0.0
        %1347 = vmatpush1.msra.mxu0 0.0
        %1348 = vmatprep.subr.mxu0 0.0
        %1349 = vmatpush1.msra.mxu0 0.0
        %1350 = vmatprep.mubr.f32.mxu0 0.0
        %1351 = vmatmul.mubr.f32.gmra.mrb[0].mxu0 %v1277
        %v1352 = vpop.f32.mrb[0].mxu0
        %v1353 = vadd.f32 0.0, %v1352
        %v1354 = vpop.f32.mrb[0].mxu0
        %1355 = vmatprep.mubr.f32.mxu0 0.0
        %1356 = vmatmul.mubr.f32.gmra.mrb[0].mxu0 %v1280
        %v1357 = vpop.f32.mrb[0].mxu0
        %v1358 = vadd.f32 0.0, %v1357
        %v1359 = vpop.f32.mrb[0].mxu0
        %1360 = vdwg.mxu0
        %vm1361 = vcmask 23552
        %v1363 = vsel %vm1361, %v1272, 0
        %v1366 = vsel %vm1361, %v1273, 0
        %vm1368 = vcmask 1042432
        %v1370 = vsel %vm1368, %v1274, 0
        %1372 = vmatprep.subr.mxu0 0.0
        %1373 = vmatpush1.msra.mxu0 %v1370
        %1374 = vmatprep.subr.mxu0 0.0
        %1375 = vmatpush1.msra.mxu0 0.0
        %1376 = vmatprep.subr.mxu0 0.0
        %1377 = vmatpush1.msra.mxu0 0.0
        %1378 = vmatprep.subr.mxu0 0.0
        %1379 = vmatpush1.msra.mxu0 0.0
        %1380 = vmatprep.subr.mxu0 0.0
        %1381 = vmatpush1.msra.mxu0 0.0
        %1382 = vmatprep.subr.mxu0 0.0
        %1383 = vmatpush1.msra.mxu0 0.0
        %1384 = vmatprep.subr.mxu0 0.0
        %1385 = vmatpush1.msra.mxu0 0.0
        %1386 = vmatprep.subr.mxu0 0.0
        %1387 = vmatpush1.msra.mxu0 0.0
        %1388 = vmatprep.subr.mxu0 0.0
        %1389 = vmatpush1.msra.mxu0 0.0
        %1390 = vmatprep.subr.mxu0 0.0
        %1391 = vmatpush1.msra.mxu0 0.0
        %1392 = vmatprep.subr.mxu0 0.0
        %1393 = vmatpush1.msra.mxu0 0.0
        %1394 = vmatprep.subr.mxu0 0.0
        %1395 = vmatpush1.msra.mxu0 0.0
        %1396 = vmatprep.subr.mxu0 0.0
        %1397 = vmatpush1.msra.mxu0 0.0
        %1398 = vmatprep.subr.mxu0 0.0
        %1399 = vmatpush1.msra.mxu0 0.0
        %1400 = vmatprep.subr.mxu0 0.0
        %1401 = vmatpush1.msra.mxu0 0.0
        %1402 = vmatprep.subr.mxu0 0.0
        %1403 = vmatpush1.msra.mxu0 0.0
        %1404 = vmatprep.subr.mxu0 0.0
        %1405 = vmatpush1.msra.mxu0 0.0
        %1406 = vmatprep.subr.mxu0 0.0
        %1407 = vmatpush1.msra.mxu0 0.0
        %1408 = vmatprep.subr.mxu0 0.0
        %1409 = vmatpush1.msra.mxu0 0.0
        %1410 = vmatprep.subr.mxu0 0.0
        %1411 = vmatpush1.msra.mxu0 0.0
        %1412 = vmatprep.subr.mxu0 0.0
        %1413 = vmatpush1.msra.mxu0 0.0
        %1414 = vmatprep.subr.mxu0 0.0
        %1415 = vmatpush1.msra.mxu0 0.0
        %1416 = vmatprep.subr.mxu0 0.0
        %1417 = vmatpush1.msra.mxu0 0.0
        %1418 = vmatprep.subr.mxu0 0.0
        %1419 = vmatpush1.msra.mxu0 0.0
        %1420 = vmatprep.subr.mxu0 0.0
        %1421 = vmatpush1.msra.mxu0 0.0
        %1422 = vmatprep.subr.mxu0 0.0
        %1423 = vmatpush1.msra.mxu0 0.0
        %1424 = vmatprep.subr.mxu0 0.0
        %1425 = vmatpush1.msra.mxu0 0.0
        %1426 = vmatprep.subr.mxu0 0.0
        %1427 = vmatpush1.msra.mxu0 0.0
        %1428 = vmatprep.subr.mxu0 0.0
        %1429 = vmatpush1.msra.mxu0 0.0
        %1430 = vmatprep.subr.mxu0 0.0
        %1431 = vmatpush1.msra.mxu0 0.0
        %1432 = vmatprep.subr.mxu0 0.0
        %1433 = vmatpush1.msra.mxu0 0.0
        %1434 = vmatprep.subr.mxu0 0.0
        %1435 = vmatpush1.msra.mxu0 0.0
        %1436 = vmatprep.mubr.f32.mxu0 0.0
        %1437 = vmatmul.mubr.f32.gmra.mrb[0].mxu0 %v1363
        %v1438 = vpop.f32.mrb[0].mxu0
        %v1439 = vadd.f32 %v1353, %v1438
        %v1440 = vpop.f32.mrb[0].mxu0
        %1441 = vmatprep.mubr.f32.mxu0 0.0
        %1442 = vmatmul.mubr.f32.gmra.mrb[0].mxu0 %v1366
        %v1443 = vpop.f32.mrb[0].mxu0
        %v1444 = vadd.f32 %v1358, %v1443
        %v1445 = vpop.f32.mrb[0].mxu0
        %1446 = vdwg.mxu0
        %v1447 = vld [vmem:[%s14] sm:$0x1]
        %v1449 = vlaneseq
        %v1450 = vshrl.u32 %v1449, 7
        %v1451 = vsub.s32 0, %v1450
        %v1452 = vrot.slane %v1447, %v1451
        %v1454 = vadd.f32 %v1439, %v1452
        %v1455 = vadd.f32 %v1444, %v1452
        %v1456 = vld [vmem:[%s15] sm:$0xff]
        %v1457 = vld [vmem:[%s15 + $0x8] sm:$0xff]
        %v1458 = vld [vmem:[%s15 + $0x10] sm:$0xff]
        %v1459 = vld [vmem:[%s15 + $0x18] sm:$0xff]
        %v1460 = vld [vmem:[%s16] sm:$0x1]
        %v1462 = vsel %vm764, 0.0, 0
        %1464 = vmatprep.subr.mxu0 0.0
        %1465 = vmatpush1.msra.mxu0 %v1456
        %1466 = vmatprep.subr.mxu0 0.0
        %1467 = vmatpush1.msra.mxu0 %v1457
        %1468 = vmatprep.subr.mxu0 0.0
        %1469 = vmatpush1.msra.mxu0 %v1458
        %1470 = vmatprep.subr.mxu0 0.0
        %1471 = vmatpush1.msra.mxu0 %v1459
        %1472 = vmatprep.subr.mxu0 0.0
        %1473 = vmatpush1.msra.mxu0 0.0
        %1474 = vmatprep.subr.mxu0 0.0
        %1475 = vmatpush1.msra.mxu0 0.0
        %1476 = vmatprep.subr.mxu0 0.0
        %1477 = vmatpush1.msra.mxu0 0.0
        %1478 = vmatprep.subr.mxu0 0.0
        %1479 = vmatpush1.msra.mxu0 0.0
        %1480 = vmatprep.subr.mxu0 0.0
        %1481 = vmatpush1.msra.mxu0 0.0
        %1482 = vmatprep.subr.mxu0 0.0
        %1483 = vmatpush1.msra.mxu0 0.0
        %1484 = vmatprep.subr.mxu0 0.0
        %1485 = vmatpush1.msra.mxu0 0.0
        %1486 = vmatprep.subr.mxu0 0.0
        %1487 = vmatpush1.msra.mxu0 0.0
        %1488 = vmatprep.subr.mxu0 0.0
        %1489 = vmatpush1.msra.mxu0 0.0
        %1490 = vmatprep.subr.mxu0 0.0
        %1491 = vmatpush1.msra.mxu0 0.0
        %1492 = vmatprep.subr.mxu0 0.0
        %1493 = vmatpush1.msra.mxu0 0.0
        %1494 = vmatprep.subr.mxu0 0.0
        %1495 = vmatpush1.msra.mxu0 0.0
        %1496 = vmatprep.subr.mxu0 0.0
        %1497 = vmatpush1.msra.mxu0 0.0
        %1498 = vmatprep.subr.mxu0 0.0
        %1499 = vmatpush1.msra.mxu0 0.0
        %1500 = vmatprep.subr.mxu0 0.0
        %1501 = vmatpush1.msra.mxu0 0.0
        %1502 = vmatprep.subr.mxu0 0.0
        %1503 = vmatpush1.msra.mxu0 0.0
        %1504 = vmatprep.subr.mxu0 0.0
        %1505 = vmatpush1.msra.mxu0 0.0
        %1506 = vmatprep.subr.mxu0 0.0
        %1507 = vmatpush1.msra.mxu0 0.0
        %1508 = vmatprep.subr.mxu0 0.0
        %1509 = vmatpush1.msra.mxu0 0.0
        %1510 = vmatprep.subr.mxu0 0.0
        %1511 = vmatpush1.msra.mxu0 0.0
        %1512 = vmatprep.subr.mxu0 0.0
        %1513 = vmatpush1.msra.mxu0 0.0
        %1514 = vmatprep.subr.mxu0 0.0
        %1515 = vmatpush1.msra.mxu0 0.0
        %1516 = vmatprep.subr.mxu0 0.0
        %1517 = vmatpush1.msra.mxu0 0.0
        %1518 = vmatprep.subr.mxu0 0.0
        %1519 = vmatpush1.msra.mxu0 0.0
        %1520 = vmatprep.subr.mxu0 0.0
        %1521 = vmatpush1.msra.mxu0 0.0
        %1522 = vmatprep.subr.mxu0 0.0
        %1523 = vmatpush1.msra.mxu0 0.0
        %1524 = vmatprep.subr.mxu0 0.0
        %1525 = vmatpush1.msra.mxu0 0.0
        %1526 = vmatprep.subr.mxu0 0.0
        %1527 = vmatpush1.msra.mxu0 0.0
        %1528 = vmatprep.mubr.f32.mxu0 0.0
        %1529 = vmatmul.mubr.f32.gmra.mrb[0].mxu0 %v1462
        %v1530 = vpop.f32.mrb[0].mxu0
        %v1531 = vadd.f32 %v1460, %v1530
        %v1532 = vpop.f32.mrb[0].mxu0
        %1533 = vdwg.mxu0
        %v1534 = vadd.f32 %v1454, %v1531
        %v1535 = vxor.u32 %v1534, 2147483648
        %v1536 = vmul.f32 %v1535, 1.442695
        %v1537 = vpow.pop %v1536
        %v1538 = vadd.f32 %v1537, 1.0
        %v1539 = vrcp.pop %v1538
        %v1540 = vmul.f32 1.0, %v1539
        %1542 = vrot.lane.b32.xlu0 %v1531, 64
        %v1543 = vpop.permute.xlu0 %1542
        %v1545 = vmul.f32 %v1540, %v1543
        %1547 = vrot.lane.b32.xlu0 %v1545, 64
        %v1548 = vpop.permute.xlu0 %1547
        %v1550 = vadd.f32 %v1454, %v1548
        %v1551 = vtanh.pop %v1550
        %v1552 = vsub.f32 1.0, %v1540
        %1554 = vrot.lane.b32.xlu0 %v1551, 96
        %v1555 = vpop.permute.xlu0 %1554
        %v1557 = vmul.f32 %v1552, %v1555
        %v1558 = vmul.f32 %v1540, 0.0
        %v1559 = vadd.f32 %v1557, %v1558
        %1561 = vrot.lane.b32.xlu0 %v1559, 96
        %v1562 = vpop.permute.xlu0 %1561
        %v1563 = vsel %vm764, %v1562, 0
        %1565 = vmatprep.subr.mxu0 0.0
        %1566 = vmatpush1.msra.mxu0 %v1456
        %1567 = vmatprep.subr.mxu0 0.0
        %1568 = vmatpush1.msra.mxu0 %v1457
        %1569 = vmatprep.subr.mxu0 0.0
        %1570 = vmatpush1.msra.mxu0 %v1458
        %1571 = vmatprep.subr.mxu0 0.0
        %1572 = vmatpush1.msra.mxu0 %v1459
        %1573 = vmatprep.subr.mxu0 0.0
        %1574 = vmatpush1.msra.mxu0 0.0
        %1575 = vmatprep.subr.mxu0 0.0
        %1576 = vmatpush1.msra.mxu0 0.0
        %1577 = vmatprep.subr.mxu0 0.0
        %1578 = vmatpush1.msra.mxu0 0.0
        %1579 = vmatprep.subr.mxu0 0.0
        %1580 = vmatpush1.msra.mxu0 0.0
        %1581 = vmatprep.subr.mxu0 0.0
        %1582 = vmatpush1.msra.mxu0 0.0
        %1583 = vmatprep.subr.mxu0 0.0
        %1584 = vmatpush1.msra.mxu0 0.0
        %1585 = vmatprep.subr.mxu0 0.0
        %1586 = vmatpush1.msra.mxu0 0.0
        %1587 = vmatprep.subr.mxu0 0.0
        %1588 = vmatpush1.msra.mxu0 0.0
        %1589 = vmatprep.subr.mxu0 0.0
        %1590 = vmatpush1.msra.mxu0 0.0
        %1591 = vmatprep.subr.mxu0 0.0
        %1592 = vmatpush1.msra.mxu0 0.0
        %1593 = vmatprep.subr.mxu0 0.0
        %1594 = vmatpush1.msra.mxu0 0.0
        %1595 = vmatprep.subr.mxu0 0.0
        %1596 = vmatpush1.msra.mxu0 0.0
        %1597 = vmatprep.subr.mxu0 0.0
        %1598 = vmatpush1.msra.mxu0 0.0
        %1599 = vmatprep.subr.mxu0 0.0
        %1600 = vmatpush1.msra.mxu0 0.0
        %1601 = vmatprep.subr.mxu0 0.0
        %1602 = vmatpush1.msra.mxu0 0.0
        %1603 = vmatprep.subr.mxu0 0.0
        %1604 = vmatpush1.msra.mxu0 0.0
        %1605 = vmatprep.subr.mxu0 0.0
        %1606 = vmatpush1.msra.mxu0 0.0
        %1607 = vmatprep.subr.mxu0 0.0
        %1608 = vmatpush1.msra.mxu0 0.0
        %1609 = vmatprep.subr.mxu0 0.0
        %1610 = vmatpush1.msra.mxu0 0.0
        %1611 = vmatprep.subr.mxu0 0.0
        %1612 = vmatpush1.msra.mxu0 0.0
        %1613 = vmatprep.subr.mxu0 0.0
        %1614 = vmatpush1.msra.mxu0 0.0
        %1615 = vmatprep.subr.mxu0 0.0
        %1616 = vmatpush1.msra.mxu0 0.0
        %1617 = vmatprep.subr.mxu0 0.0
        %1618 = vmatpush1.msra.mxu0 0.0
        %1619 = vmatprep.subr.mxu0 0.0
        %1620 = vmatpush1.msra.mxu0 0.0
        %1621 = vmatprep.subr.mxu0 0.0
        %1622 = vmatpush1.msra.mxu0 0.0
        %1623 = vmatprep.subr.mxu0 0.0
        %1624 = vmatpush1.msra.mxu0 0.0
        %1625 = vmatprep.subr.mxu0 0.0
        %1626 = vmatpush1.msra.mxu0 0.0
        %1627 = vmatprep.subr.mxu0 0.0
        %1628 = vmatpush1.msra.mxu0 0.0
        %1629 = vmatprep.mubr.f32.mxu0 0.0
        %1630 = vmatmul.mubr.f32.gmra.mrb[0].mxu0 %v1563
        %v1631 = vpop.f32.mrb[0].mxu0
        %v1632 = vadd.f32 %v1460, %v1631
        %v1633 = vpop.f32.mrb[0].mxu0
        %1634 = vdwg.mxu0
        %v1636 = vrot.slane %v1632, 7
        %v1638 = vadd.f32 %v1454, %v1636
        %v1639 = vxor.u32 %v1638, 2147483648
        %v1640 = vmul.f32 %v1639, 1.442695
        %v1641 = vpow.pop %v1640
        %v1642 = vadd.f32 %v1641, 1.0
        %v1643 = vrcp.pop %v1642
        %v1644 = vmul.f32 1.0, %v1643
        %1645 = vrot.lane.b32.xlu0 %v1636, 64
        %v1646 = vpop.permute.xlu0 %1645
        %v1648 = vmul.f32 %v1644, %v1646
        %1650 = vrot.lane.b32.xlu0 %v1648, 64
        %v1651 = vpop.permute.xlu0 %1650
        %v1653 = vadd.f32 %v1454, %v1651
        %v1654 = vtanh.pop %v1653
        %v1655 = vsub.f32 1.0, %v1644
        %1657 = vrot.lane.b32.xlu0 %v1654, 96
        %v1658 = vpop.permute.xlu0 %1657
        %v1660 = vmul.f32 %v1655, %v1658
        %v1661 = vrot.slane %v1559, 7
        %v1663 = vmul.f32 %v1644, %v1661
        %v1664 = vadd.f32 %v1660, %v1663
        %v1666 = vrot.slane %v1664, 1
        %1667 = vrot.lane.b32.xlu0 %v1666, 96
        %v1668 = vpop.permute.xlu0 %1667
        %v1669 = vsel %vm764, %v1668, 0
        %1671 = vmatprep.subr.mxu0 0.0
        %1672 = vmatpush1.msra.mxu0 %v1456
        %1673 = vmatprep.subr.mxu0 0.0
        %1674 = vmatpush1.msra.mxu0 %v1457
        %1675 = vmatprep.subr.mxu0 0.0
        %1676 = vmatpush1.msra.mxu0 %v1458
        %1677 = vmatprep.subr.mxu0 0.0
        %1678 = vmatpush1.msra.mxu0 %v1459
        %1679 = vmatprep.subr.mxu0 0.0
        %1680 = vmatpush1.msra.mxu0 0.0
        %1681 = vmatprep.subr.mxu0 0.0
        %1682 = vmatpush1.msra.mxu0 0.0
        %1683 = vmatprep.subr.mxu0 0.0
        %1684 = vmatpush1.msra.mxu0 0.0
        %1685 = vmatprep.subr.mxu0 0.0
        %1686 = vmatpush1.msra.mxu0 0.0
        %1687 = vmatprep.subr.mxu0 0.0
        %1688 = vmatpush1.msra.mxu0 0.0
        %1689 = vmatprep.subr.mxu0 0.0
        %1690 = vmatpush1.msra.mxu0 0.0
        %1691 = vmatprep.subr.mxu0 0.0
        %1692 = vmatpush1.msra.mxu0 0.0
        %1693 = vmatprep.subr.mxu0 0.0
        %1694 = vmatpush1.msra.mxu0 0.0
        %1695 = vmatprep.subr.mxu0 0.0
        %1696 = vmatpush1.msra.mxu0 0.0
        %1697 = vmatprep.subr.mxu0 0.0
        %1698 = vmatpush1.msra.mxu0 0.0
        %1699 = vmatprep.subr.mxu0 0.0
        %1700 = vmatpush1.msra.mxu0 0.0
        %1701 = vmatprep.subr.mxu0 0.0
        %1702 = vmatpush1.msra.mxu0 0.0
        %1703 = vmatprep.subr.mxu0 0.0
        %1704 = vmatpush1.msra.mxu0 0.0
        %1705 = vmatprep.subr.mxu0 0.0
        %1706 = vmatpush1.msra.mxu0 0.0
        %1707 = vmatprep.subr.mxu0 0.0
        %1708 = vmatpush1.msra.mxu0 0.0
        %1709 = vmatprep.subr.mxu0 0.0
        %1710 = vmatpush1.msra.mxu0 0.0
        %1711 = vmatprep.subr.mxu0 0.0
        %1712 = vmatpush1.msra.mxu0 0.0
        %1713 = vmatprep.subr.mxu0 0.0
        %1714 = vmatpush1.msra.mxu0 0.0
        %1715 = vmatprep.subr.mxu0 0.0
        %1716 = vmatpush1.msra.mxu0 0.0
        %1717 = vmatprep.subr.mxu0 0.0
        %1718 = vmatpush1.msra.mxu0 0.0
        %1719 = vmatprep.subr.mxu0 0.0
        %1720 = vmatpush1.msra.mxu0 0.0
        %1721 = vmatprep.subr.mxu0 0.0
        %1722 = vmatpush1.msra.mxu0 0.0
        %1723 = vmatprep.subr.mxu0 0.0
        %1724 = vmatpush1.msra.mxu0 0.0
        %1725 = vmatprep.subr.mxu0 0.0
        %1726 = vmatpush1.msra.mxu0 0.0
        %1727 = vmatprep.subr.mxu0 0.0
        %1728 = vmatpush1.msra.mxu0 0.0
        %1729 = vmatprep.subr.mxu0 0.0
        %1730 = vmatpush1.msra.mxu0 0.0
        %1731 = vmatprep.subr.mxu0 0.0
        %1732 = vmatpush1.msra.mxu0 0.0
        %1733 = vmatprep.subr.mxu0 0.0
        %1734 = vmatpush1.msra.mxu0 0.0
        %1735 = vmatprep.mubr.f32.mxu0 0.0
        %1736 = vmatmul.mubr.f32.gmra.mrb[0].mxu0 %v1669
        %v1737 = vpop.f32.mrb[0].mxu0
        %v1738 = vadd.f32 %v1460, %v1737
        %v1739 = vpop.f32.mrb[0].mxu0
        %1740 = vdwg.mxu0
        %v1742 = vrot.slane %v1738, 6
        %v1744 = vadd.f32 %v1454, %v1742
        %v1745 = vxor.u32 %v1744, 2147483648
        %v1746 = vmul.f32 %v1745, 1.442695
        %v1747 = vpow.pop %v1746
        %v1748 = vadd.f32 %v1747, 1.0
        %v1749 = vrcp.pop %v1748
        %v1750 = vmul.f32 1.0, %v1749
        %1751 = vrot.lane.b32.xlu0 %v1742, 64
        %v1752 = vpop.permute.xlu0 %1751
        %v1754 = vmul.f32 %v1750, %v1752
        %1756 = vrot.lane.b32.xlu0 %v1754, 64
        %v1757 = vpop.permute.xlu0 %1756
        %v1759 = vadd.f32 %v1454, %v1757
        %v1760 = vtanh.pop %v1759
        %v1761 = vsub.f32 1.0, %v1750
        %1763 = vrot.lane.b32.xlu0 %v1760, 96
        %v1764 = vpop.permute.xlu0 %1763
        %v1766 = vmul.f32 %v1761, %v1764
        %v1767 = vrot.slane %v1664, 7
        %v1769 = vmul.f32 %v1750, %v1767
        %v1770 = vadd.f32 %v1766, %v1769
        %v1772 = vrot.slane %v1770, 2
        %1773 = vrot.lane.b32.xlu0 %v1772, 96
        %v1774 = vpop.permute.xlu0 %1773
        %v1775 = vsel %vm764, %v1774, 0
        %1777 = vmatprep.subr.mxu0 0.0
        %1778 = vmatpush1.msra.mxu0 %v1456
        %1779 = vmatprep.subr.mxu0 0.0
        %1780 = vmatpush1.msra.mxu0 %v1457
        %1781 = vmatprep.subr.mxu0 0.0
        %1782 = vmatpush1.msra.mxu0 %v1458
        %1783 = vmatprep.subr.mxu0 0.0
        %1784 = vmatpush1.msra.mxu0 %v1459
        %1785 = vmatprep.subr.mxu0 0.0
        %1786 = vmatpush1.msra.mxu0 0.0
        %1787 = vmatprep.subr.mxu0 0.0
        %1788 = vmatpush1.msra.mxu0 0.0
        %1789 = vmatprep.subr.mxu0 0.0
        %1790 = vmatpush1.msra.mxu0 0.0
        %1791 = vmatprep.subr.mxu0 0.0
        %1792 = vmatpush1.msra.mxu0 0.0
        %1793 = vmatprep.subr.mxu0 0.0
        %1794 = vmatpush1.msra.mxu0 0.0
        %1795 = vmatprep.subr.mxu0 0.0
        %1796 = vmatpush1.msra.mxu0 0.0
        %1797 = vmatprep.subr.mxu0 0.0
        %1798 = vmatpush1.msra.mxu0 0.0
        %1799 = vmatprep.subr.mxu0 0.0
        %1800 = vmatpush1.msra.mxu0 0.0
        %1801 = vmatprep.subr.mxu0 0.0
        %1802 = vmatpush1.msra.mxu0 0.0
        %1803 = vmatprep.subr.mxu0 0.0
        %1804 = vmatpush1.msra.mxu0 0.0
        %1805 = vmatprep.subr.mxu0 0.0
        %1806 = vmatpush1.msra.mxu0 0.0
        %1807 = vmatprep.subr.mxu0 0.0
        %1808 = vmatpush1.msra.mxu0 0.0
        %1809 = vmatprep.subr.mxu0 0.0
        %1810 = vmatpush1.msra.mxu0 0.0
        %1811 = vmatprep.subr.mxu0 0.0
        %1812 = vmatpush1.msra.mxu0 0.0
        %1813 = vmatprep.subr.mxu0 0.0
        %1814 = vmatpush1.msra.mxu0 0.0
        %1815 = vmatprep.subr.mxu0 0.0
        %1816 = vmatpush1.msra.mxu0 0.0
        %1817 = vmatprep.subr.mxu0 0.0
        %1818 = vmatpush1.msra.mxu0 0.0
        %1819 = vmatprep.subr.mxu0 0.0
        %1820 = vmatpush1.msra.mxu0 0.0
        %1821 = vmatprep.subr.mxu0 0.0
        %1822 = vmatpush1.msra.mxu0 0.0
        %1823 = vmatprep.subr.mxu0 0.0
        %1824 = vmatpush1.msra.mxu0 0.0
        %1825 = vmatprep.subr.mxu0 0.0
        %1826 = vmatpush1.msra.mxu0 0.0
        %1827 = vmatprep.subr.mxu0 0.0
        %1828 = vmatpush1.msra.mxu0 0.0
        %1829 = vmatprep.subr.mxu0 0.0
        %1830 = vmatpush1.msra.mxu0 0.0
        %1831 = vmatprep.subr.mxu0 0.0
        %1832 = vmatpush1.msra.mxu0 0.0
        %1833 = vmatprep.subr.mxu0 0.0
        %1834 = vmatpush1.msra.mxu0 0.0
        %1835 = vmatprep.subr.mxu0 0.0
        %1836 = vmatpush1.msra.mxu0 0.0
        %1837 = vmatprep.subr.mxu0 0.0
        %1838 = vmatpush1.msra.mxu0 0.0
        %1839 = vmatprep.subr.mxu0 0.0
        %1840 = vmatpush1.msra.mxu0 0.0
        %1841 = vmatprep.mubr.f32.mxu0 0.0
        %1842 = vmatmul.mubr.f32.gmra.mrb[0].mxu0 %v1775
        %v1843 = vpop.f32.mrb[0].mxu0
        %v1844 = vadd.f32 %v1460, %v1843
        %v1845 = vpop.f32.mrb[0].mxu0
        %1846 = vdwg.mxu0
        %v1848 = vrot.slane %v1844, 5
        %v1850 = vadd.f32 %v1454, %v1848
        %v1851 = vxor.u32 %v1850, 2147483648
        %v1852 = vmul.f32 %v1851, 1.442695
        %v1853 = vpow.pop %v1852
        %v1854 = vadd.f32 %v1853, 1.0
        %v1855 = vrcp.pop %v1854
        %v1856 = vmul.f32 1.0, %v1855
        %1857 = vrot.lane.b32.xlu0 %v1848, 64
        %v1858 = vpop.permute.xlu0 %1857
        %v1860 = vmul.f32 %v1856, %v1858
        %1862 = vrot.lane.b32.xlu0 %v1860, 64
        %v1863 = vpop.permute.xlu0 %1862
        %v1865 = vadd.f32 %v1454, %v1863
        %v1866 = vtanh.pop %v1865
        %v1867 = vsub.f32 1.0, %v1856
        %1869 = vrot.lane.b32.xlu0 %v1866, 96
        %v1870 = vpop.permute.xlu0 %1869
        %v1872 = vmul.f32 %v1867, %v1870
        %v1873 = vrot.slane %v1770, 7
        %v1875 = vmul.f32 %v1856, %v1873
        %v1876 = vadd.f32 %v1872, %v1875
        %v1878 = vrot.slane %v1876, 3
        %1879 = vrot.lane.b32.xlu0 %v1878, 96
        %v1880 = vpop.permute.xlu0 %1879
        %v1881 = vsel %vm764, %v1880, 0
        %1883 = vmatprep.subr.mxu0 0.0
        %1884 = vmatpush1.msra.mxu0 %v1456
        %1885 = vmatprep.subr.mxu0 0.0
        %1886 = vmatpush1.msra.mxu0 %v1457
        %1887 = vmatprep.subr.mxu0 0.0
        %1888 = vmatpush1.msra.mxu0 %v1458
        %1889 = vmatprep.subr.mxu0 0.0
        %1890 = vmatpush1.msra.mxu0 %v1459
        %1891 = vmatprep.subr.mxu0 0.0
        %1892 = vmatpush1.msra.mxu0 0.0
        %1893 = vmatprep.subr.mxu0 0.0
        %1894 = vmatpush1.msra.mxu0 0.0
        %1895 = vmatprep.subr.mxu0 0.0
        %1896 = vmatpush1.msra.mxu0 0.0
        %1897 = vmatprep.subr.mxu0 0.0
        %1898 = vmatpush1.msra.mxu0 0.0
        %1899 = vmatprep.subr.mxu0 0.0
        %1900 = vmatpush1.msra.mxu0 0.0
        %1901 = vmatprep.subr.mxu0 0.0
        %1902 = vmatpush1.msra.mxu0 0.0
        %1903 = vmatprep.subr.mxu0 0.0
        %1904 = vmatpush1.msra.mxu0 0.0
        %1905 = vmatprep.subr.mxu0 0.0
        %1906 = vmatpush1.msra.mxu0 0.0
        %1907 = vmatprep.subr.mxu0 0.0
        %1908 = vmatpush1.msra.mxu0 0.0
        %1909 = vmatprep.subr.mxu0 0.0
        %1910 = vmatpush1.msra.mxu0 0.0
        %1911 = vmatprep.subr.mxu0 0.0
        %1912 = vmatpush1.msra.mxu0 0.0
        %1913 = vmatprep.subr.mxu0 0.0
        %1914 = vmatpush1.msra.mxu0 0.0
        %1915 = vmatprep.subr.mxu0 0.0
        %1916 = vmatpush1.msra.mxu0 0.0
        %1917 = vmatprep.subr.mxu0 0.0
        %1918 = vmatpush1.msra.mxu0 0.0
        %1919 = vmatprep.subr.mxu0 0.0
        %1920 = vmatpush1.msra.mxu0 0.0
        %1921 = vmatprep.subr.mxu0 0.0
        %1922 = vmatpush1.msra.mxu0 0.0
        %1923 = vmatprep.subr.mxu0 0.0
        %1924 = vmatpush1.msra.mxu0 0.0
        %1925 = vmatprep.subr.mxu0 0.0
        %1926 = vmatpush1.msra.mxu0 0.0
        %1927 = vmatprep.subr.mxu0 0.0
        %1928 = vmatpush1.msra.mxu0 0.0
        %1929 = vmatprep.subr.mxu0 0.0
        %1930 = vmatpush1.msra.mxu0 0.0
        %1931 = vmatprep.subr.mxu0 0.0
        %1932 = vmatpush1.msra.mxu0 0.0
        %1933 = vmatprep.subr.mxu0 0.0
        %1934 = vmatpush1.msra.mxu0 0.0
        %1935 = vmatprep.subr.mxu0 0.0
        %1936 = vmatpush1.msra.mxu0 0.0
        %1937 = vmatprep.subr.mxu0 0.0
        %1938 = vmatpush1.msra.mxu0 0.0
        %1939 = vmatprep.subr.mxu0 0.0
        %1940 = vmatpush1.msra.mxu0 0.0
        %1941 = vmatprep.subr.mxu0 0.0
        %1942 = vmatpush1.msra.mxu0 0.0
        %1943 = vmatprep.subr.mxu0 0.0
        %1944 = vmatpush1.msra.mxu0 0.0
        %1945 = vmatprep.subr.mxu0 0.0
        %1946 = vmatpush1.msra.mxu0 0.0
        %1947 = vmatprep.mubr.f32.mxu0 0.0
        %1948 = vmatmul.mubr.f32.gmra.mrb[0].mxu0 %v1881
        %v1949 = vpop.f32.mrb[0].mxu0
        %v1950 = vadd.f32 %v1460, %v1949
        %v1951 = vpop.f32.mrb[0].mxu0
        %1952 = vdwg.mxu0
        %v1954 = vrot.slane %v1950, 4
        %v1956 = vadd.f32 %v1454, %v1954
        %v1957 = vxor.u32 %v1956, 2147483648
        %v1958 = vmul.f32 %v1957, 1.442695
        %v1959 = vpow.pop %v1958
        %v1960 = vadd.f32 %v1959, 1.0
        %v1961 = vrcp.pop %v1960
        %v1962 = vmul.f32 1.0, %v1961
        %1963 = vrot.lane.b32.xlu0 %v1954, 64
        %v1964 = vpop.permute.xlu0 %1963
        %v1966 = vmul.f32 %v1962, %v1964
        %1968 = vrot.lane.b32.xlu0 %v1966, 64
        %v1969 = vpop.permute.xlu0 %1968
        %v1971 = vadd.f32 %v1454, %v1969
        %v1972 = vtanh.pop %v1971
        %v1973 = vsub.f32 1.0, %v1962
        %1975 = vrot.lane.b32.xlu0 %v1972, 96
        %v1976 = vpop.permute.xlu0 %1975
        %v1978 = vmul.f32 %v1973, %v1976
        %v1979 = vrot.slane %v1876, 7
        %v1981 = vmul.f32 %v1962, %v1979
        %v1982 = vadd.f32 %v1978, %v1981
        %v1984 = vrot.slane %v1982, 4
        %1985 = vrot.lane.b32.xlu0 %v1984, 96
        %v1986 = vpop.permute.xlu0 %1985
        %v1987 = vsel %vm764, %v1986, 0
        %1989 = vmatprep.subr.mxu0 0.0
        %1990 = vmatpush1.msra.mxu0 %v1456
        %1991 = vmatprep.subr.mxu0 0.0
        %1992 = vmatpush1.msra.mxu0 %v1457
        %1993 = vmatprep.subr.mxu0 0.0
        %1994 = vmatpush1.msra.mxu0 %v1458
        %1995 = vmatprep.subr.mxu0 0.0
        %1996 = vmatpush1.msra.mxu0 %v1459
        %1997 = vmatprep.subr.mxu0 0.0
        %1998 = vmatpush1.msra.mxu0 0.0
        %1999 = vmatprep.subr.mxu0 0.0
        %2000 = vmatpush1.msra.mxu0 0.0
        %2001 = vmatprep.subr.mxu0 0.0
        %2002 = vmatpush1.msra.mxu0 0.0
        %2003 = vmatprep.subr.mxu0 0.0
        %2004 = vmatpush1.msra.mxu0 0.0
        %2005 = vmatprep.subr.mxu0 0.0
        %2006 = vmatpush1.msra.mxu0 0.0
        %2007 = vmatprep.subr.mxu0 0.0
        %2008 = vmatpush1.msra.mxu0 0.0
        %2009 = vmatprep.subr.mxu0 0.0
        %2010 = vmatpush1.msra.mxu0 0.0
        %2011 = vmatprep.subr.mxu0 0.0
        %2012 = vmatpush1.msra.mxu0 0.0
        %2013 = vmatprep.subr.mxu0 0.0
        %2014 = vmatpush1.msra.mxu0 0.0
        %2015 = vmatprep.subr.mxu0 0.0
        %2016 = vmatpush1.msra.mxu0 0.0
        %2017 = vmatprep.subr.mxu0 0.0
        %2018 = vmatpush1.msra.mxu0 0.0
        %2019 = vmatprep.subr.mxu0 0.0
        %2020 = vmatpush1.msra.mxu0 0.0
        %2021 = vmatprep.subr.mxu0 0.0
        %2022 = vmatpush1.msra.mxu0 0.0
        %2023 = vmatprep.subr.mxu0 0.0
        %2024 = vmatpush1.msra.mxu0 0.0
        %2025 = vmatprep.subr.mxu0 0.0
        %2026 = vmatpush1.msra.mxu0 0.0
        %2027 = vmatprep.subr.mxu0 0.0
        %2028 = vmatpush1.msra.mxu0 0.0
        %2029 = vmatprep.subr.mxu0 0.0
        %2030 = vmatpush1.msra.mxu0 0.0
        %2031 = vmatprep.subr.mxu0 0.0
        %2032 = vmatpush1.msra.mxu0 0.0
        %2033 = vmatprep.subr.mxu0 0.0
        %2034 = vmatpush1.msra.mxu0 0.0
        %2035 = vmatprep.subr.mxu0 0.0
        %2036 = vmatpush1.msra.mxu0 0.0
        %2037 = vmatprep.subr.mxu0 0.0
        %2038 = vmatpush1.msra.mxu0 0.0
        %2039 = vmatprep.subr.mxu0 0.0
        %2040 = vmatpush1.msra.mxu0 0.0
        %2041 = vmatprep.subr.mxu0 0.0
        %2042 = vmatpush1.msra.mxu0 0.0
        %2043 = vmatprep.subr.mxu0 0.0
        %2044 = vmatpush1.msra.mxu0 0.0
        %2045 = vmatprep.subr.mxu0 0.0
        %2046 = vmatpush1.msra.mxu0 0.0
        %2047 = vmatprep.subr.mxu0 0.0
        %2048 = vmatpush1.msra.mxu0 0.0
        %2049 = vmatprep.subr.mxu0 0.0
        %2050 = vmatpush1.msra.mxu0 0.0
        %2051 = vmatprep.subr.mxu0 0.0
        %2052 = vmatpush1.msra.mxu0 0.0
        %2053 = vmatprep.mubr.f32.mxu0 0.0
        %2054 = vmatmul.mubr.f32.gmra.mrb[0].mxu0 %v1987
        %v2055 = vpop.f32.mrb[0].mxu0
        %v2056 = vadd.f32 %v1460, %v2055
        %v2057 = vpop.f32.mrb[0].mxu0
        %2058 = vdwg.mxu0
        %v2060 = vrot.slane %v2056, 3
        %v2062 = vadd.f32 %v1454, %v2060
        %v2063 = vxor.u32 %v2062, 2147483648
        %v2064 = vmul.f32 %v2063, 1.442695
        %v2065 = vpow.pop %v2064
        %v2066 = vadd.f32 %v2065, 1.0
        %v2067 = vrcp.pop %v2066
        %v2068 = vmul.f32 1.0, %v2067
        %2069 = vrot.lane.b32.xlu0 %v2060, 64
        %v2070 = vpop.permute.xlu0 %2069
        %v2072 = vmul.f32 %v2068, %v2070
        %2074 = vrot.lane.b32.xlu0 %v2072, 64
        %v2075 = vpop.permute.xlu0 %2074
        %v2077 = vadd.f32 %v1454, %v2075
        %v2078 = vtanh.pop %v2077
        %v2079 = vsub.f32 1.0, %v2068
        %2081 = vrot.lane.b32.xlu0 %v2078, 96
        %v2082 = vpop.permute.xlu0 %2081
        %v2084 = vmul.f32 %v2079, %v2082
        %v2085 = vrot.slane %v1982, 7
        %v2087 = vmul.f32 %v2068, %v2085
        %v2088 = vadd.f32 %v2084, %v2087
        %v2090 = vrot.slane %v2088, 5
        %2091 = vrot.lane.b32.xlu0 %v2090, 96
        %v2092 = vpop.permute.xlu0 %2091
        %v2093 = vsel %vm764, %v2092, 0
        %2095 = vmatprep.subr.mxu0 0.0
        %2096 = vmatpush1.msra.mxu0 %v1456
        %2097 = vmatprep.subr.mxu0 0.0
        %2098 = vmatpush1.msra.mxu0 %v1457
        %2099 = vmatprep.subr.mxu0 0.0
        %2100 = vmatpush1.msra.mxu0 %v1458
        %2101 = vmatprep.subr.mxu0 0.0
        %2102 = vmatpush1.msra.mxu0 %v1459
        %2103 = vmatprep.subr.mxu0 0.0
        %2104 = vmatpush1.msra.mxu0 0.0
        %2105 = vmatprep.subr.mxu0 0.0
        %2106 = vmatpush1.msra.mxu0 0.0
        %2107 = vmatprep.subr.mxu0 0.0
        %2108 = vmatpush1.msra.mxu0 0.0
        %2109 = vmatprep.subr.mxu0 0.0
        %2110 = vmatpush1.msra.mxu0 0.0
        %2111 = vmatprep.subr.mxu0 0.0
        %2112 = vmatpush1.msra.mxu0 0.0
        %2113 = vmatprep.subr.mxu0 0.0
        %2114 = vmatpush1.msra.mxu0 0.0
        %2115 = vmatprep.subr.mxu0 0.0
        %2116 = vmatpush1.msra.mxu0 0.0
        %2117 = vmatprep.subr.mxu0 0.0
        %2118 = vmatpush1.msra.mxu0 0.0
        %2119 = vmatprep.subr.mxu0 0.0
        %2120 = vmatpush1.msra.mxu0 0.0
        %2121 = vmatprep.subr.mxu0 0.0
        %2122 = vmatpush1.msra.mxu0 0.0
        %2123 = vmatprep.subr.mxu0 0.0
        %2124 = vmatpush1.msra.mxu0 0.0
        %2125 = vmatprep.subr.mxu0 0.0
        %2126 = vmatpush1.msra.mxu0 0.0
        %2127 = vmatprep.subr.mxu0 0.0
        %2128 = vmatpush1.msra.mxu0 0.0
        %2129 = vmatprep.subr.mxu0 0.0
        %2130 = vmatpush1.msra.mxu0 0.0
        %2131 = vmatprep.subr.mxu0 0.0
        %2132 = vmatpush1.msra.mxu0 0.0
        %2133 = vmatprep.subr.mxu0 0.0
        %2134 = vmatpush1.msra.mxu0 0.0
        %2135 = vmatprep.subr.mxu0 0.0
        %2136 = vmatpush1.msra.mxu0 0.0
        %2137 = vmatprep.subr.mxu0 0.0
        %2138 = vmatpush1.msra.mxu0 0.0
        %2139 = vmatprep.subr.mxu0 0.0
        %2140 = vmatpush1.msra.mxu0 0.0
        %2141 = vmatprep.subr.mxu0 0.0
        %2142 = vmatpush1.msra.mxu0 0.0
        %2143 = vmatprep.subr.mxu0 0.0
        %2144 = vmatpush1.msra.mxu0 0.0
        %2145 = vmatprep.subr.mxu0 0.0
        %2146 = vmatpush1.msra.mxu0 0.0
        %2147 = vmatprep.subr.mxu0 0.0
        %2148 = vmatpush1.msra.mxu0 0.0
        %2149 = vmatprep.subr.mxu0 0.0
        %2150 = vmatpush1.msra.mxu0 0.0
        %2151 = vmatprep.subr.mxu0 0.0
        %2152 = vmatpush1.msra.mxu0 0.0
        %2153 = vmatprep.subr.mxu0 0.0
        %2154 = vmatpush1.msra.mxu0 0.0
        %2155 = vmatprep.subr.mxu0 0.0
        %2156 = vmatpush1.msra.mxu0 0.0
        %2157 = vmatprep.subr.mxu0 0.0
        %2158 = vmatpush1.msra.mxu0 0.0
        %2159 = vmatprep.mubr.f32.mxu0 0.0
        %2160 = vmatmul.mubr.f32.gmra.mrb[0].mxu0 %v2093
        %v2161 = vpop.f32.mrb[0].mxu0
        %v2162 = vadd.f32 %v1460, %v2161
        %v2163 = vpop.f32.mrb[0].mxu0
        %2164 = vdwg.mxu0
        %v2166 = vrot.slane %v2162, 2
        %v2168 = vadd.f32 %v1454, %v2166
        %v2169 = vxor.u32 %v2168, 2147483648
        %v2170 = vmul.f32 %v2169, 1.442695
        %v2171 = vpow.pop %v2170
        %v2172 = vadd.f32 %v2171, 1.0
        %v2173 = vrcp.pop %v2172
        %v2174 = vmul.f32 1.0, %v2173
        %2175 = vrot.lane.b32.xlu0 %v2166, 64
        %v2176 = vpop.permute.xlu0 %2175
        %v2178 = vmul.f32 %v2174, %v2176
        %2180 = vrot.lane.b32.xlu0 %v2178, 64
        %v2181 = vpop.permute.xlu0 %2180
        %v2183 = vadd.f32 %v1454, %v2181
        %v2184 = vtanh.pop %v2183
        %v2185 = vsub.f32 1.0, %v2174
        %2187 = vrot.lane.b32.xlu0 %v2184, 96
        %v2188 = vpop.permute.xlu0 %2187
        %v2190 = vmul.f32 %v2185, %v2188
        %v2191 = vrot.slane %v2088, 7
        %v2193 = vmul.f32 %v2174, %v2191
        %v2194 = vadd.f32 %v2190, %v2193
        %v2196 = vrot.slane %v2194, 6
        %2197 = vrot.lane.b32.xlu0 %v2196, 96
        %v2198 = vpop.permute.xlu0 %2197
        %v2199 = vsel %vm764, %v2198, 0
        %2201 = vmatprep.subr.mxu0 0.0
        %2202 = vmatpush1.msra.mxu0 %v1456
        %2203 = vmatprep.subr.mxu0 0.0
        %2204 = vmatpush1.msra.mxu0 %v1457
        %2205 = vmatprep.subr.mxu0 0.0
        %2206 = vmatpush1.msra.mxu0 %v1458
        %2207 = vmatprep.subr.mxu0 0.0
        %2208 = vmatpush1.msra.mxu0 %v1459
        %2209 = vmatprep.subr.mxu0 0.0
        %2210 = vmatpush1.msra.mxu0 0.0
        %2211 = vmatprep.subr.mxu0 0.0
        %2212 = vmatpush1.msra.mxu0 0.0
        %2213 = vmatprep.subr.mxu0 0.0
        %2214 = vmatpush1.msra.mxu0 0.0
        %2215 = vmatprep.subr.mxu0 0.0
        %2216 = vmatpush1.msra.mxu0 0.0
        %2217 = vmatprep.subr.mxu0 0.0
        %2218 = vmatpush1.msra.mxu0 0.0
        %2219 = vmatprep.subr.mxu0 0.0
        %2220 = vmatpush1.msra.mxu0 0.0
        %2221 = vmatprep.subr.mxu0 0.0
        %2222 = vmatpush1.msra.mxu0 0.0
        %2223 = vmatprep.subr.mxu0 0.0
        %2224 = vmatpush1.msra.mxu0 0.0
        %2225 = vmatprep.subr.mxu0 0.0
        %2226 = vmatpush1.msra.mxu0 0.0
        %2227 = vmatprep.subr.mxu0 0.0
        %2228 = vmatpush1.msra.mxu0 0.0
        %2229 = vmatprep.subr.mxu0 0.0
        %2230 = vmatpush1.msra.mxu0 0.0
        %2231 = vmatprep.subr.mxu0 0.0
        %2232 = vmatpush1.msra.mxu0 0.0
        %2233 = vmatprep.subr.mxu0 0.0
        %2234 = vmatpush1.msra.mxu0 0.0
        %2235 = vmatprep.subr.mxu0 0.0
        %2236 = vmatpush1.msra.mxu0 0.0
        %2237 = vmatprep.subr.mxu0 0.0
        %2238 = vmatpush1.msra.mxu0 0.0
        %2239 = vmatprep.subr.mxu0 0.0
        %2240 = vmatpush1.msra.mxu0 0.0
        %2241 = vmatprep.subr.mxu0 0.0
        %2242 = vmatpush1.msra.mxu0 0.0
        %2243 = vmatprep.subr.mxu0 0.0
        %2244 = vmatpush1.msra.mxu0 0.0
        %2245 = vmatprep.subr.mxu0 0.0
        %2246 = vmatpush1.msra.mxu0 0.0
        %2247 = vmatprep.subr.mxu0 0.0
        %2248 = vmatpush1.msra.mxu0 0.0
        %2249 = vmatprep.subr.mxu0 0.0
        %2250 = vmatpush1.msra.mxu0 0.0
        %2251 = vmatprep.subr.mxu0 0.0
        %2252 = vmatpush1.msra.mxu0 0.0
        %2253 = vmatprep.subr.mxu0 0.0
        %2254 = vmatpush1.msra.mxu0 0.0
        %2255 = vmatprep.subr.mxu0 0.0
        %2256 = vmatpush1.msra.mxu0 0.0
        %2257 = vmatprep.subr.mxu0 0.0
        %2258 = vmatpush1.msra.mxu0 0.0
        %2259 = vmatprep.subr.mxu0 0.0
        %2260 = vmatpush1.msra.mxu0 0.0
        %2261 = vmatprep.subr.mxu0 0.0
        %2262 = vmatpush1.msra.mxu0 0.0
        %2263 = vmatprep.subr.mxu0 0.0
        %2264 = vmatpush1.msra.mxu0 0.0
        %2265 = vmatprep.mubr.f32.mxu0 0.0
        %2266 = vmatmul.mubr.f32.gmra.mrb[0].mxu0 %v2199
        %v2267 = vpop.f32.mrb[0].mxu0
        %v2268 = vadd.f32 %v1460, %v2267
        %v2269 = vpop.f32.mrb[0].mxu0
        %2270 = vdwg.mxu0
        %v2272 = vrot.slane %v2268, 1
        %v2274 = vadd.f32 %v1454, %v2272
        %v2275 = vxor.u32 %v2274, 2147483648
        %v2276 = vmul.f32 %v2275, 1.442695
        %v2277 = vpow.pop %v2276
        %v2278 = vadd.f32 %v2277, 1.0
        %v2279 = vrcp.pop %v2278
        %v2280 = vmul.f32 1.0, %v2279
        %2281 = vrot.lane.b32.xlu0 %v2272, 64
        %v2282 = vpop.permute.xlu0 %2281
        %v2284 = vmul.f32 %v2280, %v2282
        %2286 = vrot.lane.b32.xlu0 %v2284, 64
        %v2287 = vpop.permute.xlu0 %2286
        %v2289 = vadd.f32 %v1454, %v2287
        %v2290 = vtanh.pop %v2289
        %v2291 = vsub.f32 1.0, %v2280
        %2293 = vrot.lane.b32.xlu0 %v2290, 96
        %v2294 = vpop.permute.xlu0 %2293
        %v2296 = vmul.f32 %v2291, %v2294
        %v2297 = vrot.slane %v2194, 7
        %v2299 = vmul.f32 %v2280, %v2297
        %v2300 = vadd.f32 %v2296, %v2299
        %v2302 = vrot.slane %v2300, 7
        %2303 = vrot.lane.b32.xlu0 %v2302, 96
        %v2304 = vpop.permute.xlu0 %2303
        %v2305 = vsel %vm764, %v2304, 0
        %2307 = vmatprep.subr.mxu0 0.0
        %2308 = vmatpush1.msra.mxu0 %v1456
        %2309 = vmatprep.subr.mxu0 0.0
        %2310 = vmatpush1.msra.mxu0 %v1457
        %2311 = vmatprep.subr.mxu0 0.0
        %2312 = vmatpush1.msra.mxu0 %v1458
        %2313 = vmatprep.subr.mxu0 0.0
        %2314 = vmatpush1.msra.mxu0 %v1459
        %2315 = vmatprep.subr.mxu0 0.0
        %2316 = vmatpush1.msra.mxu0 0.0
        %2317 = vmatprep.subr.mxu0 0.0
        %2318 = vmatpush1.msra.mxu0 0.0
        %2319 = vmatprep.subr.mxu0 0.0
        %2320 = vmatpush1.msra.mxu0 0.0
        %2321 = vmatprep.subr.mxu0 0.0
        %2322 = vmatpush1.msra.mxu0 0.0
        %2323 = vmatprep.subr.mxu0 0.0
        %2324 = vmatpush1.msra.mxu0 0.0
        %2325 = vmatprep.subr.mxu0 0.0
        %2326 = vmatpush1.msra.mxu0 0.0
        %2327 = vmatprep.subr.mxu0 0.0
        %2328 = vmatpush1.msra.mxu0 0.0
        %2329 = vmatprep.subr.mxu0 0.0
        %2330 = vmatpush1.msra.mxu0 0.0
        %2331 = vmatprep.subr.mxu0 0.0
        %2332 = vmatpush1.msra.mxu0 0.0
        %2333 = vmatprep.subr.mxu0 0.0
        %2334 = vmatpush1.msra.mxu0 0.0
        %2335 = vmatprep.subr.mxu0 0.0
        %2336 = vmatpush1.msra.mxu0 0.0
        %2337 = vmatprep.subr.mxu0 0.0
        %2338 = vmatpush1.msra.mxu0 0.0
        %2339 = vmatprep.subr.mxu0 0.0
        %2340 = vmatpush1.msra.mxu0 0.0
        %2341 = vmatprep.subr.mxu0 0.0
        %2342 = vmatpush1.msra.mxu0 0.0
        %2343 = vmatprep.subr.mxu0 0.0
        %2344 = vmatpush1.msra.mxu0 0.0
        %2345 = vmatprep.subr.mxu0 0.0
        %2346 = vmatpush1.msra.mxu0 0.0
        %2347 = vmatprep.subr.mxu0 0.0
        %2348 = vmatpush1.msra.mxu0 0.0
        %2349 = vmatprep.subr.mxu0 0.0
        %2350 = vmatpush1.msra.mxu0 0.0
        %2351 = vmatprep.subr.mxu0 0.0
        %2352 = vmatpush1.msra.mxu0 0.0
        %2353 = vmatprep.subr.mxu0 0.0
        %2354 = vmatpush1.msra.mxu0 0.0
        %2355 = vmatprep.subr.mxu0 0.0
        %2356 = vmatpush1.msra.mxu0 0.0
        %2357 = vmatprep.subr.mxu0 0.0
        %2358 = vmatpush1.msra.mxu0 0.0
        %2359 = vmatprep.subr.mxu0 0.0
        %2360 = vmatpush1.msra.mxu0 0.0
        %2361 = vmatprep.subr.mxu0 0.0
        %2362 = vmatpush1.msra.mxu0 0.0
        %2363 = vmatprep.subr.mxu0 0.0
        %2364 = vmatpush1.msra.mxu0 0.0
        %2365 = vmatprep.subr.mxu0 0.0
        %2366 = vmatpush1.msra.mxu0 0.0
        %2367 = vmatprep.subr.mxu0 0.0
        %2368 = vmatpush1.msra.mxu0 0.0
        %2369 = vmatprep.subr.mxu0 0.0
        %2370 = vmatpush1.msra.mxu0 0.0
        %2371 = vmatprep.mubr.f32.mxu0 0.0
        %2372 = vmatmul.mubr.f32.gmra.mrb[0].mxu0 %v2305
        %v2373 = vpop.f32.mrb[0].mxu0
        %v2374 = vadd.f32 %v1460, %v2373
        %v2375 = vpop.f32.mrb[0].mxu0
        %2376 = vdwg.mxu0
        %v2377 = vadd.f32 %v1455, %v2374
        %v2378 = vxor.u32 %v2377, 2147483648
        %v2379 = vmul.f32 %v2378, 1.442695
        %v2380 = vpow.pop %v2379
        %v2381 = vadd.f32 %v2380, 1.0
        %v2382 = vrcp.pop %v2381
        %v2383 = vmul.f32 1.0, %v2382
        %2385 = vrot.lane.b32.xlu0 %v2374, 64
        %v2386 = vpop.permute.xlu0 %2385
        %v2388 = vmul.f32 %v2383, %v2386
        %2390 = vrot.lane.b32.xlu0 %v2388, 64
        %v2391 = vpop.permute.xlu0 %2390
        %v2393 = vadd.f32 %v1455, %v2391
        %v2394 = vtanh.pop %v2393
        %v2395 = vsub.f32 1.0, %v2383
        %2397 = vrot.lane.b32.xlu0 %v2394, 96
        %v2398 = vpop.permute.xlu0 %2397
        %v2400 = vmul.f32 %v2395, %v2398
        %v2402 = vmul.f32 %v2383, %v2302
        %v2403 = vadd.f32 %v2400, %v2402
        %2405 = vrot.lane.b32.xlu0 %v2403, 96
        %v2406 = vpop.permute.xlu0 %2405
        %v2407 = vsel %vm764, %v2406, 0
        %2409 = vmatprep.subr.mxu0 0.0
        %2410 = vmatpush1.msra.mxu0 %v1456
        %2411 = vmatprep.subr.mxu0 0.0
        %2412 = vmatpush1.msra.mxu0 %v1457
        %2413 = vmatprep.subr.mxu0 0.0
        %2414 = vmatpush1.msra.mxu0 %v1458
        %2415 = vmatprep.subr.mxu0 0.0
        %2416 = vmatpush1.msra.mxu0 %v1459
        %2417 = vmatprep.subr.mxu0 0.0
        %2418 = vmatpush1.msra.mxu0 0.0
        %2419 = vmatprep.subr.mxu0 0.0
        %2420 = vmatpush1.msra.mxu0 0.0
        %2421 = vmatprep.subr.mxu0 0.0
        %2422 = vmatpush1.msra.mxu0 0.0
        %2423 = vmatprep.subr.mxu0 0.0
        %2424 = vmatpush1.msra.mxu0 0.0
        %2425 = vmatprep.subr.mxu0 0.0
        %2426 = vmatpush1.msra.mxu0 0.0
        %2427 = vmatprep.subr.mxu0 0.0
        %2428 = vmatpush1.msra.mxu0 0.0
        %2429 = vmatprep.subr.mxu0 0.0
        %2430 = vmatpush1.msra.mxu0 0.0
        %2431 = vmatprep.subr.mxu0 0.0
        %2432 = vmatpush1.msra.mxu0 0.0
        %2433 = vmatprep.subr.mxu0 0.0
        %2434 = vmatpush1.msra.mxu0 0.0
        %2435 = vmatprep.subr.mxu0 0.0
        %2436 = vmatpush1.msra.mxu0 0.0
        %2437 = vmatprep.subr.mxu0 0.0
        %2438 = vmatpush1.msra.mxu0 0.0
        %2439 = vmatprep.subr.mxu0 0.0
        %2440 = vmatpush1.msra.mxu0 0.0
        %2441 = vmatprep.subr.mxu0 0.0
        %2442 = vmatpush1.msra.mxu0 0.0
        %2443 = vmatprep.subr.mxu0 0.0
        %2444 = vmatpush1.msra.mxu0 0.0
        %2445 = vmatprep.subr.mxu0 0.0
        %2446 = vmatpush1.msra.mxu0 0.0
        %2447 = vmatprep.subr.mxu0 0.0
        %2448 = vmatpush1.msra.mxu0 0.0
        %2449 = vmatprep.subr.mxu0 0.0
        %2450 = vmatpush1.msra.mxu0 0.0
        %2451 = vmatprep.subr.mxu0 0.0
        %2452 = vmatpush1.msra.mxu0 0.0
        %2453 = vmatprep.subr.mxu0 0.0
        %2454 = vmatpush1.msra.mxu0 0.0
        %2455 = vmatprep.subr.mxu0 0.0
        %2456 = vmatpush1.msra.mxu0 0.0
        %2457 = vmatprep.subr.mxu0 0.0
        %2458 = vmatpush1.msra.mxu0 0.0
        %2459 = vmatprep.subr.mxu0 0.0
        %2460 = vmatpush1.msra.mxu0 0.0
        %2461 = vmatprep.subr.mxu0 0.0
        %2462 = vmatpush1.msra.mxu0 0.0
        %2463 = vmatprep.subr.mxu0 0.0
        %2464 = vmatpush1.msra.mxu0 0.0
        %2465 = vmatprep.subr.mxu0 0.0
        %2466 = vmatpush1.msra.mxu0 0.0
        %2467 = vmatprep.subr.mxu0 0.0
        %2468 = vmatpush1.msra.mxu0 0.0
        %2469 = vmatprep.subr.mxu0 0.0
        %2470 = vmatpush1.msra.mxu0 0.0
        %2471 = vmatprep.subr.mxu0 0.0
        %2472 = vmatpush1.msra.mxu0 0.0
        %2473 = vmatprep.mubr.f32.mxu0 0.0
        %2474 = vmatmul.mubr.f32.gmra.mrb[0].mxu0 %v2407
        %v2475 = vpop.f32.mrb[0].mxu0
        %v2476 = vadd.f32 %v1460, %v2475
        %v2477 = vpop.f32.mrb[0].mxu0
        %2478 = vdwg.mxu0
        %v2480 = vrot.slane %v2476, 7
        %v2482 = vadd.f32 %v1455, %v2480
        %v2483 = vxor.u32 %v2482, 2147483648
        %v2484 = vmul.f32 %v2483, 1.442695
        %v2485 = vpow.pop %v2484
        %v2486 = vadd.f32 %v2485, 1.0
        %v2487 = vrcp.pop %v2486
        %v2488 = vmul.f32 1.0, %v2487
        %2489 = vrot.lane.b32.xlu0 %v2480, 64
        %v2490 = vpop.permute.xlu0 %2489
        %v2492 = vmul.f32 %v2488, %v2490
        %2494 = vrot.lane.b32.xlu0 %v2492, 64
        %v2495 = vpop.permute.xlu0 %2494
        %v2497 = vadd.f32 %v1455, %v2495
        %v2498 = vtanh.pop %v2497
        %v2499 = vsub.f32 1.0, %v2488
        %2501 = vrot.lane.b32.xlu0 %v2498, 96
        %v2502 = vpop.permute.xlu0 %2501
        %v2504 = vmul.f32 %v2499, %v2502
        %v2505 = vrot.slane %v2403, 7
        %v2507 = vmul.f32 %v2488, %v2505
        %v2508 = vadd.f32 %v2504, %v2507
        %v2510 = vrot.slane %v2508, 1
        %2511 = vrot.lane.b32.xlu0 %v2510, 96
        %v2512 = vpop.permute.xlu0 %2511
        %v2513 = vsel %vm764, %v2512, 0
        %2515 = vmatprep.subr.mxu0 0.0
        %2516 = vmatpush1.msra.mxu0 %v1456
        %2517 = vmatprep.subr.mxu0 0.0
        %2518 = vmatpush1.msra.mxu0 %v1457
        %2519 = vmatprep.subr.mxu0 0.0
        %2520 = vmatpush1.msra.mxu0 %v1458
        %2521 = vmatprep.subr.mxu0 0.0
        %2522 = vmatpush1.msra.mxu0 %v1459
        %2523 = vmatprep.subr.mxu0 0.0
        %2524 = vmatpush1.msra.mxu0 0.0
        %2525 = vmatprep.subr.mxu0 0.0
        %2526 = vmatpush1.msra.mxu0 0.0
        %2527 = vmatprep.subr.mxu0 0.0
        %2528 = vmatpush1.msra.mxu0 0.0
        %2529 = vmatprep.subr.mxu0 0.0
        %2530 = vmatpush1.msra.mxu0 0.0
        %2531 = vmatprep.subr.mxu0 0.0
        %2532 = vmatpush1.msra.mxu0 0.0
        %2533 = vmatprep.subr.mxu0 0.0
        %2534 = vmatpush1.msra.mxu0 0.0
        %2535 = vmatprep.subr.mxu0 0.0
        %2536 = vmatpush1.msra.mxu0 0.0
        %2537 = vmatprep.subr.mxu0 0.0
        %2538 = vmatpush1.msra.mxu0 0.0
        %2539 = vmatprep.subr.mxu0 0.0
        %2540 = vmatpush1.msra.mxu0 0.0
        %2541 = vmatprep.subr.mxu0 0.0
        %2542 = vmatpush1.msra.mxu0 0.0
        %2543 = vmatprep.subr.mxu0 0.0
        %2544 = vmatpush1.msra.mxu0 0.0
        %2545 = vmatprep.subr.mxu0 0.0
        %2546 = vmatpush1.msra.mxu0 0.0
        %2547 = vmatprep.subr.mxu0 0.0
        %2548 = vmatpush1.msra.mxu0 0.0
        %2549 = vmatprep.subr.mxu0 0.0
        %2550 = vmatpush1.msra.mxu0 0.0
        %2551 = vmatprep.subr.mxu0 0.0
        %2552 = vmatpush1.msra.mxu0 0.0
        %2553 = vmatprep.subr.mxu0 0.0
        %2554 = vmatpush1.msra.mxu0 0.0
        %2555 = vmatprep.subr.mxu0 0.0
        %2556 = vmatpush1.msra.mxu0 0.0
        %2557 = vmatprep.subr.mxu0 0.0
        %2558 = vmatpush1.msra.mxu0 0.0
        %2559 = vmatprep.subr.mxu0 0.0
        %2560 = vmatpush1.msra.mxu0 0.0
        %2561 = vmatprep.subr.mxu0 0.0
        %2562 = vmatpush1.msra.mxu0 0.0
        %2563 = vmatprep.subr.mxu0 0.0
        %2564 = vmatpush1.msra.mxu0 0.0
        %2565 = vmatprep.subr.mxu0 0.0
        %2566 = vmatpush1.msra.mxu0 0.0
        %2567 = vmatprep.subr.mxu0 0.0
        %2568 = vmatpush1.msra.mxu0 0.0
        %2569 = vmatprep.subr.mxu0 0.0
        %2570 = vmatpush1.msra.mxu0 0.0
        %2571 = vmatprep.subr.mxu0 0.0
        %2572 = vmatpush1.msra.mxu0 0.0
        %2573 = vmatprep.subr.mxu0 0.0
        %2574 = vmatpush1.msra.mxu0 0.0
        %2575 = vmatprep.subr.mxu0 0.0
        %2576 = vmatpush1.msra.mxu0 0.0
        %2577 = vmatprep.subr.mxu0 0.0
        %2578 = vmatpush1.msra.mxu0 0.0
        %2579 = vmatprep.mubr.f32.mxu0 0.0
        %2580 = vmatmul.mubr.f32.gmra.mrb[0].mxu0 %v2513
        %v2581 = vpop.f32.mrb[0].mxu0
        %v2582 = vadd.f32 %v1460, %v2581
        %v2583 = vpop.f32.mrb[0].mxu0
        %2584 = vdwg.mxu0
        %v2586 = vrot.slane %v2582, 6
        %v2588 = vadd.f32 %v1455, %v2586
        %v2589 = vxor.u32 %v2588, 2147483648
        %v2590 = vmul.f32 %v2589, 1.442695
        %v2591 = vpow.pop %v2590
        %v2592 = vadd.f32 %v2591, 1.0
        %v2593 = vrcp.pop %v2592
        %v2594 = vmul.f32 1.0, %v2593
        %2595 = vrot.lane.b32.xlu0 %v2586, 64
        %v2596 = vpop.permute.xlu0 %2595
        %v2598 = vmul.f32 %v2594, %v2596
        %2600 = vrot.lane.b32.xlu0 %v2598, 64
        %v2601 = vpop.permute.xlu0 %2600
        %v2603 = vadd.f32 %v1455, %v2601
        %v2604 = vtanh.pop %v2603
        %v2605 = vsub.f32 1.0, %v2594
        %2607 = vrot.lane.b32.xlu0 %v2604, 96
        %v2608 = vpop.permute.xlu0 %2607
        %v2610 = vmul.f32 %v2605, %v2608
        %v2611 = vrot.slane %v2508, 7
        %v2613 = vmul.f32 %v2594, %v2611
        %v2614 = vadd.f32 %v2610, %v2613
        %v2616 = vrot.slane %v2614, 2
        %2617 = vrot.lane.b32.xlu0 %v2616, 96
        %v2618 = vpop.permute.xlu0 %2617
        %v2619 = vsel %vm764, %v2618, 0
        %2621 = vmatprep.subr.mxu0 0.0
        %2622 = vmatpush1.msra.mxu0 %v1456
        %2623 = vmatprep.subr.mxu0 0.0
        %2624 = vmatpush1.msra.mxu0 %v1457
        %2625 = vmatprep.subr.mxu0 0.0
        %2626 = vmatpush1.msra.mxu0 %v1458
        %2627 = vmatprep.subr.mxu0 0.0
        %2628 = vmatpush1.msra.mxu0 %v1459
        %2629 = vmatprep.subr.mxu0 0.0
        %2630 = vmatpush1.msra.mxu0 0.0
        %2631 = vmatprep.subr.mxu0 0.0
        %2632 = vmatpush1.msra.mxu0 0.0
        %2633 = vmatprep.subr.mxu0 0.0
        %2634 = vmatpush1.msra.mxu0 0.0
        %2635 = vmatprep.subr.mxu0 0.0
        %2636 = vmatpush1.msra.mxu0 0.0
        %2637 = vmatprep.subr.mxu0 0.0
        %2638 = vmatpush1.msra.mxu0 0.0
        %2639 = vmatprep.subr.mxu0 0.0
        %2640 = vmatpush1.msra.mxu0 0.0
        %2641 = vmatprep.subr.mxu0 0.0
        %2642 = vmatpush1.msra.mxu0 0.0
        %2643 = vmatprep.subr.mxu0 0.0
        %2644 = vmatpush1.msra.mxu0 0.0
        %2645 = vmatprep.subr.mxu0 0.0
        %2646 = vmatpush1.msra.mxu0 0.0
        %2647 = vmatprep.subr.mxu0 0.0
        %2648 = vmatpush1.msra.mxu0 0.0
        %2649 = vmatprep.subr.mxu0 0.0
        %2650 = vmatpush1.msra.mxu0 0.0
        %2651 = vmatprep.subr.mxu0 0.0
        %2652 = vmatpush1.msra.mxu0 0.0
        %2653 = vmatprep.subr.mxu0 0.0
        %2654 = vmatpush1.msra.mxu0 0.0
        %2655 = vmatprep.subr.mxu0 0.0
        %2656 = vmatpush1.msra.mxu0 0.0
        %2657 = vmatprep.subr.mxu0 0.0
        %2658 = vmatpush1.msra.mxu0 0.0
        %2659 = vmatprep.subr.mxu0 0.0
        %2660 = vmatpush1.msra.mxu0 0.0
        %2661 = vmatprep.subr.mxu0 0.0
        %2662 = vmatpush1.msra.mxu0 0.0
        %2663 = vmatprep.subr.mxu0 0.0
        %2664 = vmatpush1.msra.mxu0 0.0
        %2665 = vmatprep.subr.mxu0 0.0
        %2666 = vmatpush1.msra.mxu0 0.0
        %2667 = vmatprep.subr.mxu0 0.0
        %2668 = vmatpush1.msra.mxu0 0.0
        %2669 = vmatprep.subr.mxu0 0.0
        %2670 = vmatpush1.msra.mxu0 0.0
        %2671 = vmatprep.subr.mxu0 0.0
        %2672 = vmatpush1.msra.mxu0 0.0
        %2673 = vmatprep.subr.mxu0 0.0
        %2674 = vmatpush1.msra.mxu0 0.0
        %2675 = vmatprep.subr.mxu0 0.0
        %2676 = vmatpush1.msra.mxu0 0.0
        %2677 = vmatprep.subr.mxu0 0.0
        %2678 = vmatpush1.msra.mxu0 0.0
        %2679 = vmatprep.subr.mxu0 0.0
        %2680 = vmatpush1.msra.mxu0 0.0
        %2681 = vmatprep.subr.mxu0 0.0
        %2682 = vmatpush1.msra.mxu0 0.0
        %2683 = vmatprep.subr.mxu0 0.0
        %2684 = vmatpush1.msra.mxu0 0.0
        %2685 = vmatprep.mubr.f32.mxu0 0.0
        %2686 = vmatmul.mubr.f32.gmra.mrb[0].mxu0 %v2619
        %v2687 = vpop.f32.mrb[0].mxu0
        %v2688 = vadd.f32 %v1460, %v2687
        %v2689 = vpop.f32.mrb[0].mxu0
        %2690 = vdwg.mxu0
        %v2692 = vrot.slane %v2688, 5
        %v2694 = vadd.f32 %v1455, %v2692
        %v2695 = vxor.u32 %v2694, 2147483648
        %v2696 = vmul.f32 %v2695, 1.442695
        %v2697 = vpow.pop %v2696
        %v2698 = vadd.f32 %v2697, 1.0
        %v2699 = vrcp.pop %v2698
        %v2700 = vmul.f32 1.0, %v2699
        %2701 = vrot.lane.b32.xlu0 %v2692, 64
        %v2702 = vpop.permute.xlu0 %2701
        %v2704 = vmul.f32 %v2700, %v2702
        %2706 = vrot.lane.b32.xlu0 %v2704, 64
        %v2707 = vpop.permute.xlu0 %2706
        %v2709 = vadd.f32 %v1455, %v2707
        %v2710 = vtanh.pop %v2709
        %v2711 = vsub.f32 1.0, %v2700
        %2713 = vrot.lane.b32.xlu0 %v2710, 96
        %v2714 = vpop.permute.xlu0 %2713
        %v2716 = vmul.f32 %v2711, %v2714
        %v2717 = vrot.slane %v2614, 7
        %v2719 = vmul.f32 %v2700, %v2717
        %v2720 = vadd.f32 %v2716, %v2719
        %v2722 = vrot.slane %v2720, 3
        %2723 = vrot.lane.b32.xlu0 %v2722, 96
        %v2724 = vpop.permute.xlu0 %2723
        %v2725 = vsel %vm764, %v2724, 0
        %2727 = vmatprep.subr.mxu0 0.0
        %2728 = vmatpush1.msra.mxu0 %v1456
        %2729 = vmatprep.subr.mxu0 0.0
        %2730 = vmatpush1.msra.mxu0 %v1457
        %2731 = vmatprep.subr.mxu0 0.0
        %2732 = vmatpush1.msra.mxu0 %v1458
        %2733 = vmatprep.subr.mxu0 0.0
        %2734 = vmatpush1.msra.mxu0 %v1459
        %2735 = vmatprep.subr.mxu0 0.0
        %2736 = vmatpush1.msra.mxu0 0.0
        %2737 = vmatprep.subr.mxu0 0.0
        %2738 = vmatpush1.msra.mxu0 0.0
        %2739 = vmatprep.subr.mxu0 0.0
        %2740 = vmatpush1.msra.mxu0 0.0
        %2741 = vmatprep.subr.mxu0 0.0
        %2742 = vmatpush1.msra.mxu0 0.0
        %2743 = vmatprep.subr.mxu0 0.0
        %2744 = vmatpush1.msra.mxu0 0.0
        %2745 = vmatprep.subr.mxu0 0.0
        %2746 = vmatpush1.msra.mxu0 0.0
        %2747 = vmatprep.subr.mxu0 0.0
        %2748 = vmatpush1.msra.mxu0 0.0
        %2749 = vmatprep.subr.mxu0 0.0
        %2750 = vmatpush1.msra.mxu0 0.0
        %2751 = vmatprep.subr.mxu0 0.0
        %2752 = vmatpush1.msra.mxu0 0.0
        %2753 = vmatprep.subr.mxu0 0.0
        %2754 = vmatpush1.msra.mxu0 0.0
        %2755 = vmatprep.subr.mxu0 0.0
        %2756 = vmatpush1.msra.mxu0 0.0
        %2757 = vmatprep.subr.mxu0 0.0
        %2758 = vmatpush1.msra.mxu0 0.0
        %2759 = vmatprep.subr.mxu0 0.0
        %2760 = vmatpush1.msra.mxu0 0.0
        %2761 = vmatprep.subr.mxu0 0.0
        %2762 = vmatpush1.msra.mxu0 0.0
        %2763 = vmatprep.subr.mxu0 0.0
        %2764 = vmatpush1.msra.mxu0 0.0
        %2765 = vmatprep.subr.mxu0 0.0
        %2766 = vmatpush1.msra.mxu0 0.0
        %2767 = vmatprep.subr.mxu0 0.0
        %2768 = vmatpush1.msra.mxu0 0.0
        %2769 = vmatprep.subr.mxu0 0.0
        %2770 = vmatpush1.msra.mxu0 0.0
        %2771 = vmatprep.subr.mxu0 0.0
        %2772 = vmatpush1.msra.mxu0 0.0
        %2773 = vmatprep.subr.mxu0 0.0
        %2774 = vmatpush1.msra.mxu0 0.0
        %2775 = vmatprep.subr.mxu0 0.0
        %2776 = vmatpush1.msra.mxu0 0.0
        %2777 = vmatprep.subr.mxu0 0.0
        %2778 = vmatpush1.msra.mxu0 0.0
        %2779 = vmatprep.subr.mxu0 0.0
        %2780 = vmatpush1.msra.mxu0 0.0
        %2781 = vmatprep.subr.mxu0 0.0
        %2782 = vmatpush1.msra.mxu0 0.0
        %2783 = vmatprep.subr.mxu0 0.0
        %2784 = vmatpush1.msra.mxu0 0.0
        %2785 = vmatprep.subr.mxu0 0.0
        %2786 = vmatpush1.msra.mxu0 0.0
        %2787 = vmatprep.subr.mxu0 0.0
        %2788 = vmatpush1.msra.mxu0 0.0
        %2789 = vmatprep.subr.mxu0 0.0
        %2790 = vmatpush1.msra.mxu0 0.0
        %2791 = vmatprep.mubr.f32.mxu0 0.0
        %2792 = vmatmul.mubr.f32.gmra.mrb[0].mxu0 %v2725
        %v2793 = vpop.f32.mrb[0].mxu0
        %v2794 = vadd.f32 %v1460, %v2793
        %v2795 = vpop.f32.mrb[0].mxu0
        %2796 = vdwg.mxu0
        %v2798 = vrot.slane %v2794, 4
        %v2800 = vadd.f32 %v1455, %v2798
        %v2801 = vxor.u32 %v2800, 2147483648
        %v2802 = vmul.f32 %v2801, 1.442695
        %v2803 = vpow.pop %v2802
        %v2804 = vadd.f32 %v2803, 1.0
        %v2805 = vrcp.pop %v2804
        %v2806 = vmul.f32 1.0, %v2805
        %2807 = vrot.lane.b32.xlu0 %v2798, 64
        %v2808 = vpop.permute.xlu0 %2807
        %v2810 = vmul.f32 %v2806, %v2808
        %2812 = vrot.lane.b32.xlu0 %v2810, 64
        %v2813 = vpop.permute.xlu0 %2812
        %v2815 = vadd.f32 %v1455, %v2813
        %v2816 = vtanh.pop %v2815
        %v2817 = vsub.f32 1.0, %v2806
        %2819 = vrot.lane.b32.xlu0 %v2816, 96
        %v2820 = vpop.permute.xlu0 %2819
        %v2822 = vmul.f32 %v2817, %v2820
        %v2823 = vrot.slane %v2720, 7
        %v2825 = vmul.f32 %v2806, %v2823
        %v2826 = vadd.f32 %v2822, %v2825
        %v2828 = vrot.slane %v2826, 4
        %2829 = vrot.lane.b32.xlu0 %v2828, 96
        %v2830 = vpop.permute.xlu0 %2829
        %v2831 = vsel %vm764, %v2830, 0
        %2833 = vmatprep.subr.mxu0 0.0
        %2834 = vmatpush1.msra.mxu0 %v1456
        %2835 = vmatprep.subr.mxu0 0.0
        %2836 = vmatpush1.msra.mxu0 %v1457
        %2837 = vmatprep.subr.mxu0 0.0
        %2838 = vmatpush1.msra.mxu0 %v1458
        %2839 = vmatprep.subr.mxu0 0.0
        %2840 = vmatpush1.msra.mxu0 %v1459
        %2841 = vmatprep.subr.mxu0 0.0
        %2842 = vmatpush1.msra.mxu0 0.0
        %2843 = vmatprep.subr.mxu0 0.0
        %2844 = vmatpush1.msra.mxu0 0.0
        %2845 = vmatprep.subr.mxu0 0.0
        %2846 = vmatpush1.msra.mxu0 0.0
        %2847 = vmatprep.subr.mxu0 0.0
        %2848 = vmatpush1.msra.mxu0 0.0
        %2849 = vmatprep.subr.mxu0 0.0
        %2850 = vmatpush1.msra.mxu0 0.0
        %2851 = vmatprep.subr.mxu0 0.0
        %2852 = vmatpush1.msra.mxu0 0.0
        %2853 = vmatprep.subr.mxu0 0.0
        %2854 = vmatpush1.msra.mxu0 0.0
        %2855 = vmatprep.subr.mxu0 0.0
        %2856 = vmatpush1.msra.mxu0 0.0
        %2857 = vmatprep.subr.mxu0 0.0
        %2858 = vmatpush1.msra.mxu0 0.0
        %2859 = vmatprep.subr.mxu0 0.0
        %2860 = vmatpush1.msra.mxu0 0.0
        %2861 = vmatprep.subr.mxu0 0.0
        %2862 = vmatpush1.msra.mxu0 0.0
        %2863 = vmatprep.subr.mxu0 0.0
        %2864 = vmatpush1.msra.mxu0 0.0
        %2865 = vmatprep.subr.mxu0 0.0
        %2866 = vmatpush1.msra.mxu0 0.0
        %2867 = vmatprep.subr.mxu0 0.0
        %2868 = vmatpush1.msra.mxu0 0.0
        %2869 = vmatprep.subr.mxu0 0.0
        %2870 = vmatpush1.msra.mxu0 0.0
        %2871 = vmatprep.subr.mxu0 0.0
        %2872 = vmatpush1.msra.mxu0 0.0
        %2873 = vmatprep.subr.mxu0 0.0
        %2874 = vmatpush1.msra.mxu0 0.0
        %2875 = vmatprep.subr.mxu0 0.0
        %2876 = vmatpush1.msra.mxu0 0.0
        %2877 = vmatprep.subr.mxu0 0.0
        %2878 = vmatpush1.msra.mxu0 0.0
        %2879 = vmatprep.subr.mxu0 0.0
        %2880 = vmatpush1.msra.mxu0 0.0
        %2881 = vmatprep.subr.mxu0 0.0
        %2882 = vmatpush1.msra.mxu0 0.0
        %2883 = vmatprep.subr.mxu0 0.0
        %2884 = vmatpush1.msra.mxu0 0.0
        %2885 = vmatprep.subr.mxu0 0.0
        %2886 = vmatpush1.msra.mxu0 0.0
        %2887 = vmatprep.subr.mxu0 0.0
        %2888 = vmatpush1.msra.mxu0 0.0
        %2889 = vmatprep.subr.mxu0 0.0
        %2890 = vmatpush1.msra.mxu0 0.0
        %2891 = vmatprep.subr.mxu0 0.0
        %2892 = vmatpush1.msra.mxu0 0.0
        %2893 = vmatprep.subr.mxu0 0.0
        %2894 = vmatpush1.msra.mxu0 0.0
        %2895 = vmatprep.subr.mxu0 0.0
        %2896 = vmatpush1.msra.mxu0 0.0
        %2897 = vmatprep.mubr.f32.mxu0 0.0
        %2898 = vmatmul.mubr.f32.gmra.mrb[0].mxu0 %v2831
        %v2899 = vpop.f32.mrb[0].mxu0
        %v2900 = vadd.f32 %v1460, %v2899
        %v2901 = vpop.f32.mrb[0].mxu0
        %2902 = vdwg.mxu0
        %v2904 = vrot.slane %v2900, 3
        %v2906 = vadd.f32 %v1455, %v2904
        %v2907 = vxor.u32 %v2906, 2147483648
        %v2908 = vmul.f32 %v2907, 1.442695
        %v2909 = vpow.pop %v2908
        %v2910 = vadd.f32 %v2909, 1.0
        %v2911 = vrcp.pop %v2910
        %v2912 = vmul.f32 1.0, %v2911
        %2913 = vrot.lane.b32.xlu0 %v2904, 64
        %v2914 = vpop.permute.xlu0 %2913
        %v2916 = vmul.f32 %v2912, %v2914
        %2918 = vrot.lane.b32.xlu0 %v2916, 64
        %v2919 = vpop.permute.xlu0 %2918
        %v2921 = vadd.f32 %v1455, %v2919
        %v2922 = vtanh.pop %v2921
        %v2923 = vsub.f32 1.0, %v2912
        %2925 = vrot.lane.b32.xlu0 %v2922, 96
        %v2926 = vpop.permute.xlu0 %2925
        %v2928 = vmul.f32 %v2923, %v2926
        %v2929 = vrot.slane %v2826, 7
        %v2931 = vmul.f32 %v2912, %v2929
        %v2932 = vadd.f32 %v2928, %v2931
        %v2934 = vrot.slane %v2932, 5
        %2935 = vrot.lane.b32.xlu0 %v2934, 96
        %v2936 = vpop.permute.xlu0 %2935
        %v2937 = vsel %vm764, %v2936, 0
        %2939 = vmatprep.subr.mxu0 0.0
        %2940 = vmatpush1.msra.mxu0 %v1456
        %2941 = vmatprep.subr.mxu0 0.0
        %2942 = vmatpush1.msra.mxu0 %v1457
        %2943 = vmatprep.subr.mxu0 0.0
        %2944 = vmatpush1.msra.mxu0 %v1458
        %2945 = vmatprep.subr.mxu0 0.0
        %2946 = vmatpush1.msra.mxu0 %v1459
        %2947 = vmatprep.subr.mxu0 0.0
        %2948 = vmatpush1.msra.mxu0 0.0
        %2949 = vmatprep.subr.mxu0 0.0
        %2950 = vmatpush1.msra.mxu0 0.0
        %2951 = vmatprep.subr.mxu0 0.0
        %2952 = vmatpush1.msra.mxu0 0.0
        %2953 = vmatprep.subr.mxu0 0.0
        %2954 = vmatpush1.msra.mxu0 0.0
        %2955 = vmatprep.subr.mxu0 0.0
        %2956 = vmatpush1.msra.mxu0 0.0
        %2957 = vmatprep.subr.mxu0 0.0
        %2958 = vmatpush1.msra.mxu0 0.0
        %2959 = vmatprep.subr.mxu0 0.0
        %2960 = vmatpush1.msra.mxu0 0.0
        %2961 = vmatprep.subr.mxu0 0.0
        %2962 = vmatpush1.msra.mxu0 0.0
        %2963 = vmatprep.subr.mxu0 0.0
        %2964 = vmatpush1.msra.mxu0 0.0
        %2965 = vmatprep.subr.mxu0 0.0
        %2966 = vmatpush1.msra.mxu0 0.0
        %2967 = vmatprep.subr.mxu0 0.0
        %2968 = vmatpush1.msra.mxu0 0.0
        %2969 = vmatprep.subr.mxu0 0.0
        %2970 = vmatpush1.msra.mxu0 0.0
        %2971 = vmatprep.subr.mxu0 0.0
        %2972 = vmatpush1.msra.mxu0 0.0
        %2973 = vmatprep.subr.mxu0 0.0
        %2974 = vmatpush1.msra.mxu0 0.0
        %2975 = vmatprep.subr.mxu0 0.0
        %2976 = vmatpush1.msra.mxu0 0.0
        %2977 = vmatprep.subr.mxu0 0.0
        %2978 = vmatpush1.msra.mxu0 0.0
        %2979 = vmatprep.subr.mxu0 0.0
        %2980 = vmatpush1.msra.mxu0 0.0
        %2981 = vmatprep.subr.mxu0 0.0
        %2982 = vmatpush1.msra.mxu0 0.0
        %2983 = vmatprep.subr.mxu0 0.0
        %2984 = vmatpush1.msra.mxu0 0.0
        %2985 = vmatprep.subr.mxu0 0.0
        %2986 = vmatpush1.msra.mxu0 0.0
        %2987 = vmatprep.subr.mxu0 0.0
        %2988 = vmatpush1.msra.mxu0 0.0
        %2989 = vmatprep.subr.mxu0 0.0
        %2990 = vmatpush1.msra.mxu0 0.0
        %2991 = vmatprep.subr.mxu0 0.0
        %2992 = vmatpush1.msra.mxu0 0.0
        %2993 = vmatprep.subr.mxu0 0.0
        %2994 = vmatpush1.msra.mxu0 0.0
        %2995 = vmatprep.subr.mxu0 0.0
        %2996 = vmatpush1.msra.mxu0 0.0
        %2997 = vmatprep.subr.mxu0 0.0
        %2998 = vmatpush1.msra.mxu0 0.0
        %2999 = vmatprep.subr.mxu0 0.0
        %3000 = vmatpush1.msra.mxu0 0.0
        %3001 = vmatprep.subr.mxu0 0.0
        %3002 = vmatpush1.msra.mxu0 0.0
        %3003 = vmatprep.mubr.f32.mxu0 0.0
        %3004 = vmatmul.mubr.f32.gmra.mrb[0].mxu0 %v2937
        %v3005 = vpop.f32.mrb[0].mxu0
        %v3006 = vadd.f32 %v1460, %v3005
        %v3007 = vpop.f32.mrb[0].mxu0
        %3008 = vdwg.mxu0
        %v3010 = vrot.slane %v3006, 2
        %v3012 = vadd.f32 %v1455, %v3010
        %v3013 = vxor.u32 %v3012, 2147483648
        %v3014 = vmul.f32 %v3013, 1.442695
        %v3015 = vpow.pop %v3014
        %v3016 = vadd.f32 %v3015, 1.0
        %v3017 = vrcp.pop %v3016
        %v3018 = vmul.f32 1.0, %v3017
        %3019 = vrot.lane.b32.xlu0 %v3010, 64
        %v3020 = vpop.permute.xlu0 %3019
        %v3022 = vmul.f32 %v3018, %v3020
        %3024 = vrot.lane.b32.xlu0 %v3022, 64
        %v3025 = vpop.permute.xlu0 %3024
        %v3027 = vadd.f32 %v1455, %v3025
        %v3028 = vtanh.pop %v3027
        %v3029 = vsub.f32 1.0, %v3018
        %3031 = vrot.lane.b32.xlu0 %v3028, 96
        %v3032 = vpop.permute.xlu0 %3031
        %v3034 = vmul.f32 %v3029, %v3032
        %v3035 = vrot.slane %v2932, 7
        %v3037 = vmul.f32 %v3018, %v3035
        %v3038 = vadd.f32 %v3034, %v3037
        %v3040 = vrot.slane %v3038, 6
        %3041 = vrot.lane.b32.xlu0 %v3040, 96
        %v3042 = vpop.permute.xlu0 %3041
        %v3043 = vsel %vm764, %v3042, 0
        %3045 = vmatprep.subr.mxu0 0.0
        %3046 = vmatpush1.msra.mxu0 %v1456
        %3047 = vmatprep.subr.mxu0 0.0
        %3048 = vmatpush1.msra.mxu0 %v1457
        %3049 = vmatprep.subr.mxu0 0.0
        %3050 = vmatpush1.msra.mxu0 %v1458
        %3051 = vmatprep.subr.mxu0 0.0
        %3052 = vmatpush1.msra.mxu0 %v1459
        %3053 = vmatprep.subr.mxu0 0.0
        %3054 = vmatpush1.msra.mxu0 0.0
        %3055 = vmatprep.subr.mxu0 0.0
        %3056 = vmatpush1.msra.mxu0 0.0
        %3057 = vmatprep.subr.mxu0 0.0
        %3058 = vmatpush1.msra.mxu0 0.0
        %3059 = vmatprep.subr.mxu0 0.0
        %3060 = vmatpush1.msra.mxu0 0.0
        %3061 = vmatprep.subr.mxu0 0.0
        %3062 = vmatpush1.msra.mxu0 0.0
        %3063 = vmatprep.subr.mxu0 0.0
        %3064 = vmatpush1.msra.mxu0 0.0
        %3065 = vmatprep.subr.mxu0 0.0
        %3066 = vmatpush1.msra.mxu0 0.0
        %3067 = vmatprep.subr.mxu0 0.0
        %3068 = vmatpush1.msra.mxu0 0.0
        %3069 = vmatprep.subr.mxu0 0.0
        %3070 = vmatpush1.msra.mxu0 0.0
        %3071 = vmatprep.subr.mxu0 0.0
        %3072 = vmatpush1.msra.mxu0 0.0
        %3073 = vmatprep.subr.mxu0 0.0
        %3074 = vmatpush1.msra.mxu0 0.0
        %3075 = vmatprep.subr.mxu0 0.0
        %3076 = vmatpush1.msra.mxu0 0.0
        %3077 = vmatprep.subr.mxu0 0.0
        %3078 = vmatpush1.msra.mxu0 0.0
        %3079 = vmatprep.subr.mxu0 0.0
        %3080 = vmatpush1.msra.mxu0 0.0
        %3081 = vmatprep.subr.mxu0 0.0
        %3082 = vmatpush1.msra.mxu0 0.0
        %3083 = vmatprep.subr.mxu0 0.0
        %3084 = vmatpush1.msra.mxu0 0.0
        %3085 = vmatprep.subr.mxu0 0.0
        %3086 = vmatpush1.msra.mxu0 0.0
        %3087 = vmatprep.subr.mxu0 0.0
        %3088 = vmatpush1.msra.mxu0 0.0
        %3089 = vmatprep.subr.mxu0 0.0
        %3090 = vmatpush1.msra.mxu0 0.0
        %3091 = vmatprep.subr.mxu0 0.0
        %3092 = vmatpush1.msra.mxu0 0.0
        %3093 = vmatprep.subr.mxu0 0.0
        %3094 = vmatpush1.msra.mxu0 0.0
        %3095 = vmatprep.subr.mxu0 0.0
        %3096 = vmatpush1.msra.mxu0 0.0
        %3097 = vmatprep.subr.mxu0 0.0
        %3098 = vmatpush1.msra.mxu0 0.0
        %3099 = vmatprep.subr.mxu0 0.0
        %3100 = vmatpush1.msra.mxu0 0.0
        %3101 = vmatprep.subr.mxu0 0.0
        %3102 = vmatpush1.msra.mxu0 0.0
        %3103 = vmatprep.subr.mxu0 0.0
        %3104 = vmatpush1.msra.mxu0 0.0
        %3105 = vmatprep.subr.mxu0 0.0
        %3106 = vmatpush1.msra.mxu0 0.0
        %3107 = vmatprep.subr.mxu0 0.0
        %3108 = vmatpush1.msra.mxu0 0.0
        %3109 = vmatprep.mubr.f32.mxu0 0.0
        %3110 = vmatmul.mubr.f32.gmra.mrb[0].mxu0 %v3043
        %v3111 = vpop.f32.mrb[0].mxu0
        %v3112 = vadd.f32 %v1460, %v3111
        %v3113 = vpop.f32.mrb[0].mxu0
        %3114 = vdwg.mxu0
        %v3116 = vrot.slane %v3112, 1
        %v3118 = vadd.f32 %v1455, %v3116
        %v3119 = vxor.u32 %v3118, 2147483648
        %v3120 = vmul.f32 %v3119, 1.442695
        %v3121 = vpow.pop %v3120
        %v3122 = vadd.f32 %v3121, 1.0
        %v3123 = vrcp.pop %v3122
        %v3124 = vmul.f32 1.0, %v3123
        %3125 = vrot.lane.b32.xlu0 %v3116, 64
        %v3126 = vpop.permute.xlu0 %3125
        %v3128 = vmul.f32 %v3124, %v3126
        %3130 = vrot.lane.b32.xlu0 %v3128, 64
        %v3131 = vpop.permute.xlu0 %3130
        %v3133 = vadd.f32 %v1455, %v3131
        %v3134 = vtanh.pop %v3133
        %v3135 = vsub.f32 1.0, %v3124
        %3137 = vrot.lane.b32.xlu0 %v3134, 96
        %v3138 = vpop.permute.xlu0 %3137
        %v3140 = vmul.f32 %v3135, %v3138
        %v3141 = vrot.slane %v3038, 7
        %v3143 = vmul.f32 %v3124, %v3141
        %v3144 = vadd.f32 %v3140, %v3143
        %v3145 = vld [vmem:[%s17] sm:$0xff]
        %v3146 = vld [vmem:[%s17 + $0x8] sm:$0xff]
        %v3147 = vld [vmem:[%s17 + $0x10] sm:$0xff]
        %v3148 = vld [vmem:[%s17 + $0x18] sm:$0xff]
        %v3149 = vld [vmem:[%s18] sm:$0xff]
        %v3150 = vld [vmem:[%s18 + $0x8] sm:$0xff]
        %v3151 = vld [vmem:[%s18 + $0x10] sm:$0xff]
        %v3152 = vld [vmem:[%s18 + $0x18] sm:$0xff]
        %v3154 = vrot.slane %v3144, 7
        %3155 = vrot.lane.b32.xlu0 %v3154, 96
        %v3156 = vpop.permute.xlu0 %3155
        %v3157 = vsel %vm764, %v3156, 0
        %3159 = vmatprep.subr.mxu0 0.0
        %3160 = vmatpush1.msra.mxu0 %v3149
        %3161 = vmatprep.subr.mxu0 0.0
        %3162 = vmatpush1.msra.mxu0 %v3150
        %3163 = vmatprep.subr.mxu0 0.0
        %3164 = vmatpush1.msra.mxu0 %v3151
        %3165 = vmatprep.subr.mxu0 0.0
        %3166 = vmatpush1.msra.mxu0 %v3152
        %3167 = vmatprep.subr.mxu0 0.0
        %3168 = vmatpush1.msra.mxu0 0.0
        %3169 = vmatprep.subr.mxu0 0.0
        %3170 = vmatpush1.msra.mxu0 0.0
        %3171 = vmatprep.subr.mxu0 0.0
        %3172 = vmatpush1.msra.mxu0 0.0
        %3173 = vmatprep.subr.mxu0 0.0
        %3174 = vmatpush1.msra.mxu0 0.0
        %3175 = vmatprep.subr.mxu0 0.0
        %3176 = vmatpush1.msra.mxu0 0.0
        %3177 = vmatprep.subr.mxu0 0.0
        %3178 = vmatpush1.msra.mxu0 0.0
        %3179 = vmatprep.subr.mxu0 0.0
        %3180 = vmatpush1.msra.mxu0 0.0
        %3181 = vmatprep.subr.mxu0 0.0
        %3182 = vmatpush1.msra.mxu0 0.0
        %3183 = vmatprep.subr.mxu0 0.0
        %3184 = vmatpush1.msra.mxu0 0.0
        %3185 = vmatprep.subr.mxu0 0.0
        %3186 = vmatpush1.msra.mxu0 0.0
        %3187 = vmatprep.subr.mxu0 0.0
        %3188 = vmatpush1.msra.mxu0 0.0
        %3189 = vmatprep.subr.mxu0 0.0
        %3190 = vmatpush1.msra.mxu0 0.0
        %3191 = vmatprep.subr.mxu0 0.0
        %3192 = vmatpush1.msra.mxu0 0.0
        %3193 = vmatprep.subr.mxu0 0.0
        %3194 = vmatpush1.msra.mxu0 0.0
        %3195 = vmatprep.subr.mxu0 0.0
        %3196 = vmatpush1.msra.mxu0 0.0
        %3197 = vmatprep.subr.mxu0 0.0
        %3198 = vmatpush1.msra.mxu0 0.0
        %3199 = vmatprep.subr.mxu0 0.0
        %3200 = vmatpush1.msra.mxu0 0.0
        %3201 = vmatprep.subr.mxu0 0.0
        %3202 = vmatpush1.msra.mxu0 0.0
        %3203 = vmatprep.subr.mxu0 0.0
        %3204 = vmatpush1.msra.mxu0 0.0
        %3205 = vmatprep.subr.mxu0 0.0
        %3206 = vmatpush1.msra.mxu0 0.0
        %3207 = vmatprep.subr.mxu0 0.0
        %3208 = vmatpush1.msra.mxu0 0.0
        %3209 = vmatprep.subr.mxu0 0.0
        %3210 = vmatpush1.msra.mxu0 0.0
        %3211 = vmatprep.subr.mxu0 0.0
        %3212 = vmatpush1.msra.mxu0 0.0
        %3213 = vmatprep.subr.mxu0 0.0
        %3214 = vmatpush1.msra.mxu0 0.0
        %3215 = vmatprep.subr.mxu0 0.0
        %3216 = vmatpush1.msra.mxu0 0.0
        %3217 = vmatprep.subr.mxu0 0.0
        %3218 = vmatpush1.msra.mxu0 0.0
        %3219 = vmatprep.subr.mxu0 0.0
        %3220 = vmatpush1.msra.mxu0 0.0
        %3221 = vmatprep.subr.mxu0 0.0
        %3222 = vmatpush1.msra.mxu0 0.0
        %3223 = vmatprep.mubr.f32.mxu0 0.0
        %3224 = vmatmul.mubr.f32.gmra.mrb[0].mxu0 %v3157
        %v3225 = vpop.f32.mrb[0].mxu0
        %v3226 = vadd.f32 0.0, %v3225
        %v3227 = vpop.f32.mrb[0].mxu0
        %3228 = vdwg.mxu0
        %v3230 = vsel %vm764, %v1269, 0
        %3232 = vmatprep.subr.mxu0 0.0
        %3233 = vmatpush1.msra.mxu0 %v3145
        %3234 = vmatprep.subr.mxu0 0.0
        %3235 = vmatpush1.msra.mxu0 %v3146
        %3236 = vmatprep.subr.mxu0 0.0
        %3237 = vmatpush1.msra.mxu0 %v3147
        %3238 = vmatprep.subr.mxu0 0.0
        %3239 = vmatpush1.msra.mxu0 %v3148
        %3240 = vmatprep.subr.mxu0 0.0
        %3241 = vmatpush1.msra.mxu0 0.0
        %3242 = vmatprep.subr.mxu0 0.0
        %3243 = vmatpush1.msra.mxu0 0.0
        %3244 = vmatprep.subr.mxu0 0.0
        %3245 = vmatpush1.msra.mxu0 0.0
        %3246 = vmatprep.subr.mxu0 0.0
        %3247 = vmatpush1.msra.mxu0 0.0
        %3248 = vmatprep.subr.mxu0 0.0
        %3249 = vmatpush1.msra.mxu0 0.0
        %3250 = vmatprep.subr.mxu0 0.0
        %3251 = vmatpush1.msra.mxu0 0.0
        %3252 = vmatprep.subr.mxu0 0.0
        %3253 = vmatpush1.msra.mxu0 0.0
        %3254 = vmatprep.subr.mxu0 0.0
        %3255 = vmatpush1.msra.mxu0 0.0
        %3256 = vmatprep.subr.mxu0 0.0
        %3257 = vmatpush1.msra.mxu0 0.0
        %3258 = vmatprep.subr.mxu0 0.0
        %3259 = vmatpush1.msra.mxu0 0.0
        %3260 = vmatprep.subr.mxu0 0.0
        %3261 = vmatpush1.msra.mxu0 0.0
        %3262 = vmatprep.subr.mxu0 0.0
        %3263 = vmatpush1.msra.mxu0 0.0
        %3264 = vmatprep.subr.mxu0 0.0
        %3265 = vmatpush1.msra.mxu0 0.0
        %3266 = vmatprep.subr.mxu0 0.0
        %3267 = vmatpush1.msra.mxu0 0.0
        %3268 = vmatprep.subr.mxu0 0.0
        %3269 = vmatpush1.msra.mxu0 0.0
        %3270 = vmatprep.subr.mxu0 0.0
        %3271 = vmatpush1.msra.mxu0 0.0
        %3272 = vmatprep.subr.mxu0 0.0
        %3273 = vmatpush1.msra.mxu0 0.0
        %3274 = vmatprep.subr.mxu0 0.0
        %3275 = vmatpush1.msra.mxu0 0.0
        %3276 = vmatprep.subr.mxu0 0.0
        %3277 = vmatpush1.msra.mxu0 0.0
        %3278 = vmatprep.subr.mxu0 0.0
        %3279 = vmatpush1.msra.mxu0 0.0
        %3280 = vmatprep.subr.mxu0 0.0
        %3281 = vmatpush1.msra.mxu0 0.0
        %3282 = vmatprep.subr.mxu0 0.0
        %3283 = vmatpush1.msra.mxu0 0.0
        %3284 = vmatprep.subr.mxu0 0.0
        %3285 = vmatpush1.msra.mxu0 0.0
        %3286 = vmatprep.subr.mxu0 0.0
        %3287 = vmatpush1.msra.mxu0 0.0
        %3288 = vmatprep.subr.mxu0 0.0
        %3289 = vmatpush1.msra.mxu0 0.0
        %3290 = vmatprep.subr.mxu0 0.0
        %3291 = vmatpush1.msra.mxu0 0.0
        %3292 = vmatprep.subr.mxu0 0.0
        %3293 = vmatpush1.msra.mxu0 0.0
        %3294 = vmatprep.subr.mxu0 0.0
        %3295 = vmatpush1.msra.mxu0 0.0
        %3296 = vmatprep.mubr.f32.mxu0 0.0
        %3297 = vmatmul.mubr.f32.gmra.mrb[0].mxu0 %v3230
        %v3298 = vpop.f32.mrb[0].mxu0
        %v3299 = vadd.f32 %v3226, %v3298
        %v3300 = vpop.f32.mrb[0].mxu0
        %3301 = vdwg.mxu0
        %v3302 = vld [vmem:[%s19] sm:$0x1]
        %v3303 = vadd.f32 %v3299, %v3302
        %v3304 = vmax.f32 %v3303, 0.0
        %v3305 = vld [vmem:[%s20] sm:$0xff]
        %v3306 = vld [vmem:[%s20 + $0x8] sm:$0xff]
        %v3307 = vld [vmem:[%s21] sm:$0x1]
        %v3309 = vsel %vm1198, %v3304, 0
        %3311 = vmatprep.subr.mxu0 0.0
        %3312 = vmatpush1.msra.mxu0 %v3305
        %3313 = vmatprep.subr.mxu0 0.0
        %3314 = vmatpush1.msra.mxu0 %v3306
        %3315 = vmatprep.subr.mxu0 0.0
        %3316 = vmatpush1.msra.mxu0 0.0
        %3317 = vmatprep.subr.mxu0 0.0
        %3318 = vmatpush1.msra.mxu0 0.0
        %3319 = vmatprep.subr.mxu0 0.0
        %3320 = vmatpush1.msra.mxu0 0.0
        %3321 = vmatprep.subr.mxu0 0.0
        %3322 = vmatpush1.msra.mxu0 0.0
        %3323 = vmatprep.subr.mxu0 0.0
        %3324 = vmatpush1.msra.mxu0 0.0
        %3325 = vmatprep.subr.mxu0 0.0
        %3326 = vmatpush1.msra.mxu0 0.0
        %3327 = vmatprep.subr.mxu0 0.0
        %3328 = vmatpush1.msra.mxu0 0.0
        %3329 = vmatprep.subr.mxu0 0.0
        %3330 = vmatpush1.msra.mxu0 0.0
        %3331 = vmatprep.subr.mxu0 0.0
        %3332 = vmatpush1.msra.mxu0 0.0
        %3333 = vmatprep.subr.mxu0 0.0
        %3334 = vmatpush1.msra.mxu0 0.0
        %3335 = vmatprep.subr.mxu0 0.0
        %3336 = vmatpush1.msra.mxu0 0.0
        %3337 = vmatprep.subr.mxu0 0.0
        %3338 = vmatpush1.msra.mxu0 0.0
        %3339 = vmatprep.subr.mxu0 0.0
        %3340 = vmatpush1.msra.mxu0 0.0
        %3341 = vmatprep.subr.mxu0 0.0
        %3342 = vmatpush1.msra.mxu0 0.0
        %3343 = vmatprep.subr.mxu0 0.0
        %3344 = vmatpush1.msra.mxu0 0.0
        %3345 = vmatprep.subr.mxu0 0.0
        %3346 = vmatpush1.msra.mxu0 0.0
        %3347 = vmatprep.subr.mxu0 0.0
        %3348 = vmatpush1.msra.mxu0 0.0
        %3349 = vmatprep.subr.mxu0 0.0
        %3350 = vmatpush1.msra.mxu0 0.0
        %3351 = vmatprep.subr.mxu0 0.0
        %3352 = vmatpush1.msra.mxu0 0.0
        %3353 = vmatprep.subr.mxu0 0.0
        %3354 = vmatpush1.msra.mxu0 0.0
        %3355 = vmatprep.subr.mxu0 0.0
        %3356 = vmatpush1.msra.mxu0 0.0
        %3357 = vmatprep.subr.mxu0 0.0
        %3358 = vmatpush1.msra.mxu0 0.0
        %3359 = vmatprep.subr.mxu0 0.0
        %3360 = vmatpush1.msra.mxu0 0.0
        %3361 = vmatprep.subr.mxu0 0.0
        %3362 = vmatpush1.msra.mxu0 0.0
        %3363 = vmatprep.subr.mxu0 0.0
        %3364 = vmatpush1.msra.mxu0 0.0
        %3365 = vmatprep.subr.mxu0 0.0
        %3366 = vmatpush1.msra.mxu0 0.0
        %3367 = vmatprep.subr.mxu0 0.0
        %3368 = vmatpush1.msra.mxu0 0.0
        %3369 = vmatprep.subr.mxu0 0.0
        %3370 = vmatpush1.msra.mxu0 0.0
        %3371 = vmatprep.subr.mxu0 0.0
        %3372 = vmatpush1.msra.mxu0 0.0
        %3373 = vmatprep.subr.mxu0 0.0
        %3374 = vmatpush1.msra.mxu0 0.0
        %3375 = vmatprep.mubr.f32.mxu0 0.0
        %3376 = vmatmul.mubr.f32.gmra.mrb[0].mxu0 %v3309
        %v3377 = vpop.f32.mrb[0].mxu0
        %v3378 = vadd.f32 %v3307, %v3377
        %v3379 = vpop.f32.mrb[0].mxu0
        %3380 = vdwg.mxu0
        %vm3381 = vcmask 8192
        %3382 = vst.msk [vmem:[%s727] sm:$0x1] %vm3381, %v3378
        %s3383 = sand.u32 %s523, 1
        %s3384 = scalar_lea.sflag [#allocation3], %s3383
        %s3385 = sand.u32 %s523, 1
        %s3386 = scalar_lea.vmem [#allocation2], %s3385
        %p3387 = scmp.lt.s32.totalorder %s38, 1
        %s3388 = scalar_select %p3387, %s38, 1
        %s3389 = smul.addr %s3388, 2
        %s3390 = smul.addr %s3389, 8
        %s3391 = scalar_lea.vmem %s23, %s3390
        // Predicated region
        $region109: #{tpu_custom_call.1} parent=107 // pred_check
          %p3392 = pneg %p533
        $region110: #{tpu_custom_call.1} parent=107 // pred_check_branch
          %3394 = sbr.rel (%p3392) target = $region112
        $region111: #{tpu_custom_call.1} parent=107 // pred_region
          %s3396 = ssub.s32 16, 16
          %3397 = vsyncadd %s3384, %s3396
          %s3398 = smul.addr %s38, 16
          %s3399 = scalar_lea.hbm %s22, %s3398
          %s3401 = sshll.u32 %s3386, 4
          %s3402 = int_to_ptr.vmem [resolvable:$true] %s3401
          %3404 = dma.vmem_to_hbm [thread:$0]  %s3402, 16, %s3399, %s3384
        $region112: #{tpu_custom_call.1} parent=107 // pred_fallthru
          _
        // Predicated region
        $region113: #{tpu_custom_call.1} parent=107 // pred_check
          %p3405 = pneg %p559
        $region114: #{tpu_custom_call.1} parent=107 // pred_check_branch
          %3407 = sbr.rel (%p3405) target = $region116
        $region115: #{tpu_custom_call.1} parent=107 // pred_region
          _
        $region116: #{tpu_custom_call.1} parent=107 // pred_fallthru
          _
      $region108: #{tpu_custom_call.1} parent=5 // pred_fallthru
        _
      %p3408 = scmp.le.s32.totalorder 2, %s33
      // Predicated region
      $region117: #{tpu_custom_call.1} parent=5 // pred_check
        %p3409 = pneg %p3408
      $region118: #{tpu_custom_call.1} parent=5 // pred_check_branch
        %3411 = sbr.rel (%p3409) target = $region120
      $region119: #{tpu_custom_call.1} parent=5 // pred_region
        %s3412 = ssub.s32 %s33, 2
        // Predicated region
        $region121: #{tpu_custom_call.1} parent=119 // pred_check
          %p3413 = pneg %p539
        $region122: #{tpu_custom_call.1} parent=119 // pred_check_branch
          %3415 = sbr.rel (%p3413) target = $region124
        $region123: #{tpu_custom_call.1} parent=119 // pred_region
          %s3416 = sand.u32 %s524, 1
          %s3417 = scalar_lea.sflag [#allocation3], %s3416
          %s3418 = sand.u32 %s524, 1
          %s3419 = scalar_lea.vmem [#allocation2], %s3418
          %3420 = dma.done %s3417, 16
        $region124: #{tpu_custom_call.1} parent=119 // pred_fallthru
          _
        // Predicated region
        $region125: #{tpu_custom_call.1} parent=119 // pred_check
          %p3421 = pneg %p565
        $region126: #{tpu_custom_call.1} parent=119 // pred_check_branch
          %3423 = sbr.rel (%p3421) target = $region128
        $region127: #{tpu_custom_call.1} parent=119 // pred_region
          %p3424 = scmp.lt.s32.totalorder %s39, 1
          %s3425 = scalar_select %p3424, %s39, 1
          %s3426 = smul.addr %s3425, 2
          %s3427 = smul.addr %s3426, 8
          %s3428 = scalar_lea.vmem %s23, %s3427
        $region128: #{tpu_custom_call.1} parent=119 // pred_fallthru
          _
      $region120: #{tpu_custom_call.1} parent=5 // pred_fallthru
        _
    $region6: #{tpu_custom_call.1} parent=1 // loop_footer
      %s37 = sadd.s32 1, %s33
    $region7: #{tpu_custom_call.1} parent=1 // loop_footer_branch
      %32 = sbr.rel target = $region3
    $region8: #{tpu_custom_call.1} parent=1 // loop_exit
      _
    %3429 = vsyncpa [#allocation3], 1
    %s3430 = scalar_lea.sflag [#allocation3], 1
    %3431 = vsyncpa %s3430, 1

</llo_original>
